<compile_context>
chip_gen: v7x
topology: tpu7x:2x2x1
jax: 0.10.0
libtpu: 0.0.40
codegen_flags: <defaults>
</compile_context>

<pallas_src>
import functools
import jax
import jax.numpy as jnp
from jax.experimental import pallas as pl
from jax.experimental.pallas import tpu as pltpu


# ---------------------------------------------------------------- utilities
def _full_spec(shape):
    nd = len(shape)
    return pl.BlockSpec(shape, lambda *_, nd=nd: (0,) * nd)


def _smem_spec(shape):
    nd = len(shape)
    return pl.BlockSpec(shape, lambda *_, nd=nd: (0,) * nd,
                        memory_space=pltpu.MemorySpace.SMEM)


def _pad_to(x, shape):
    pads = [(0, t - s) for s, t in zip(x.shape, shape)]
    return jnp.pad(x, pads)


# ------------------------------------------------------------ kernel helpers
def _attn_pool(x, mask, w1, b1, w2row, b2):
    """AttentionPooling: tanh-MLP scores + exp + mask + normalize + weighted sum.

    Max-stabilized variant: subtracting the per-row max and scaling the eps by
    exp(-max) is algebraically identical to the reference
        alpha = exp(l); alpha *= mask; alpha /= (sum(alpha) + 1e-8)
    `x` may be bf16 (MXU operand); pooling math is done in f32.
    """
    BN, L, E = x.shape
    H = w1.shape[1]
    x32 = x.astype(jnp.float32)
    # (BN*L, E) @ (E, H) on the MXU; reshape is layout-free (L multiple of 8/16).
    e = jnp.tanh(jnp.dot(x.reshape(BN * L, E), w1,
                         preferred_element_type=jnp.float32) + b1)       # (BN*L, H)
    # N=1-output linear as a VPU multiply + lane reduce (no lane-sparse matmul).
    logits = jnp.sum(e.reshape(BN, L, H) * w2row, axis=-1) + b2          # (BN, L)
    m = jnp.max(logits, axis=1, keepdims=True)                           # (BN, 1)
    a = jnp.exp(logits - m) * mask                                       # (BN, L)
    denom = jnp.sum(a, axis=1, keepdims=True) + 1e-8 * jnp.exp(-m)
    denom = jnp.maximum(denom, 1e-30)          # guard all-masked rows (no NaN)
    alpha = a * pl.reciprocal(denom, approx=False)
    return jnp.sum(x32 * alpha[:, :, None], axis=1)                      # (BN, E)


# ------------------------------------------------------------ fused kernel
def _fused_model_kernel(
        scal_ref,
        wv_ref, wmask_ref, tw1_ref, tb1_ref, tw2_ref, tdw_ref, tdb_ref,
        tv_ref, tmask_ref, pw1_ref, pb1_ref, pw2_ref,
        adj_ref, feat_ref, gw_ref, gb_ref, selu_ref, selg_ref,
        cityev_ref, cityu_ref, cityg_ref,
        wu_gcn_ref, wu_top_ref, wu_city_ref, bu_ref,
        wg_gcn_ref, wg_top_ref, wg_city_ref, wg_desc_ref, bg_ref,
        p1u_ref, p1g_ref, p1c_ref, p1d_ref, p1b_ref, p2w_ref,
        score_ref, *, num_layers):
    f32 = jnp.float32
    bf16 = jnp.bfloat16

    txt_b2 = scal_ref[0]
    top_b2 = scal_ref[1]
    p2_b = scal_ref[2]

    # ----- TextEncoder on [event_desc ; group_desc] (2B rows) -----
    pooled_txt = _attn_pool(wv_ref[...], wmask_ref[...], tw1_ref[...],
                            tb1_ref[...], tw2_ref[...], txt_b2)          # (2B, 384)
    desc_all = jnp.dot(pooled_txt.astype(bf16), tdw_ref[...],
                       preferred_element_type=f32) + tdb_ref[...]        # (2B, 128)

    # ----- TopicEncoder on [user_topic ; group_topic] (2B rows) -----
    topic_all = _attn_pool(tv_ref[...], tmask_ref[...], pw1_ref[...],
                           pb1_ref[...], pw2_ref[...], top_b2)           # (2B, 64)

    # ----- fused 2-layer GCN (all features stay in VMEM) -----
    a = adj_ref[...]
    h = feat_ref[...]
    outs = [h]
    for i in range(num_layers):                       # static unroll
        hw = jnp.dot(h, gw_ref[i], preferred_element_type=f32)
        h = jnp.dot(a, hw, preferred_element_type=f32) + gb_ref[i]
        if i != num_layers - 1:                       # reference: no tanh on last
            h = jnp.tanh(h)
        outs.append(h)
    gcn_feat = jnp.concatenate(outs, axis=1)          # (N, 192)

    # in-kernel row gather via one-hot matmul (gcn_feat never leaves the chip)
    u_gcn = jnp.dot(selu_ref[...], gcn_feat, preferred_element_type=f32)  # (B, 192)
    g_gcn = jnp.dot(selg_ref[...], gcn_feat, preferred_element_type=f32)  # (B, 192)

    B = selu_ref.shape[0]
    u_topic = topic_all[:B]
    g_topic = topic_all[B:]
    ev_desc = desc_all[:B]
    g_desc = desc_all[B:]

    # ----- projection heads; weights split per input block (no concats) -----
    u = (jnp.dot(u_gcn.astype(bf16), wu_gcn_ref[...], preferred_element_type=f32)
         + jnp.dot(u_topic.astype(bf16), wu_top_ref[...], preferred_element_type=f32)
         + jnp.dot(cityu_ref[...].astype(bf16), wu_city_ref[...], preferred_element_type=f32)
         + bu_ref[...])
    u = jnp.maximum(u, 0.0)                                              # (B, 256)
    g = (jnp.dot(g_gcn.astype(bf16), wg_gcn_ref[...], preferred_element_type=f32)
         + jnp.dot(g_topic.astype(bf16), wg_top_ref[...], preferred_element_type=f32)
         + jnp.dot(cityg_ref[...].astype(bf16), wg_city_ref[...], preferred_element_type=f32)
         + jnp.dot(g_desc.astype(bf16), wg_desc_ref[...], preferred_element_type=f32)
         + bg_ref[...])
    g = jnp.maximum(g, 0.0)                                              # (B, 256)

    # ----- prediction MLP (pred1 weight split per block, pred2 as VPU reduce) -----
    hid = (jnp.dot(u.astype(bf16), p1u_ref[...], preferred_element_type=f32)
           + jnp.dot(g.astype(bf16), p1g_ref[...], preferred_element_type=f32)
           + jnp.dot(cityev_ref[...].astype(bf16), p1c_ref[...], preferred_element_type=f32)
           + jnp.dot(ev_desc.astype(bf16), p1d_ref[...], preferred_element_type=f32)
           + p1b_ref[...])
    hid = jnp.maximum(hid, 0.0)                                          # (B, 384)
    logits = jnp.sum(hid * p2w_ref[...], axis=-1, keepdims=True) + p2_b  # (B, 1)
    score_ref[...] = jax.nn.sigmoid(logits)


# ---------------------------------------------------------------- the model
class Config:
    NUM_CITY = 32          # shrunk from 2675 (synthetic)
    NUM_TOPIC = 64         # shrunk from 18115 (synthetic)
    VOCAB = 50             # synthetic word vocab (id 0 = padding)
    NUM_USER = 8
    NUM_GROUP = 8
    CITY_EMB_DIM = 64
    TOPIC_EMB_DIM = 64
    USER_ID_EMB_DIM = 64
    GROUP_ID_EMB_DIM = 64
    DESC_DIM = 128
    USER_EMB_DIM = 256
    GROUP_EMB_DIM = 256
    WORD_EMB_DIM = 300
    NUM_GCN_LAYER = 2
    # lane-aligned padded widths (padding is zero => identical math)
    WORD_EMB_PAD = 384     # 300 -> 3 * 128 lanes
    TXT_HID_PAD = 256      # 150 -> 2 * 128 lanes
    TOP_HID_PAD = 128      # 32  -> 1 * 128 lanes
    PRED_HID_PAD = 384     # 352 -> 3 * 128 lanes


def init_params(key, cfg):
    ks = iter(jax.random.split(key, 40))

    def r(shape, s=0.05):
        return jax.random.normal(next(ks), shape, jnp.float32) * s

    bf16 = jnp.bfloat16
    p = {}
    # embedding tables (stay in HBM; gathered with jnp.take in XLA)
    p["word_emb"] = _pad_to(r((cfg.VOCAB, cfg.WORD_EMB_DIM)),
                            (cfg.VOCAB, cfg.WORD_EMB_PAD)).astype(bf16)
    p["topic_emb"] = r((cfg.NUM_TOPIC, cfg.TOPIC_EMB_DIM))
    p["city_emb"] = r((cfg.NUM_CITY, cfg.CITY_EMB_DIM))
    p["user_id_emb"] = r((cfg.NUM_USER, cfg.USER_ID_EMB_DIM))
    p["group_id_emb"] = r((cfg.NUM_GROUP, cfg.GROUP_ID_EMB_DIM))

    # text encoder: AttentionPooling(300, 150) + Linear(300, 128), lane-padded
    h = cfg.WORD_EMB_DIM // 2
    p["txt_att_w1"] = _pad_to(r((cfg.WORD_EMB_DIM, h)),
                              (cfg.WORD_EMB_PAD, cfg.TXT_HID_PAD)).astype(bf16)
    p["txt_att_b1"] = _pad_to(r((1, h)), (1, cfg.TXT_HID_PAD))
    p["txt_att_w2"] = _pad_to(r((1, h)), (1, cfg.TXT_HID_PAD))       # row form
    txt_att_b2 = r(())
    p["txt_dense_w"] = _pad_to(r((cfg.WORD_EMB_DIM, cfg.DESC_DIM)),
                               (cfg.WORD_EMB_PAD, cfg.DESC_DIM)).astype(bf16)
    p["txt_dense_b"] = r((1, cfg.DESC_DIM))

    # topic encoder: AttentionPooling(64, 32), hidden lane-padded to 128
    ht = cfg.TOPIC_EMB_DIM // 2
    p["top_att_w1"] = _pad_to(r((cfg.TOPIC_EMB_DIM, ht)),
                              (cfg.TOPIC_EMB_DIM, cfg.TOP_HID_PAD))
    p["top_att_b1"] = _pad_to(r((1, ht)), (1, cfg.TOP_HID_PAD))
    p["top_att_w2"] = _pad_to(r((1, ht)), (1, cfg.TOP_HID_PAD))
    top_att_b2 = r(())

    # GCN: stacked weights so the fused kernel takes two arrays
    D = cfg.USER_ID_EMB_DIM
    p["gcn_w"] = r((cfg.NUM_GCN_LAYER, D, D))
    p["gcn_b"] = r((cfg.NUM_GCN_LAYER, 1, D))

    # projection heads, split per input block (equivalent to one big matrix)
    Dg = (1 + cfg.NUM_GCN_LAYER) * D                                  # 192
    p["user_proj_w_gcn"] = r((Dg, cfg.USER_EMB_DIM)).astype(bf16)
    p["user_proj_w_top"] = r((cfg.TOPIC_EMB_DIM, cfg.USER_EMB_DIM)).astype(bf16)
    p["user_proj_w_city"] = r((cfg.CITY_EMB_DIM, cfg.USER_EMB_DIM)).astype(bf16)
    p["user_proj_b"] = r((1, cfg.USER_EMB_DIM))
    p["group_proj_w_gcn"] = r((Dg, cfg.GROUP_EMB_DIM)).astype(bf16)
    p["group_proj_w_top"] = r((cfg.TOPIC_EMB_DIM, cfg.GROUP_EMB_DIM)).astype(bf16)
    p["group_proj_w_city"] = r((cfg.CITY_EMB_DIM, cfg.GROUP_EMB_DIM)).astype(bf16)
    p["group_proj_w_desc"] = r((cfg.DESC_DIM, cfg.GROUP_EMB_DIM)).astype(bf16)
    p["group_proj_b"] = r((1, cfg.GROUP_EMB_DIM))

    # prediction MLP; pred1 split per input block, hidden padded 352 -> 384
    pred_in = cfg.USER_EMB_DIM + cfg.GROUP_EMB_DIM + cfg.CITY_EMB_DIM + cfg.DESC_DIM
    ph = pred_in // 2
    p["pred1_w_u"] = _pad_to(r((cfg.USER_EMB_DIM, ph)),
                             (cfg.USER_EMB_DIM, cfg.PRED_HID_PAD)).astype(bf16)
    p["pred1_w_g"] = _pad_to(r((cfg.GROUP_EMB_DIM, ph)),
                             (cfg.GROUP_EMB_DIM, cfg.PRED_HID_PAD)).astype(bf16)
    p["pred1_w_c"] = _pad_to(r((cfg.CITY_EMB_DIM, ph)),
                             (cfg.CITY_EMB_DIM, cfg.PRED_HID_PAD)).astype(bf16)
    p["pred1_w_d"] = _pad_to(r((cfg.DESC_DIM, ph)),
                             (cfg.DESC_DIM, cfg.PRED_HID_PAD)).astype(bf16)
    p["pred1_b"] = _pad_to(r((1, ph)), (1, cfg.PRED_HID_PAD))
    p["pred2_w"] = _pad_to(r((1, ph)), (1, cfg.PRED_HID_PAD))         # row form
    pred2_b = r(())

    # (1,1) scalar biases packed into one SMEM vector
    p["scalars"] = jnp.stack([txt_att_b2, top_att_b2, pred2_b,
                              jnp.zeros(())]).astype(jnp.float32)
    return p


def normalized_adjacency(raw_w):
    """DGL EdgeWeightNorm(norm='both') on a dense weighted graph.
    raw_w[dst, src] = edge weight of edge src->dst (0 if no edge)."""
    in_deg = jnp.sum(raw_w, axis=1, keepdims=True)    # weighted in-degree of dst
    out_deg = jnp.sum(raw_w, axis=0, keepdims=True)   # weighted out-degree of src
    return raw_w / jnp.sqrt(jnp.maximum(in_deg * out_deg, 1e-12))


# --------------------------------------------------------------- wrappers
def _fused_forward(p, a_norm, word_vecs, wmask, topic_vecs, tmask, feats,
                   selu, selg, city_ev, city_u, city_g, num_layers):
    B = selu.shape[0]
    args = (p["scalars"],
            word_vecs, wmask, p["txt_att_w1"], p["txt_att_b1"], p["txt_att_w2"],
            p["txt_dense_w"], p["txt_dense_b"],
            topic_vecs, tmask, p["top_att_w1"], p["top_att_b1"], p["top_att_w2"],
            a_norm, feats, p["gcn_w"], p["gcn_b"], selu, selg,
            city_ev, city_u, city_g,
            p["user_proj_w_gcn"], p["user_proj_w_top"], p["user_proj_w_city"],
            p["user_proj_b"],
            p["group_proj_w_gcn"], p["group_proj_w_top"], p["group_proj_w_city"],
            p["group_proj_w_desc"], p["group_proj_b"],
            p["pred1_w_u"], p["pred1_w_g"], p["pred1_w_c"], p["pred1_w_d"],
            p["pred1_b"], p["pred2_w"])
    in_specs = [_smem_spec(args[0].shape)] + [_full_spec(a.shape) for a in args[1:]]
    kernel = functools.partial(_fused_model_kernel, num_layers=num_layers)
    score = pl.pallas_call(
        kernel,
        out_shape=jax.ShapeDtypeStruct((B, 1), jnp.float32),
        in_specs=in_specs,
        out_specs=_full_spec((B, 1)),
    )(*args)
    return score[:, 0]


def model_forward(p, a_norm, cfg,
                  event_city, event_desc, user_id, user_topic, user_city,
                  group_id, group_topic, group_city, group_desc, label):
    B = event_city.shape[0]

    # embedding gathers stay in XLA (tables never enter VMEM)
    city_ev = jnp.take(p["city_emb"], event_city, axis=0)
    city_u = jnp.take(p["city_emb"], user_city, axis=0)
    city_g = jnp.take(p["city_emb"], group_city, axis=0)

    # text path: event_desc + group_desc share weights -> one 2B-row slab (bf16)
    desc_ids = jnp.concatenate([event_desc, group_desc], axis=0)          # (2B, L)
    wmask = (desc_ids != 0).astype(jnp.float32)
    word_vecs = jnp.take(p["word_emb"], desc_ids, axis=0)                 # (2B, L, 384) bf16
    # Dropout(p=0.2) is identity in eval mode.

    # topic path: user_topic + group_topic share weights -> one 2B-row slab
    topic_ids = jnp.concatenate([user_topic, group_topic], axis=0)        # (2B, T)
    tmask = (topic_ids != 0).astype(jnp.float32)
    topic_vecs = jnp.take(p["topic_emb"], topic_ids, axis=0)              # (2B, T, 64)

    # GCN node features + one-hot selectors (gather happens inside the kernel)
    feats = jnp.concatenate([p["user_id_emb"], p["group_id_emb"]], axis=0)
    n_total = feats.shape[0]
    selu = jax.nn.one_hot(user_id, n_total, dtype=jnp.float32)            # (B, N)
    selg = jax.nn.one_hot(group_id + cfg.NUM_USER, n_total, dtype=jnp.float32)

    # single fused kernel: encoders + GCN + projections + prediction + sigmoid
    score = _fused_forward(p, a_norm, word_vecs, wmask, topic_vecs, tmask,
                           feats, selu, selg, city_ev, city_u, city_g,
                           cfg.NUM_GCN_LAYER)                             # (B,)

    eps = 1e-12
    sc = jnp.clip(score, eps, 1.0 - eps)
    loss = -jnp.mean(label * jnp.log(sc) + (1.0 - label) * jnp.log(1.0 - sc))
    return score, loss


# --------------------------------------------------------------------- main
if __name__ == "__main__":
    cfg = Config()
    B, NW, NT = 4, 16, 8   # batch, num_words (mult of 8), num_topics (mult of 8)

    key = jax.random.PRNGKey(0)
    kp, kg, *kin = jax.random.split(key, 14)

    params = init_params(kp, cfg)

    # Synthetic dense weighted graph over NUM_USER + NUM_GROUP nodes.
    N = cfg.NUM_USER + cfg.NUM_GROUP
    raw_w = jax.random.uniform(kg, (N, N), jnp.float32, 0.1, 1.0)
    a_norm = normalized_adjacency(raw_w)

    event_city = jax.random.randint(kin[0], (B,), 0, cfg.NUM_CITY)
    event_desc = jax.random.randint(kin[1], (B, NW), 0, cfg.VOCAB)   # 0 == pad
    user_id = jax.random.randint(kin[2], (B,), 0, cfg.NUM_USER)
    user_topic = jax.random.randint(kin[3], (B, NT), 0, cfg.NUM_TOPIC)
    user_city = jax.random.randint(kin[4], (B,), 0, cfg.NUM_CITY)
    group_id = jax.random.randint(kin[5], (B,), 0, cfg.NUM_GROUP)
    group_topic = jax.random.randint(kin[6], (B, NT), 0, cfg.NUM_TOPIC)
    group_city = jax.random.randint(kin[7], (B,), 0, cfg.NUM_CITY)
    group_desc = jax.random.randint(kin[8], (B, NW), 0, cfg.VOCAB)
    label = jax.random.bernoulli(kin[9], 0.5, (B,)).astype(jnp.float32)

    fwd = jax.jit(functools.partial(model_forward, params, a_norm, cfg))
    score, loss = fwd(event_city, event_desc, user_id, user_topic, user_city,
                      group_id, group_topic, group_city, group_desc, label)
    jax.block_until_ready((score, loss))

    assert score.shape == (B,) and jnp.all(jnp.isfinite(score))
    assert jnp.all(score >= 0.0) and jnp.all(score <= 1.0)
    assert jnp.isfinite(loss)
    print("KERNEL_OK")
</pallas_src>

<mosaic_0001>
module attributes {stable_mosaic.version = 11 : i64} {
  func.func @_fused_model_kernel(%arg0: memref<4xf32, #tpu.memory_space<smem>>, %arg1: memref<8x16x384xbf16, #tpu.memory_space<vmem>>, %arg2: memref<8x16xf32, #tpu.memory_space<vmem>>, %arg3: memref<384x256xbf16, #tpu.memory_space<vmem>>, %arg4: memref<1x256xf32, #tpu.memory_space<vmem>>, %arg5: memref<1x256xf32, #tpu.memory_space<vmem>>, %arg6: memref<384x128xbf16, #tpu.memory_space<vmem>>, %arg7: memref<1x128xf32, #tpu.memory_space<vmem>>, %arg8: memref<8x8x64xf32, #tpu.memory_space<vmem>>, %arg9: memref<8x8xf32, #tpu.memory_space<vmem>>, %arg10: memref<64x128xf32, #tpu.memory_space<vmem>>, %arg11: memref<1x128xf32, #tpu.memory_space<vmem>>, %arg12: memref<1x128xf32, #tpu.memory_space<vmem>>, %arg13: memref<16x16xf32, #tpu.memory_space<vmem>>, %arg14: memref<16x64xf32, #tpu.memory_space<vmem>>, %arg15: memref<2x64x64xf32, #tpu.memory_space<vmem>>, %arg16: memref<2x1x64xf32, #tpu.memory_space<vmem>>, %arg17: memref<4x16xf32, #tpu.memory_space<vmem>>, %arg18: memref<4x16xf32, #tpu.memory_space<vmem>>, %arg19: memref<4x64xf32, #tpu.memory_space<vmem>>, %arg20: memref<4x64xf32, #tpu.memory_space<vmem>>, %arg21: memref<4x64xf32, #tpu.memory_space<vmem>>, %arg22: memref<192x256xbf16, #tpu.memory_space<vmem>>, %arg23: memref<64x256xbf16, #tpu.memory_space<vmem>>, %arg24: memref<64x256xbf16, #tpu.memory_space<vmem>>, %arg25: memref<1x256xf32, #tpu.memory_space<vmem>>, %arg26: memref<192x256xbf16, #tpu.memory_space<vmem>>, %arg27: memref<64x256xbf16, #tpu.memory_space<vmem>>, %arg28: memref<64x256xbf16, #tpu.memory_space<vmem>>, %arg29: memref<128x256xbf16, #tpu.memory_space<vmem>>, %arg30: memref<1x256xf32, #tpu.memory_space<vmem>>, %arg31: memref<256x384xbf16, #tpu.memory_space<vmem>>, %arg32: memref<256x384xbf16, #tpu.memory_space<vmem>>, %arg33: memref<64x384xbf16, #tpu.memory_space<vmem>>, %arg34: memref<128x384xbf16, #tpu.memory_space<vmem>>, %arg35: memref<1x384xf32, #tpu.memory_space<vmem>>, %arg36: memref<1x384xf32, #tpu.memory_space<vmem>>, %arg37: memref<4x1xf32, #tpu.memory_space<vmem>>) attributes {dimension_semantics = [], scalar_prefetch = 0 : i64, scratch_operands = 0 : i64, tpu.core_type = #tpu.core_type<tc>} {
    %c0 = arith.constant 0 : index
    %0 = memref.load %arg0[%c0] : memref<4xf32, #tpu.memory_space<smem>>
    %c1 = arith.constant 1 : index
    %1 = memref.load %arg0[%c1] : memref<4xf32, #tpu.memory_space<smem>>
    %c2 = arith.constant 2 : index
    %2 = memref.load %arg0[%c2] : memref<4xf32, #tpu.memory_space<smem>>
    %c0_0 = arith.constant 0 : index
    %c0_1 = arith.constant 0 : index
    %c0_2 = arith.constant 0 : index
    %3 = vector.load %arg1[%c0_0, %c0_1, %c0_2] : memref<8x16x384xbf16, #tpu.memory_space<vmem>>, vector<8x16x384xbf16>
    %c0_3 = arith.constant 0 : index
    %c0_4 = arith.constant 0 : index
    %4 = vector.load %arg2[%c0_3, %c0_4] : memref<8x16xf32, #tpu.memory_space<vmem>>, vector<8x16xf32>
    %c0_5 = arith.constant 0 : index
    %c0_6 = arith.constant 0 : index
    %5 = vector.load %arg3[%c0_5, %c0_6] : memref<384x256xbf16, #tpu.memory_space<vmem>>, vector<384x256xbf16>
    %c0_7 = arith.constant 0 : index
    %c0_8 = arith.constant 0 : index
    %6 = vector.load %arg4[%c0_7, %c0_8] : memref<1x256xf32, #tpu.memory_space<vmem>>, vector<1x256xf32>
    %c0_9 = arith.constant 0 : index
    %c0_10 = arith.constant 0 : index
    %7 = vector.load %arg5[%c0_9, %c0_10] : memref<1x256xf32, #tpu.memory_space<vmem>>, vector<1x256xf32>
    %8 = arith.extf %3 : vector<8x16x384xbf16> to vector<8x16x384xf32>
    %9 = vector.shape_cast %3 : vector<8x16x384xbf16> to vector<128x384xbf16>
    %cst = arith.constant dense<0.000000e+00> : vector<128x256xf32>
    %10 = tpu.matmul %9, %5, %cst {dimension_numbers = #tpu.dot_dimension_numbers<[1], [0], [0], [1], [0, 0, 1, 1], [], []>} : vector<128x384xbf16>, vector<384x256xbf16>, vector<128x256xf32> -> vector<128x256xf32>
    %11 = vector.broadcast %6 : vector<1x256xf32> to vector<128x256xf32>
    %12 = arith.addf %10, %11 : vector<128x256xf32>
    %13 = math.tanh %12 : vector<128x256xf32>
    %14 = vector.shape_cast %13 : vector<128x256xf32> to vector<8x16x256xf32>
    %15 = vector.shape_cast %7 : vector<1x256xf32> to vector<1x1x256xf32>
    %16 = vector.broadcast %15 : vector<1x1x256xf32> to vector<8x16x256xf32>
    %17 = arith.mulf %14, %16 : vector<8x16x256xf32>
    %cst_11 = arith.constant dense<0.000000e+00> : vector<8x16xf32>
    %18 = vector.multi_reduction <add>, %17, %cst_11 [2] : vector<8x16x256xf32> to vector<8x16xf32>
    %19 = vector.broadcast %0 : f32 to vector<8x16xf32>
    %20 = arith.addf %18, %19 : vector<8x16xf32>
    %cst_12 = arith.constant dense<0xFF800000> : vector<8xf32>
    %21 = vector.multi_reduction <maximumf>, %20, %cst_12 [1] : vector<8x16xf32> to vector<8xf32>
    %22 = vector.shape_cast %21 : vector<8xf32> to vector<8x1xf32>
    %23 = vector.broadcast %22 : vector<8x1xf32> to vector<8x16xf32>
    %24 = arith.subf %20, %23 : vector<8x16xf32>
    %25 = math.exp %24 : vector<8x16xf32>
    %26 = arith.mulf %25, %4 : vector<8x16xf32>
    %cst_13 = arith.constant dense<0.000000e+00> : vector<8xf32>
    %27 = vector.multi_reduction <add>, %26, %cst_13 [1] : vector<8x16xf32> to vector<8xf32>
    %28 = vector.shape_cast %27 : vector<8xf32> to vector<8x1xf32>
    %cst_14 = arith.constant 0.000000e+00 : f32
    %29 = vector.broadcast %cst_14 : f32 to vector<8x1xf32>
    %30 = arith.subf %29, %22 : vector<8x1xf32>
    %31 = math.exp %30 : vector<8x1xf32>
    %cst_15 = arith.constant 9.99999993E-9 : f32
    %32 = vector.broadcast %cst_15 : f32 to vector<8x1xf32>
    %33 = arith.mulf %32, %31 : vector<8x1xf32>
    %34 = arith.addf %28, %33 : vector<8x1xf32>
    %cst_16 = arith.constant 1.000000e-30 : f32
    %35 = vector.broadcast %cst_16 : f32 to vector<8x1xf32>
    %36 = arith.maximumf %34, %35 : vector<8x1xf32>
    %37 = tpu.reciprocal %36 : vector<8x1xf32> -> vector<8x1xf32>
    %38 = vector.broadcast %37 : vector<8x1xf32> to vector<8x16xf32>
    %39 = arith.mulf %26, %38 : vector<8x16xf32>
    %40 = vector.shape_cast %39 : vector<8x16xf32> to vector<8x16x1xf32>
    %41 = vector.broadcast %40 : vector<8x16x1xf32> to vector<8x16x384xf32>
    %42 = arith.mulf %8, %41 : vector<8x16x384xf32>
    %cst_17 = arith.constant dense<0.000000e+00> : vector<8x384xf32>
    %43 = vector.multi_reduction <add>, %42, %cst_17 [1] : vector<8x16x384xf32> to vector<8x384xf32>
    %44 = arith.truncf %43 : vector<8x384xf32> to vector<8x384xbf16>
    %c0_18 = arith.constant 0 : index
    %c0_19 = arith.constant 0 : index
    %45 = vector.load %arg6[%c0_18, %c0_19] : memref<384x128xbf16, #tpu.memory_space<vmem>>, vector<384x128xbf16>
    %cst_20 = arith.constant dense<0.000000e+00> : vector<8x128xf32>
    %46 = tpu.matmul %44, %45, %cst_20 {dimension_numbers = #tpu.dot_dimension_numbers<[1], [0], [0], [1], [0, 0, 1, 1], [], []>} : vector<8x384xbf16>, vector<384x128xbf16>, vector<8x128xf32> -> vector<8x128xf32>
    %c0_21 = arith.constant 0 : index
    %c0_22 = arith.constant 0 : index
    %47 = vector.load %arg7[%c0_21, %c0_22] : memref<1x128xf32, #tpu.memory_space<vmem>>, vector<1x128xf32>
    %48 = vector.broadcast %47 : vector<1x128xf32> to vector<8x128xf32>
    %49 = arith.addf %46, %48 : vector<8x128xf32>
    %c0_23 = arith.constant 0 : index
    %c0_24 = arith.constant 0 : index
    %c0_25 = arith.constant 0 : index
    %50 = vector.load %arg8[%c0_23, %c0_24, %c0_25] : memref<8x8x64xf32, #tpu.memory_space<vmem>>, vector<8x8x64xf32>
    %c0_26 = arith.constant 0 : index
    %c0_27 = arith.constant 0 : index
    %51 = vector.load %arg9[%c0_26, %c0_27] : memref<8x8xf32, #tpu.memory_space<vmem>>, vector<8x8xf32>
    %c0_28 = arith.constant 0 : index
    %c0_29 = arith.constant 0 : index
    %52 = vector.load %arg10[%c0_28, %c0_29] : memref<64x128xf32, #tpu.memory_space<vmem>>, vector<64x128xf32>
    %c0_30 = arith.constant 0 : index
    %c0_31 = arith.constant 0 : index
    %53 = vector.load %arg11[%c0_30, %c0_31] : memref<1x128xf32, #tpu.memory_space<vmem>>, vector<1x128xf32>
    %c0_32 = arith.constant 0 : index
    %c0_33 = arith.constant 0 : index
    %54 = vector.load %arg12[%c0_32, %c0_33] : memref<1x128xf32, #tpu.memory_space<vmem>>, vector<1x128xf32>
    %55 = vector.shape_cast %50 : vector<8x8x64xf32> to vector<64x64xf32>
    %cst_34 = arith.constant dense<0.000000e+00> : vector<64x128xf32>
    %56 = tpu.matmul %55, %52, %cst_34 {dimension_numbers = #tpu.dot_dimension_numbers<[1], [0], [0], [1], [0, 0, 1, 1], [], []>} : vector<64x64xf32>, vector<64x128xf32>, vector<64x128xf32> -> vector<64x128xf32>
    %57 = vector.broadcast %53 : vector<1x128xf32> to vector<64x128xf32>
    %58 = arith.addf %56, %57 : vector<64x128xf32>
    %59 = math.tanh %58 : vector<64x128xf32>
    %60 = vector.shape_cast %59 : vector<64x128xf32> to vector<8x8x128xf32>
    %61 = vector.shape_cast %54 : vector<1x128xf32> to vector<1x1x128xf32>
    %62 = vector.broadcast %61 : vector<1x1x128xf32> to vector<8x8x128xf32>
    %63 = arith.mulf %60, %62 : vector<8x8x128xf32>
    %cst_35 = arith.constant dense<0.000000e+00> : vector<8x8xf32>
    %64 = vector.multi_reduction <add>, %63, %cst_35 [2] : vector<8x8x128xf32> to vector<8x8xf32>
    %65 = vector.broadcast %1 : f32 to vector<8x8xf32>
    %66 = arith.addf %64, %65 : vector<8x8xf32>
    %cst_36 = arith.constant dense<0xFF800000> : vector<8xf32>
    %67 = vector.multi_reduction <maximumf>, %66, %cst_36 [1] : vector<8x8xf32> to vector<8xf32>
    %68 = vector.shape_cast %67 : vector<8xf32> to vector<8x1xf32>
    %69 = vector.broadcast %68 : vector<8x1xf32> to vector<8x8xf32>
    %70 = arith.subf %66, %69 : vector<8x8xf32>
    %71 = math.exp %70 : vector<8x8xf32>
    %72 = arith.mulf %71, %51 : vector<8x8xf32>
    %cst_37 = arith.constant dense<0.000000e+00> : vector<8xf32>
    %73 = vector.multi_reduction <add>, %72, %cst_37 [1] : vector<8x8xf32> to vector<8xf32>
    %74 = vector.shape_cast %73 : vector<8xf32> to vector<8x1xf32>
    %cst_38 = arith.constant 0.000000e+00 : f32
    %75 = vector.broadcast %cst_38 : f32 to vector<8x1xf32>
    %76 = arith.subf %75, %68 : vector<8x1xf32>
    %77 = math.exp %76 : vector<8x1xf32>
    %cst_39 = arith.constant 9.99999993E-9 : f32
    %78 = vector.broadcast %cst_39 : f32 to vector<8x1xf32>
    %79 = arith.mulf %78, %77 : vector<8x1xf32>
    %80 = arith.addf %74, %79 : vector<8x1xf32>
    %cst_40 = arith.constant 1.000000e-30 : f32
    %81 = vector.broadcast %cst_40 : f32 to vector<8x1xf32>
    %82 = arith.maximumf %80, %81 : vector<8x1xf32>
    %83 = tpu.reciprocal %82 : vector<8x1xf32> -> vector<8x1xf32>
    %84 = vector.broadcast %83 : vector<8x1xf32> to vector<8x8xf32>
    %85 = arith.mulf %72, %84 : vector<8x8xf32>
    %86 = vector.shape_cast %85 : vector<8x8xf32> to vector<8x8x1xf32>
    %87 = vector.broadcast %86 : vector<8x8x1xf32> to vector<8x8x64xf32>
    %88 = arith.mulf %50, %87 : vector<8x8x64xf32>
    %cst_41 = arith.constant dense<0.000000e+00> : vector<8x64xf32>
    %89 = vector.multi_reduction <add>, %88, %cst_41 [1] : vector<8x8x64xf32> to vector<8x64xf32>
    %c0_42 = arith.constant 0 : index
    %c0_43 = arith.constant 0 : index
    %90 = vector.load %arg13[%c0_42, %c0_43] : memref<16x16xf32, #tpu.memory_space<vmem>>, vector<16x16xf32>
    %c0_44 = arith.constant 0 : index
    %c0_45 = arith.constant 0 : index
    %91 = vector.load %arg14[%c0_44, %c0_45] : memref<16x64xf32, #tpu.memory_space<vmem>>, vector<16x64xf32>
    %c0_46 = arith.constant 0 : index
    %c0_47 = arith.constant 0 : index
    %c0_48 = arith.constant 0 : index
    %92 = vector.load %arg15[%c0_46, %c0_47, %c0_48] : memref<2x64x64xf32, #tpu.memory_space<vmem>>, vector<1x64x64xf32>
    %93 = vector.shape_cast %92 : vector<1x64x64xf32> to vector<64x64xf32>
    %cst_49 = arith.constant dense<0.000000e+00> : vector<16x64xf32>
    %94 = tpu.matmul %91, %93, %cst_49 {dimension_numbers = #tpu.dot_dimension_numbers<[1], [0], [0], [1], [0, 0, 1, 1], [], []>} : vector<16x64xf32>, vector<64x64xf32>, vector<16x64xf32> -> vector<16x64xf32>
    %cst_50 = arith.constant dense<0.000000e+00> : vector<16x64xf32>
    %95 = tpu.matmul %90, %94, %cst_50 {dimension_numbers = #tpu.dot_dimension_numbers<[1], [0], [0], [1], [0, 0, 1, 1], [], []>} : vector<16x16xf32>, vector<16x64xf32>, vector<16x64xf32> -> vector<16x64xf32>
    %c0_51 = arith.constant 0 : index
    %c0_52 = arith.constant 0 : index
    %c0_53 = arith.constant 0 : index
    %96 = vector.load %arg16[%c0_51, %c0_52, %c0_53] : memref<2x1x64xf32, #tpu.memory_space<vmem>>, vector<1x1x64xf32>
    %97 = vector.shape_cast %96 : vector<1x1x64xf32> to vector<1x64xf32>
    %98 = vector.broadcast %97 : vector<1x64xf32> to vector<16x64xf32>
    %99 = arith.addf %95, %98 : vector<16x64xf32>
    %100 = math.tanh %99 : vector<16x64xf32>
    %c1_54 = arith.constant 1 : index
    %c0_55 = arith.constant 0 : index
    %c0_56 = arith.constant 0 : index
    %101 = vector.load %arg15[%c1_54, %c0_55, %c0_56] : memref<2x64x64xf32, #tpu.memory_space<vmem>>, vector<1x64x64xf32>
    %102 = vector.shape_cast %101 : vector<1x64x64xf32> to vector<64x64xf32>
    %cst_57 = arith.constant dense<0.000000e+00> : vector<16x64xf32>
    %103 = tpu.matmul %100, %102, %cst_57 {dimension_numbers = #tpu.dot_dimension_numbers<[1], [0], [0], [1], [0, 0, 1, 1], [], []>} : vector<16x64xf32>, vector<64x64xf32>, vector<16x64xf32> -> vector<16x64xf32>
    %cst_58 = arith.constant dense<0.000000e+00> : vector<16x64xf32>
    %104 = tpu.matmul %90, %103, %cst_58 {dimension_numbers = #tpu.dot_dimension_numbers<[1], [0], [0], [1], [0, 0, 1, 1], [], []>} : vector<16x16xf32>, vector<16x64xf32>, vector<16x64xf32> -> vector<16x64xf32>
    %c1_59 = arith.constant 1 : index
    %c0_60 = arith.constant 0 : index
    %c0_61 = arith.constant 0 : index
    %105 = vector.load %arg16[%c1_59, %c0_60, %c0_61] : memref<2x1x64xf32, #tpu.memory_space<vmem>>, vector<1x1x64xf32>
    %106 = vector.shape_cast %105 : vector<1x1x64xf32> to vector<1x64xf32>
    %107 = vector.broadcast %106 : vector<1x64xf32> to vector<16x64xf32>
    %108 = arith.addf %104, %107 : vector<16x64xf32>
    %109 = tpu.concatenate %91, %100, %108 in 1 : vector<16x64xf32>, vector<16x64xf32>, vector<16x64xf32> -> vector<16x192xf32>
    %c0_62 = arith.constant 0 : index
    %c0_63 = arith.constant 0 : index
    %110 = vector.load %arg17[%c0_62, %c0_63] : memref<4x16xf32, #tpu.memory_space<vmem>>, vector<4x16xf32>
    %cst_64 = arith.constant dense<0.000000e+00> : vector<4x192xf32>
    %111 = tpu.matmul %110, %109, %cst_64 {dimension_numbers = #tpu.dot_dimension_numbers<[1], [0], [0], [1], [0, 0, 1, 1], [], []>} : vector<4x16xf32>, vector<16x192xf32>, vector<4x192xf32> -> vector<4x192xf32>
    %c0_65 = arith.constant 0 : index
    %c0_66 = arith.constant 0 : index
    %112 = vector.load %arg18[%c0_65, %c0_66] : memref<4x16xf32, #tpu.memory_space<vmem>>, vector<4x16xf32>
    %cst_67 = arith.constant dense<0.000000e+00> : vector<4x192xf32>
    %113 = tpu.matmul %112, %109, %cst_67 {dimension_numbers = #tpu.dot_dimension_numbers<[1], [0], [0], [1], [0, 0, 1, 1], [], []>} : vector<4x16xf32>, vector<16x192xf32>, vector<4x192xf32> -> vector<4x192xf32>
    %114 = vector.extract_strided_slice %89 {offsets = [0, 0], sizes = [4, 64], strides = [1, 1]} : vector<8x64xf32> to vector<4x64xf32>
    %115 = vector.extract_strided_slice %89 {offsets = [4, 0], sizes = [4, 64], strides = [1, 1]} : vector<8x64xf32> to vector<4x64xf32>
    %116 = vector.extract_strided_slice %49 {offsets = [0, 0], sizes = [4, 128], strides = [1, 1]} : vector<8x128xf32> to vector<4x128xf32>
    %117 = vector.extract_strided_slice %49 {offsets = [4, 0], sizes = [4, 128], strides = [1, 1]} : vector<8x128xf32> to vector<4x128xf32>
    %118 = arith.truncf %111 : vector<4x192xf32> to vector<4x192xbf16>
    %c0_68 = arith.constant 0 : index
    %c0_69 = arith.constant 0 : index
    %119 = vector.load %arg22[%c0_68, %c0_69] : memref<192x256xbf16, #tpu.memory_space<vmem>>, vector<192x256xbf16>
    %cst_70 = arith.constant dense<0.000000e+00> : vector<4x256xf32>
    %120 = tpu.matmul %118, %119, %cst_70 {dimension_numbers = #tpu.dot_dimension_numbers<[1], [0], [0], [1], [0, 0, 1, 1], [], []>} : vector<4x192xbf16>, vector<192x256xbf16>, vector<4x256xf32> -> vector<4x256xf32>
    %121 = arith.truncf %114 : vector<4x64xf32> to vector<4x64xbf16>
    %c0_71 = arith.constant 0 : index
    %c0_72 = arith.constant 0 : index
    %122 = vector.load %arg23[%c0_71, %c0_72] : memref<64x256xbf16, #tpu.memory_space<vmem>>, vector<64x256xbf16>
    %cst_73 = arith.constant dense<0.000000e+00> : vector<4x256xf32>
    %123 = tpu.matmul %121, %122, %cst_73 {dimension_numbers = #tpu.dot_dimension_numbers<[1], [0], [0], [1], [0, 0, 1, 1], [], []>} : vector<4x64xbf16>, vector<64x256xbf16>, vector<4x256xf32> -> vector<4x256xf32>
    %124 = arith.addf %120, %123 : vector<4x256xf32>
    %c0_74 = arith.constant 0 : index
    %c0_75 = arith.constant 0 : index
    %125 = vector.load %arg20[%c0_74, %c0_75] : memref<4x64xf32, #tpu.memory_space<vmem>>, vector<4x64xf32>
    %126 = arith.truncf %125 : vector<4x64xf32> to vector<4x64xbf16>
    %c0_76 = arith.constant 0 : index
    %c0_77 = arith.constant 0 : index
    %127 = vector.load %arg24[%c0_76, %c0_77] : memref<64x256xbf16, #tpu.memory_space<vmem>>, vector<64x256xbf16>
    %cst_78 = arith.constant dense<0.000000e+00> : vector<4x256xf32>
    %128 = tpu.matmul %126, %127, %cst_78 {dimension_numbers = #tpu.dot_dimension_numbers<[1], [0], [0], [1], [0, 0, 1, 1], [], []>} : vector<4x64xbf16>, vector<64x256xbf16>, vector<4x256xf32> -> vector<4x256xf32>
    %129 = arith.addf %124, %128 : vector<4x256xf32>
    %c0_79 = arith.constant 0 : index
    %c0_80 = arith.constant 0 : index
    %130 = vector.load %arg25[%c0_79, %c0_80] : memref<1x256xf32, #tpu.memory_space<vmem>>, vector<1x256xf32>
    %131 = vector.broadcast %130 : vector<1x256xf32> to vector<4x256xf32>
    %132 = arith.addf %129, %131 : vector<4x256xf32>
    %cst_81 = arith.constant 0.000000e+00 : f32
    %133 = vector.broadcast %cst_81 : f32 to vector<4x256xf32>
    %134 = arith.maximumf %132, %133 : vector<4x256xf32>
    %135 = arith.truncf %113 : vector<4x192xf32> to vector<4x192xbf16>
    %c0_82 = arith.constant 0 : index
    %c0_83 = arith.constant 0 : index
    %136 = vector.load %arg26[%c0_82, %c0_83] : memref<192x256xbf16, #tpu.memory_space<vmem>>, vector<192x256xbf16>
    %cst_84 = arith.constant dense<0.000000e+00> : vector<4x256xf32>
    %137 = tpu.matmul %135, %136, %cst_84 {dimension_numbers = #tpu.dot_dimension_numbers<[1], [0], [0], [1], [0, 0, 1, 1], [], []>} : vector<4x192xbf16>, vector<192x256xbf16>, vector<4x256xf32> -> vector<4x256xf32>
    %138 = arith.truncf %115 : vector<4x64xf32> to vector<4x64xbf16>
    %c0_85 = arith.constant 0 : index
    %c0_86 = arith.constant 0 : index
    %139 = vector.load %arg27[%c0_85, %c0_86] : memref<64x256xbf16, #tpu.memory_space<vmem>>, vector<64x256xbf16>
    %cst_87 = arith.constant dense<0.000000e+00> : vector<4x256xf32>
    %140 = tpu.matmul %138, %139, %cst_87 {dimension_numbers = #tpu.dot_dimension_numbers<[1], [0], [0], [1], [0, 0, 1, 1], [], []>} : vector<4x64xbf16>, vector<64x256xbf16>, vector<4x256xf32> -> vector<4x256xf32>
    %141 = arith.addf %137, %140 : vector<4x256xf32>
    %c0_88 = arith.constant 0 : index
    %c0_89 = arith.constant 0 : index
    %142 = vector.load %arg21[%c0_88, %c0_89] : memref<4x64xf32, #tpu.memory_space<vmem>>, vector<4x64xf32>
    %143 = arith.truncf %142 : vector<4x64xf32> to vector<4x64xbf16>
    %c0_90 = arith.constant 0 : index
    %c0_91 = arith.constant 0 : index
    %144 = vector.load %arg28[%c0_90, %c0_91] : memref<64x256xbf16, #tpu.memory_space<vmem>>, vector<64x256xbf16>
    %cst_92 = arith.constant dense<0.000000e+00> : vector<4x256xf32>
    %145 = tpu.matmul %143, %144, %cst_92 {dimension_numbers = #tpu.dot_dimension_numbers<[1], [0], [0], [1], [0, 0, 1, 1], [], []>} : vector<4x64xbf16>, vector<64x256xbf16>, vector<4x256xf32> -> vector<4x256xf32>
    %146 = arith.addf %141, %145 : vector<4x256xf32>
    %147 = arith.truncf %117 : vector<4x128xf32> to vector<4x128xbf16>
    %c0_93 = arith.constant 0 : index
    %c0_94 = arith.constant 0 : index
    %148 = vector.load %arg29[%c0_93, %c0_94] : memref<128x256xbf16, #tpu.memory_space<vmem>>, vector<128x256xbf16>
    %cst_95 = arith.constant dense<0.000000e+00> : vector<4x256xf32>
    %149 = tpu.matmul %147, %148, %cst_95 {dimension_numbers = #tpu.dot_dimension_numbers<[1], [0], [0], [1], [0, 0, 1, 1], [], []>} : vector<4x128xbf16>, vector<128x256xbf16>, vector<4x256xf32> -> vector<4x256xf32>
    %150 = arith.addf %146, %149 : vector<4x256xf32>
    %c0_96 = arith.constant 0 : index
    %c0_97 = arith.constant 0 : index
    %151 = vector.load %arg30[%c0_96, %c0_97] : memref<1x256xf32, #tpu.memory_space<vmem>>, vector<1x256xf32>
    %152 = vector.broadcast %151 : vector<1x256xf32> to vector<4x256xf32>
    %153 = arith.addf %150, %152 : vector<4x256xf32>
    %cst_98 = arith.constant 0.000000e+00 : f32
    %154 = vector.broadcast %cst_98 : f32 to vector<4x256xf32>
    %155 = arith.maximumf %153, %154 : vector<4x256xf32>
    %156 = arith.truncf %134 : vector<4x256xf32> to vector<4x256xbf16>
    %c0_99 = arith.constant 0 : index
    %c0_100 = arith.constant 0 : index
    %157 = vector.load %arg31[%c0_99, %c0_100] : memref<256x384xbf16, #tpu.memory_space<vmem>>, vector<256x384xbf16>
    %cst_101 = arith.constant dense<0.000000e+00> : vector<4x384xf32>
    %158 = tpu.matmul %156, %157, %cst_101 {dimension_numbers = #tpu.dot_dimension_numbers<[1], [0], [0], [1], [0, 0, 1, 1], [], []>} : vector<4x256xbf16>, vector<256x384xbf16>, vector<4x384xf32> -> vector<4x384xf32>
    %159 = arith.truncf %155 : vector<4x256xf32> to vector<4x256xbf16>
    %c0_102 = arith.constant 0 : index
    %c0_103 = arith.constant 0 : index
    %160 = vector.load %arg32[%c0_102, %c0_103] : memref<256x384xbf16, #tpu.memory_space<vmem>>, vector<256x384xbf16>
    %cst_104 = arith.constant dense<0.000000e+00> : vector<4x384xf32>
    %161 = tpu.matmul %159, %160, %cst_104 {dimension_numbers = #tpu.dot_dimension_numbers<[1], [0], [0], [1], [0, 0, 1, 1], [], []>} : vector<4x256xbf16>, vector<256x384xbf16>, vector<4x384xf32> -> vector<4x384xf32>
    %162 = arith.addf %158, %161 : vector<4x384xf32>
    %c0_105 = arith.constant 0 : index
    %c0_106 = arith.constant 0 : index
    %163 = vector.load %arg19[%c0_105, %c0_106] : memref<4x64xf32, #tpu.memory_space<vmem>>, vector<4x64xf32>
    %164 = arith.truncf %163 : vector<4x64xf32> to vector<4x64xbf16>
    %c0_107 = arith.constant 0 : index
    %c0_108 = arith.constant 0 : index
    %165 = vector.load %arg33[%c0_107, %c0_108] : memref<64x384xbf16, #tpu.memory_space<vmem>>, vector<64x384xbf16>
    %cst_109 = arith.constant dense<0.000000e+00> : vector<4x384xf32>
    %166 = tpu.matmul %164, %165, %cst_109 {dimension_numbers = #tpu.dot_dimension_numbers<[1], [0], [0], [1], [0, 0, 1, 1], [], []>} : vector<4x64xbf16>, vector<64x384xbf16>, vector<4x384xf32> -> vector<4x384xf32>
    %167 = arith.addf %162, %166 : vector<4x384xf32>
    %168 = arith.truncf %116 : vector<4x128xf32> to vector<4x128xbf16>
    %c0_110 = arith.constant 0 : index
    %c0_111 = arith.constant 0 : index
    %169 = vector.load %arg34[%c0_110, %c0_111] : memref<128x384xbf16, #tpu.memory_space<vmem>>, vector<128x384xbf16>
    %cst_112 = arith.constant dense<0.000000e+00> : vector<4x384xf32>
    %170 = tpu.matmul %168, %169, %cst_112 {dimension_numbers = #tpu.dot_dimension_numbers<[1], [0], [0], [1], [0, 0, 1, 1], [], []>} : vector<4x128xbf16>, vector<128x384xbf16>, vector<4x384xf32> -> vector<4x384xf32>
    %171 = arith.addf %167, %170 : vector<4x384xf32>
    %c0_113 = arith.constant 0 : index
    %c0_114 = arith.constant 0 : index
    %172 = vector.load %arg35[%c0_113, %c0_114] : memref<1x384xf32, #tpu.memory_space<vmem>>, vector<1x384xf32>
    %173 = vector.broadcast %172 : vector<1x384xf32> to vector<4x384xf32>
    %174 = arith.addf %171, %173 : vector<4x384xf32>
    %cst_115 = arith.constant 0.000000e+00 : f32
    %175 = vector.broadcast %cst_115 : f32 to vector<4x384xf32>
    %176 = arith.maximumf %174, %175 : vector<4x384xf32>
    %c0_116 = arith.constant 0 : index
    %c0_117 = arith.constant 0 : index
    %177 = vector.load %arg36[%c0_116, %c0_117] : memref<1x384xf32, #tpu.memory_space<vmem>>, vector<1x384xf32>
    %178 = vector.broadcast %177 : vector<1x384xf32> to vector<4x384xf32>
    %179 = arith.mulf %176, %178 : vector<4x384xf32>
    %cst_118 = arith.constant dense<0.000000e+00> : vector<4xf32>
    %180 = vector.multi_reduction <add>, %179, %cst_118 [1] : vector<4x384xf32> to vector<4xf32>
    %181 = vector.shape_cast %180 : vector<4xf32> to vector<4x1xf32>
    %182 = vector.broadcast %2 : f32 to vector<4x1xf32>
    %183 = arith.addf %181, %182 : vector<4x1xf32>
    %184 = arith.negf %183 : vector<4x1xf32>
    %185 = math.exp %184 : vector<4x1xf32>
    %cst_119 = arith.constant 1.000000e+00 : f32
    %186 = vector.broadcast %cst_119 : f32 to vector<4x1xf32>
    %187 = arith.addf %186, %185 : vector<4x1xf32>
    %188 = arith.divf %186, %187 : vector<4x1xf32>
    %c0_120 = arith.constant 0 : index
    %c0_121 = arith.constant 0 : index
    %189 = vector.load %arg37[%c0_120, %c0_121] : memref<4x1xf32, #tpu.memory_space<vmem>>, vector<4x1xf32>
    tpu.vector_store %arg37[%c0_120, %c0_121], %188 {strides = array<i32>} : memref<4x1xf32, #tpu.memory_space<vmem>>, vector<4x1xf32>,
    return
  }
}

</mosaic_0001>

<llo_original>
// kernel: model_forward.1
$region0: #{model_forward.1}
  #allocation0 [shape = 'u32[]', space=smem, size = 0x4, offset = 0x4, fixed_abs, tag = 'smem constant byte address 0x4 - core index']
  #allocation1 [shape = 'u32[144,128]{1,0:T(1,128)}', space=vmem, size = 0x12000, scoped, tag = 'internal scratch']
  %s0 = inlined_call_operand.smem [shape: u32[38], index: -1, kind: input, shape index: {}]
  %s1 = sld [smem:[%s0]]
  %s2 = scalar_lea.smem %s0, 1
  %s3 = sld [smem:[%s2]]
  %s4 = scalar_lea.smem %s0, 2
  %s5 = sld [smem:[%s4]]
  %s6 = scalar_lea.smem %s0, 3
  %s7 = sld [smem:[%s6]]
  %s8 = scalar_lea.smem %s0, 4
  %s9 = sld [smem:[%s8]]
  %s10 = scalar_lea.smem %s0, 5
  %s11 = sld [smem:[%s10]]
  %s12 = scalar_lea.smem %s0, 6
  %s13 = sld [smem:[%s12]]
  %s14 = scalar_lea.smem %s0, 7
  %s15 = sld [smem:[%s14]]
  %s16 = scalar_lea.smem %s0, 8
  %s17 = sld [smem:[%s16]]
  %s18 = scalar_lea.smem %s0, 9
  %s19 = sld [smem:[%s18]]
  %s20 = scalar_lea.smem %s0, 10
  %s21 = sld [smem:[%s20]]
  %s22 = scalar_lea.smem %s0, 11
  %s23 = sld [smem:[%s22]]
  %s24 = scalar_lea.smem %s0, 12
  %s25 = sld [smem:[%s24]]
  %s26 = scalar_lea.smem %s0, 13
  %s27 = sld [smem:[%s26]]
  %s28 = scalar_lea.smem %s0, 14
  %s29 = sld [smem:[%s28]]
  %s30 = scalar_lea.smem %s0, 15
  %s31 = sld [smem:[%s30]]
  %s32 = scalar_lea.smem %s0, 16
  %s33 = sld [smem:[%s32]]
  %s34 = scalar_lea.smem %s0, 17
  %s35 = sld [smem:[%s34]]
  %s36 = scalar_lea.smem %s0, 18
  %s37 = sld [smem:[%s36]]
  %s38 = scalar_lea.smem %s0, 19
  %s39 = sld [smem:[%s38]]
  %s40 = scalar_lea.smem %s0, 20
  %s41 = sld [smem:[%s40]]
  %s42 = scalar_lea.smem %s0, 21
  %s43 = sld [smem:[%s42]]
  %s44 = scalar_lea.smem %s0, 22
  %s45 = sld [smem:[%s44]]
  %s46 = scalar_lea.smem %s0, 23
  %s47 = sld [smem:[%s46]]
  %s48 = scalar_lea.smem %s0, 24
  %s49 = sld [smem:[%s48]]
  %s50 = scalar_lea.smem %s0, 25
  %s51 = sld [smem:[%s50]]
  %s52 = scalar_lea.smem %s0, 26
  %s53 = sld [smem:[%s52]]
  %s54 = scalar_lea.smem %s0, 27
  %s55 = sld [smem:[%s54]]
  %s56 = scalar_lea.smem %s0, 28
  %s57 = sld [smem:[%s56]]
  %s58 = scalar_lea.smem %s0, 29
  %s59 = sld [smem:[%s58]]
  %s60 = scalar_lea.smem %s0, 30
  %s61 = sld [smem:[%s60]]
  %s62 = scalar_lea.smem %s0, 31
  %s63 = sld [smem:[%s62]]
  %s64 = scalar_lea.smem %s0, 32
  %s65 = sld [smem:[%s64]]
  %s66 = scalar_lea.smem %s0, 33
  %s67 = sld [smem:[%s66]]
  %s68 = scalar_lea.smem %s0, 34
  %s69 = sld [smem:[%s68]]
  %s70 = scalar_lea.smem %s0, 35
  %s71 = sld [smem:[%s70]]
  %s72 = scalar_lea.smem %s0, 36
  %s73 = sld [smem:[%s72]]
  %s74 = scalar_lea.smem %s0, 37
  %s75 = sld [smem:[%s74]]
  %s76 = sld [smem:[#allocation0]]
  $region162: #{model_forward.1} parent=0
    _
  %s78 = ssub.s32 1, %s76
  %s79 = scalar_select 0, %s78, %s76
  $region1: #{model_forward.1} parent=0
    #allocation2 [shape = 'u8[512]{0}', space=smem, size = 0x200, scoped, tag = 'input window, operand 0, single buffered']
    #allocation3 [shape = 's32[1]{0}', space=sflag, size = 0x4, scoped, tag = 'scoped memory for model_forward.1']
    %80 = vsyncpa [#allocation3], 0
    // Predicated region
    $region2: #{model_forward.1} parent=1 // pred_check
      _
    $region3: #{model_forward.1} parent=1 // pred_check_branch
      %82 = sbr.rel (0) target = $region5
    $region4: #{model_forward.1} parent=1 // pred_region
      %s84 = ssub.s32 16, 16
      %85 = vsyncadd [#allocation3], %s84
      %s87 = sshll.u32 %s1, 4
      %s88 = int_to_ptr.vmem [resolvable:$true] %s87
      %90 = dma.vmem_to_smem %s88, 16, [#allocation2], [#allocation3]
    $region5: #{model_forward.1} parent=1 // pred_fallthru
      _
    // Predicated region
    $region6: #{model_forward.1} parent=1 // pred_check
      _
    $region7: #{model_forward.1} parent=1 // pred_check_branch
      %92 = sbr.rel (0) target = $region9
    $region8: #{model_forward.1} parent=1 // pred_region
      _
    $region9: #{model_forward.1} parent=1 // pred_fallthru
      _
    // Predicated region
    $region10: #{model_forward.1} parent=1 // pred_check
      _
    $region11: #{model_forward.1} parent=1 // pred_check_branch
      %94 = sbr.rel (0) target = $region13
    $region12: #{model_forward.1} parent=1 // pred_region
      _
    $region13: #{model_forward.1} parent=1 // pred_fallthru
      _
    // Predicated region
    $region14: #{model_forward.1} parent=1 // pred_check
      _
    $region15: #{model_forward.1} parent=1 // pred_check_branch
      %96 = sbr.rel (0) target = $region17
    $region16: #{model_forward.1} parent=1 // pred_region
      _
    $region17: #{model_forward.1} parent=1 // pred_fallthru
      _
    // Predicated region
    $region18: #{model_forward.1} parent=1 // pred_check
      _
    $region19: #{model_forward.1} parent=1 // pred_check_branch
      %98 = sbr.rel (0) target = $region21
    $region20: #{model_forward.1} parent=1 // pred_region
      _
    $region21: #{model_forward.1} parent=1 // pred_fallthru
      _
    // Predicated region
    $region22: #{model_forward.1} parent=1 // pred_check
      _
    $region23: #{model_forward.1} parent=1 // pred_check_branch
      %100 = sbr.rel (0) target = $region25
    $region24: #{model_forward.1} parent=1 // pred_region
      _
    $region25: #{model_forward.1} parent=1 // pred_fallthru
      _
    // Predicated region
    $region26: #{model_forward.1} parent=1 // pred_check
      _
    $region27: #{model_forward.1} parent=1 // pred_check_branch
      %102 = sbr.rel (0) target = $region29
    $region28: #{model_forward.1} parent=1 // pred_region
      _
    $region29: #{model_forward.1} parent=1 // pred_fallthru
      _
    // Predicated region
    $region30: #{model_forward.1} parent=1 // pred_check
      _
    $region31: #{model_forward.1} parent=1 // pred_check_branch
      %104 = sbr.rel (0) target = $region33
    $region32: #{model_forward.1} parent=1 // pred_region
      _
    $region33: #{model_forward.1} parent=1 // pred_fallthru
      _
    // Predicated region
    $region34: #{model_forward.1} parent=1 // pred_check
      _
    $region35: #{model_forward.1} parent=1 // pred_check_branch
      %106 = sbr.rel (0) target = $region37
    $region36: #{model_forward.1} parent=1 // pred_region
      _
    $region37: #{model_forward.1} parent=1 // pred_fallthru
      _
    // Predicated region
    $region38: #{model_forward.1} parent=1 // pred_check
      _
    $region39: #{model_forward.1} parent=1 // pred_check_branch
      %108 = sbr.rel (0) target = $region41
    $region40: #{model_forward.1} parent=1 // pred_region
      _
    $region41: #{model_forward.1} parent=1 // pred_fallthru
      _
    // Predicated region
    $region42: #{model_forward.1} parent=1 // pred_check
      _
    $region43: #{model_forward.1} parent=1 // pred_check_branch
      %110 = sbr.rel (0) target = $region45
    $region44: #{model_forward.1} parent=1 // pred_region
      _
    $region45: #{model_forward.1} parent=1 // pred_fallthru
      _
    // Predicated region
    $region46: #{model_forward.1} parent=1 // pred_check
      _
    $region47: #{model_forward.1} parent=1 // pred_check_branch
      %112 = sbr.rel (0) target = $region49
    $region48: #{model_forward.1} parent=1 // pred_region
      _
    $region49: #{model_forward.1} parent=1 // pred_fallthru
      _
    // Predicated region
    $region50: #{model_forward.1} parent=1 // pred_check
      _
    $region51: #{model_forward.1} parent=1 // pred_check_branch
      %114 = sbr.rel (0) target = $region53
    $region52: #{model_forward.1} parent=1 // pred_region
      _
    $region53: #{model_forward.1} parent=1 // pred_fallthru
      _
    // Predicated region
    $region54: #{model_forward.1} parent=1 // pred_check
      _
    $region55: #{model_forward.1} parent=1 // pred_check_branch
      %116 = sbr.rel (0) target = $region57
    $region56: #{model_forward.1} parent=1 // pred_region
      _
    $region57: #{model_forward.1} parent=1 // pred_fallthru
      _
    // Predicated region
    $region58: #{model_forward.1} parent=1 // pred_check
      _
    $region59: #{model_forward.1} parent=1 // pred_check_branch
      %118 = sbr.rel (0) target = $region61
    $region60: #{model_forward.1} parent=1 // pred_region
      _
    $region61: #{model_forward.1} parent=1 // pred_fallthru
      _
    // Predicated region
    $region62: #{model_forward.1} parent=1 // pred_check
      _
    $region63: #{model_forward.1} parent=1 // pred_check_branch
      %120 = sbr.rel (0) target = $region65
    $region64: #{model_forward.1} parent=1 // pred_region
      _
    $region65: #{model_forward.1} parent=1 // pred_fallthru
      _
    // Predicated region
    $region66: #{model_forward.1} parent=1 // pred_check
      _
    $region67: #{model_forward.1} parent=1 // pred_check_branch
      %122 = sbr.rel (0) target = $region69
    $region68: #{model_forward.1} parent=1 // pred_region
      _
    $region69: #{model_forward.1} parent=1 // pred_fallthru
      _
    // Predicated region
    $region70: #{model_forward.1} parent=1 // pred_check
      _
    $region71: #{model_forward.1} parent=1 // pred_check_branch
      %124 = sbr.rel (0) target = $region73
    $region72: #{model_forward.1} parent=1 // pred_region
      _
    $region73: #{model_forward.1} parent=1 // pred_fallthru
      _
    // Predicated region
    $region74: #{model_forward.1} parent=1 // pred_check
      _
    $region75: #{model_forward.1} parent=1 // pred_check_branch
      %126 = sbr.rel (0) target = $region77
    $region76: #{model_forward.1} parent=1 // pred_region
      _
    $region77: #{model_forward.1} parent=1 // pred_fallthru
      _
    // Predicated region
    $region78: #{model_forward.1} parent=1 // pred_check
      _
    $region79: #{model_forward.1} parent=1 // pred_check_branch
      %128 = sbr.rel (0) target = $region81
    $region80: #{model_forward.1} parent=1 // pred_region
      _
    $region81: #{model_forward.1} parent=1 // pred_fallthru
      _
    // Predicated region
    $region82: #{model_forward.1} parent=1 // pred_check
      _
    $region83: #{model_forward.1} parent=1 // pred_check_branch
      %130 = sbr.rel (0) target = $region85
    $region84: #{model_forward.1} parent=1 // pred_region
      _
    $region85: #{model_forward.1} parent=1 // pred_fallthru
      _
    // Predicated region
    $region86: #{model_forward.1} parent=1 // pred_check
      _
    $region87: #{model_forward.1} parent=1 // pred_check_branch
      %132 = sbr.rel (0) target = $region89
    $region88: #{model_forward.1} parent=1 // pred_region
      _
    $region89: #{model_forward.1} parent=1 // pred_fallthru
      _
    // Predicated region
    $region90: #{model_forward.1} parent=1 // pred_check
      _
    $region91: #{model_forward.1} parent=1 // pred_check_branch
      %134 = sbr.rel (0) target = $region93
    $region92: #{model_forward.1} parent=1 // pred_region
      _
    $region93: #{model_forward.1} parent=1 // pred_fallthru
      _
    // Predicated region
    $region94: #{model_forward.1} parent=1 // pred_check
      _
    $region95: #{model_forward.1} parent=1 // pred_check_branch
      %136 = sbr.rel (0) target = $region97
    $region96: #{model_forward.1} parent=1 // pred_region
      _
    $region97: #{model_forward.1} parent=1 // pred_fallthru
      _
    // Predicated region
    $region98: #{model_forward.1} parent=1 // pred_check
      _
    $region99: #{model_forward.1} parent=1 // pred_check_branch
      %138 = sbr.rel (0) target = $region101
    $region100: #{model_forward.1} parent=1 // pred_region
      _
    $region101: #{model_forward.1} parent=1 // pred_fallthru
      _
    // Predicated region
    $region102: #{model_forward.1} parent=1 // pred_check
      _
    $region103: #{model_forward.1} parent=1 // pred_check_branch
      %140 = sbr.rel (0) target = $region105
    $region104: #{model_forward.1} parent=1 // pred_region
      _
    $region105: #{model_forward.1} parent=1 // pred_fallthru
      _
    // Predicated region
    $region106: #{model_forward.1} parent=1 // pred_check
      _
    $region107: #{model_forward.1} parent=1 // pred_check_branch
      %142 = sbr.rel (0) target = $region109
    $region108: #{model_forward.1} parent=1 // pred_region
      _
    $region109: #{model_forward.1} parent=1 // pred_fallthru
      _
    // Predicated region
    $region110: #{model_forward.1} parent=1 // pred_check
      _
    $region111: #{model_forward.1} parent=1 // pred_check_branch
      %144 = sbr.rel (0) target = $region113
    $region112: #{model_forward.1} parent=1 // pred_region
      _
    $region113: #{model_forward.1} parent=1 // pred_fallthru
      _
    // Predicated region
    $region114: #{model_forward.1} parent=1 // pred_check
      _
    $region115: #{model_forward.1} parent=1 // pred_check_branch
      %146 = sbr.rel (0) target = $region117
    $region116: #{model_forward.1} parent=1 // pred_region
      _
    $region117: #{model_forward.1} parent=1 // pred_fallthru
      _
    // Predicated region
    $region118: #{model_forward.1} parent=1 // pred_check
      _
    $region119: #{model_forward.1} parent=1 // pred_check_branch
      %148 = sbr.rel (0) target = $region121
    $region120: #{model_forward.1} parent=1 // pred_region
      _
    $region121: #{model_forward.1} parent=1 // pred_fallthru
      _
    // Predicated region
    $region122: #{model_forward.1} parent=1 // pred_check
      _
    $region123: #{model_forward.1} parent=1 // pred_check_branch
      %150 = sbr.rel (0) target = $region125
    $region124: #{model_forward.1} parent=1 // pred_region
      _
    $region125: #{model_forward.1} parent=1 // pred_fallthru
      _
    // Predicated region
    $region126: #{model_forward.1} parent=1 // pred_check
      _
    $region127: #{model_forward.1} parent=1 // pred_check_branch
      %152 = sbr.rel (0) target = $region129
    $region128: #{model_forward.1} parent=1 // pred_region
      _
    $region129: #{model_forward.1} parent=1 // pred_fallthru
      _
    // Predicated region
    $region130: #{model_forward.1} parent=1 // pred_check
      _
    $region131: #{model_forward.1} parent=1 // pred_check_branch
      %154 = sbr.rel (0) target = $region133
    $region132: #{model_forward.1} parent=1 // pred_region
      _
    $region133: #{model_forward.1} parent=1 // pred_fallthru
      _
    // Predicated region
    $region134: #{model_forward.1} parent=1 // pred_check
      _
    $region135: #{model_forward.1} parent=1 // pred_check_branch
      %156 = sbr.rel (0) target = $region137
    $region136: #{model_forward.1} parent=1 // pred_region
      _
    $region137: #{model_forward.1} parent=1 // pred_fallthru
      _
    // Predicated region
    $region138: #{model_forward.1} parent=1 // pred_check
      _
    $region139: #{model_forward.1} parent=1 // pred_check_branch
      %158 = sbr.rel (0) target = $region141
    $region140: #{model_forward.1} parent=1 // pred_region
      _
    $region141: #{model_forward.1} parent=1 // pred_fallthru
      _
    // Predicated region
    $region142: #{model_forward.1} parent=1 // pred_check
      _
    $region143: #{model_forward.1} parent=1 // pred_check_branch
      %160 = sbr.rel (0) target = $region145
    $region144: #{model_forward.1} parent=1 // pred_region
      _
    $region145: #{model_forward.1} parent=1 // pred_fallthru
      _
    // Predicated region
    $region146: #{model_forward.1} parent=1 // pred_check
      _
    $region147: #{model_forward.1} parent=1 // pred_check_branch
      %162 = sbr.rel (0) target = $region149
    $region148: #{model_forward.1} parent=1 // pred_region
      _
    $region149: #{model_forward.1} parent=1 // pred_fallthru
      _
    // Predicated region
    $region150: #{model_forward.1} parent=1 // pred_check
      _
    $region151: #{model_forward.1} parent=1 // pred_check_branch
      %164 = sbr.rel (0) target = $region153
    $region152: #{model_forward.1} parent=1 // pred_region
      %165 = dma.done [#allocation3], 16
    $region153: #{model_forward.1} parent=1 // pred_fallthru
      _
    %166 = sfence
    %s168 = sld [smem:[#allocation2]]
    %s169 = sld [smem:[#allocation2 + $0x1]]
    %s170 = sld [smem:[#allocation2 + $0x2]]
    %v171 = vld [vmem:[%s3] sm:$0xff]
    %v172 = vld [vmem:[%s3 + $0x8] sm:$0xf]
    %v173 = vld [vmem:[%s3 + $0xc] sm:$0xff]
    %v174 = vld [vmem:[%s3 + $0x14] sm:$0xf]
    %v175 = vld [vmem:[%s3 + $0x18] sm:$0xff]
    %v176 = vld [vmem:[%s3 + $0x20] sm:$0xf]
    %v177 = vld [vmem:[%s3 + $0x24] sm:$0xff]
    %v178 = vld [vmem:[%s3 + $0x2c] sm:$0xf]
    %v179 = vld [vmem:[%s3 + $0x30] sm:$0xff]
    %v180 = vld [vmem:[%s3 + $0x38] sm:$0xf]
    %v181 = vld [vmem:[%s3 + $0x3c] sm:$0xff]
    %v182 = vld [vmem:[%s3 + $0x44] sm:$0xf]
    %v183 = vld [vmem:[%s3 + $0x48] sm:$0xff]
    %v184 = vld [vmem:[%s3 + $0x50] sm:$0xf]
    %v185 = vld [vmem:[%s3 + $0x54] sm:$0xff]
    %v186 = vld [vmem:[%s3 + $0x5c] sm:$0xf]
    %v187 = vld [vmem:[%s3 + $0x60] sm:$0xff]
    %v188 = vld [vmem:[%s3 + $0x68] sm:$0xf]
    %v189 = vld [vmem:[%s3 + $0x6c] sm:$0xff]
    %v190 = vld [vmem:[%s3 + $0x74] sm:$0xf]
    %v191 = vld [vmem:[%s3 + $0x78] sm:$0xff]
    %v192 = vld [vmem:[%s3 + $0x80] sm:$0xf]
    %v193 = vld [vmem:[%s3 + $0x84] sm:$0xff]
    %v194 = vld [vmem:[%s3 + $0x8c] sm:$0xf]
    %v195 = vld [vmem:[%s3 + $0x90] sm:$0xff]
    %v196 = vld [vmem:[%s3 + $0x98] sm:$0xf]
    %v197 = vld [vmem:[%s3 + $0x9c] sm:$0xff]
    %v198 = vld [vmem:[%s3 + $0xa4] sm:$0xf]
    %v199 = vld [vmem:[%s3 + $0xa8] sm:$0xff]
    %v200 = vld [vmem:[%s3 + $0xb0] sm:$0xf]
    %v201 = vld [vmem:[%s3 + $0xb4] sm:$0xff]
    %v202 = vld [vmem:[%s3 + $0xbc] sm:$0xf]
    %v203 = vld [vmem:[%s5] sm:$0xff]
    %v204 = vld [vmem:[%s7] sm:$0xff]
    %v205 = vld [vmem:[%s7 + $0x8] sm:$0xff]
    %v206 = vld [vmem:[%s7 + $0x10] sm:$0xff]
    %v207 = vld [vmem:[%s7 + $0x18] sm:$0xff]
    %v208 = vld [vmem:[%s7 + $0x20] sm:$0xff]
    %v209 = vld [vmem:[%s7 + $0x28] sm:$0xff]
    %v210 = vld [vmem:[%s7 + $0x30] sm:$0xff]
    %v211 = vld [vmem:[%s7 + $0x38] sm:$0xff]
    %v212 = vld [vmem:[%s7 + $0x40] sm:$0xff]
    %v213 = vld [vmem:[%s7 + $0x48] sm:$0xff]
    %v214 = vld [vmem:[%s7 + $0x50] sm:$0xff]
    %v215 = vld [vmem:[%s7 + $0x58] sm:$0xff]
    %v216 = vld [vmem:[%s7 + $0x60] sm:$0xff]
    %v217 = vld [vmem:[%s7 + $0x68] sm:$0xff]
    %v218 = vld [vmem:[%s7 + $0x70] sm:$0xff]
    %v219 = vld [vmem:[%s7 + $0x78] sm:$0xff]
    %v220 = vld [vmem:[%s7 + $0x80] sm:$0xff]
    %v221 = vld [vmem:[%s7 + $0x88] sm:$0xff]
    %v222 = vld [vmem:[%s7 + $0x90] sm:$0xff]
    %v223 = vld [vmem:[%s7 + $0x98] sm:$0xff]
    %v224 = vld [vmem:[%s7 + $0xa0] sm:$0xff]
    %v225 = vld [vmem:[%s7 + $0xa8] sm:$0xff]
    %v226 = vld [vmem:[%s7 + $0xb0] sm:$0xff]
    %v227 = vld [vmem:[%s7 + $0xb8] sm:$0xff]
    %v228 = vld [vmem:[%s7 + $0xc0] sm:$0xff]
    %v229 = vld [vmem:[%s7 + $0xc8] sm:$0xff]
    %v230 = vld [vmem:[%s7 + $0xd0] sm:$0xff]
    %v231 = vld [vmem:[%s7 + $0xd8] sm:$0xff]
    %v232 = vld [vmem:[%s7 + $0xe0] sm:$0xff]
    %v233 = vld [vmem:[%s7 + $0xe8] sm:$0xff]
    %v234 = vld [vmem:[%s7 + $0xf0] sm:$0xff]
    %v235 = vld [vmem:[%s7 + $0xf8] sm:$0xff]
    %v236 = vld [vmem:[%s7 + $0x100] sm:$0xff]
    %v237 = vld [vmem:[%s7 + $0x108] sm:$0xff]
    %v238 = vld [vmem:[%s7 + $0x110] sm:$0xff]
    %v239 = vld [vmem:[%s7 + $0x118] sm:$0xff]
    %v240 = vld [vmem:[%s7 + $0x120] sm:$0xff]
    %v241 = vld [vmem:[%s7 + $0x128] sm:$0xff]
    %v242 = vld [vmem:[%s7 + $0x130] sm:$0xff]
    %v243 = vld [vmem:[%s7 + $0x138] sm:$0xff]
    %v244 = vld [vmem:[%s7 + $0x140] sm:$0xff]
    %v245 = vld [vmem:[%s7 + $0x148] sm:$0xff]
    %v246 = vld [vmem:[%s7 + $0x150] sm:$0xff]
    %v247 = vld [vmem:[%s7 + $0x158] sm:$0xff]
    %v248 = vld [vmem:[%s7 + $0x160] sm:$0xff]
    %v249 = vld [vmem:[%s7 + $0x168] sm:$0xff]
    %v250 = vld [vmem:[%s7 + $0x170] sm:$0xff]
    %v251 = vld [vmem:[%s7 + $0x178] sm:$0xff]
    %v252 = vld [vmem:[%s9] sm:$0x3]
    %v253 = vld [vmem:[%s11] sm:$0x3]
    %v254 = vunpack.c.l.bf16 %v171
    %v255 = vunpack.c.h.bf16 %v171
    %v256 = vunpack.c.l.bf16 %v172
    %v257 = vunpack.c.l.bf16 %v173
    %v258 = vunpack.c.h.bf16 %v173
    %v259 = vunpack.c.l.bf16 %v174
    %v260 = vunpack.c.l.bf16 %v175
    %v261 = vunpack.c.h.bf16 %v175
    %v262 = vunpack.c.l.bf16 %v176
    %v263 = vunpack.c.l.bf16 %v177
    %v264 = vunpack.c.h.bf16 %v177
    %v265 = vunpack.c.l.bf16 %v178
    %v266 = vunpack.c.l.bf16 %v179
    %v267 = vunpack.c.h.bf16 %v179
    %v268 = vunpack.c.l.bf16 %v180
    %v269 = vunpack.c.l.bf16 %v181
    %v270 = vunpack.c.h.bf16 %v181
    %v271 = vunpack.c.l.bf16 %v182
    %v272 = vunpack.c.l.bf16 %v183
    %v273 = vunpack.c.h.bf16 %v183
    %v274 = vunpack.c.l.bf16 %v184
    %v275 = vunpack.c.l.bf16 %v185
    %v276 = vunpack.c.h.bf16 %v185
    %v277 = vunpack.c.l.bf16 %v186
    %v278 = vunpack.c.l.bf16 %v187
    %v279 = vunpack.c.h.bf16 %v187
    %v280 = vunpack.c.l.bf16 %v188
    %v281 = vunpack.c.l.bf16 %v189
    %v282 = vunpack.c.h.bf16 %v189
    %v283 = vunpack.c.l.bf16 %v190
    %v284 = vunpack.c.l.bf16 %v191
    %v285 = vunpack.c.h.bf16 %v191
    %v286 = vunpack.c.l.bf16 %v192
    %v287 = vunpack.c.l.bf16 %v193
    %v288 = vunpack.c.h.bf16 %v193
    %v289 = vunpack.c.l.bf16 %v194
    %v290 = vunpack.c.l.bf16 %v195
    %v291 = vunpack.c.h.bf16 %v195
    %v292 = vunpack.c.l.bf16 %v196
    %v293 = vunpack.c.l.bf16 %v197
    %v294 = vunpack.c.h.bf16 %v197
    %v295 = vunpack.c.l.bf16 %v198
    %v296 = vunpack.c.l.bf16 %v199
    %v297 = vunpack.c.h.bf16 %v199
    %v298 = vunpack.c.l.bf16 %v200
    %v299 = vunpack.c.l.bf16 %v201
    %v300 = vunpack.c.h.bf16 %v201
    %v301 = vunpack.c.l.bf16 %v202
    %v303 = vlaneseq
    %v304 = vshrl.u32 %v303, 7
    %v305 = vsub.s32 0, %v304
    %v306 = vrot.slane %v252, %v305
    %v307 = vlaneseq
    %v308 = vshrl.u32 %v307, 7
    %v309 = vsub.s32 1, %v308
    %v310 = vrot.slane %v252, %v309
    %v345 = vunpack.c.l.b16 %v171
    %v346 = vunpack.c.h.b16 %v171
    %v347 = vunpack.c.l.b16 %v172
    %v348 = vunpack.c.l.b16 %v173
    %v349 = vunpack.c.h.b16 %v173
    %v350 = vunpack.c.l.b16 %v174
    %v351 = vunpack.c.l.b16 %v175
    %v352 = vunpack.c.h.b16 %v175
    %v353 = vunpack.c.l.b16 %v176
    %v354 = vunpack.c.l.b16 %v177
    %v355 = vunpack.c.h.b16 %v177
    %v356 = vunpack.c.l.b16 %v178
    %v357 = vunpack.c.l.b16 %v179
    %v358 = vunpack.c.h.b16 %v179
    %v359 = vunpack.c.l.b16 %v180
    %v360 = vunpack.c.l.b16 %v181
    %v361 = vunpack.c.h.b16 %v181
    %v362 = vunpack.c.l.b16 %v182
    %v363 = vunpack.c.l.b16 %v183
    %v364 = vunpack.c.h.b16 %v183
    %v365 = vunpack.c.l.b16 %v184
    %v366 = vunpack.c.l.b16 %v185
    %v367 = vunpack.c.h.b16 %v185
    %v368 = vunpack.c.l.b16 %v186
    %v369 = vunpack.c.l.b16 %v187
    %v370 = vunpack.c.h.b16 %v187
    %v371 = vunpack.c.l.b16 %v188
    %v372 = vunpack.c.l.b16 %v189
    %v373 = vunpack.c.h.b16 %v189
    %v374 = vunpack.c.l.b16 %v190
    %v375 = vunpack.c.l.b16 %v191
    %v376 = vunpack.c.h.b16 %v191
    %v377 = vunpack.c.l.b16 %v192
    %v378 = vunpack.c.l.b16 %v193
    %v379 = vunpack.c.h.b16 %v193
    %v380 = vunpack.c.l.b16 %v194
    %v381 = vunpack.c.l.b16 %v195
    %v382 = vunpack.c.h.b16 %v195
    %v383 = vunpack.c.l.b16 %v196
    %v384 = vunpack.c.l.b16 %v197
    %v385 = vunpack.c.h.b16 %v197
    %v386 = vunpack.c.l.b16 %v198
    %v387 = vunpack.c.l.b16 %v199
    %v388 = vunpack.c.h.b16 %v199
    %v389 = vunpack.c.l.b16 %v200
    %v390 = vunpack.c.l.b16 %v201
    %v391 = vunpack.c.h.b16 %v201
    %v392 = vunpack.c.l.b16 %v202
    %v393 = vpack.c.b16 %v348, %v345
    %v394 = vpack.c.b16 %v349, %v346
    %v395 = vpack.c.b16 %v350, %v347
    %v396 = vpack.c.b16 %v354, %v351
    %v397 = vpack.c.b16 %v355, %v352
    %v398 = vpack.c.b16 %v356, %v353
    %v399 = vpack.c.b16 %v360, %v357
    %v400 = vpack.c.b16 %v361, %v358
    %v401 = vpack.c.b16 %v362, %v359
    %v402 = vpack.c.b16 %v366, %v363
    %v403 = vpack.c.b16 %v367, %v364
    %v404 = vpack.c.b16 %v368, %v365
    %v405 = vpack.c.b16 %v372, %v369
    %v406 = vpack.c.b16 %v373, %v370
    %v407 = vpack.c.b16 %v374, %v371
    %v408 = vpack.c.b16 %v378, %v375
    %v409 = vpack.c.b16 %v379, %v376
    %v410 = vpack.c.b16 %v380, %v377
    %v411 = vpack.c.b16 %v384, %v381
    %v412 = vpack.c.b16 %v385, %v382
    %v413 = vpack.c.b16 %v386, %v383
    %v414 = vpack.c.b16 %v390, %v387
    %v415 = vpack.c.b16 %v391, %v388
    %v416 = vpack.c.b16 %v392, %v389
    %v489 = vunpack.c.l.b16 %v204
    %v490 = vunpack.c.h.b16 %v204
    %v491 = vunpack.c.l.b16 %v205
    %v492 = vunpack.c.h.b16 %v205
    %v493 = vunpack.c.l.b16 %v206
    %v494 = vunpack.c.h.b16 %v206
    %v495 = vunpack.c.l.b16 %v207
    %v496 = vunpack.c.h.b16 %v207
    %v497 = vunpack.c.l.b16 %v208
    %v498 = vunpack.c.h.b16 %v208
    %v499 = vunpack.c.l.b16 %v209
    %v500 = vunpack.c.h.b16 %v209
    %v501 = vunpack.c.l.b16 %v210
    %v502 = vunpack.c.h.b16 %v210
    %v503 = vunpack.c.l.b16 %v211
    %v504 = vunpack.c.h.b16 %v211
    %v505 = vunpack.c.l.b16 %v212
    %v506 = vunpack.c.h.b16 %v212
    %v507 = vunpack.c.l.b16 %v213
    %v508 = vunpack.c.h.b16 %v213
    %v509 = vunpack.c.l.b16 %v214
    %v510 = vunpack.c.h.b16 %v214
    %v511 = vunpack.c.l.b16 %v215
    %v512 = vunpack.c.h.b16 %v215
    %v513 = vunpack.c.l.b16 %v216
    %v514 = vunpack.c.h.b16 %v216
    %v515 = vunpack.c.l.b16 %v217
    %v516 = vunpack.c.h.b16 %v217
    %v517 = vunpack.c.l.b16 %v218
    %v518 = vunpack.c.h.b16 %v218
    %v519 = vunpack.c.l.b16 %v219
    %v520 = vunpack.c.h.b16 %v219
    %v521 = vunpack.c.l.b16 %v220
    %v522 = vunpack.c.h.b16 %v220
    %v523 = vunpack.c.l.b16 %v221
    %v524 = vunpack.c.h.b16 %v221
    %v525 = vunpack.c.l.b16 %v222
    %v526 = vunpack.c.h.b16 %v222
    %v527 = vunpack.c.l.b16 %v223
    %v528 = vunpack.c.h.b16 %v223
    %v529 = vunpack.c.l.b16 %v224
    %v530 = vunpack.c.h.b16 %v224
    %v531 = vunpack.c.l.b16 %v225
    %v532 = vunpack.c.h.b16 %v225
    %v533 = vunpack.c.l.b16 %v226
    %v534 = vunpack.c.h.b16 %v226
    %v535 = vunpack.c.l.b16 %v227
    %v536 = vunpack.c.h.b16 %v227
    %v537 = vunpack.c.l.b16 %v228
    %v538 = vunpack.c.h.b16 %v228
    %v539 = vunpack.c.l.b16 %v229
    %v540 = vunpack.c.h.b16 %v229
    %v541 = vunpack.c.l.b16 %v230
    %v542 = vunpack.c.h.b16 %v230
    %v543 = vunpack.c.l.b16 %v231
    %v544 = vunpack.c.h.b16 %v231
    %v545 = vunpack.c.l.b16 %v232
    %v546 = vunpack.c.h.b16 %v232
    %v547 = vunpack.c.l.b16 %v233
    %v548 = vunpack.c.h.b16 %v233
    %v549 = vunpack.c.l.b16 %v234
    %v550 = vunpack.c.h.b16 %v234
    %v551 = vunpack.c.l.b16 %v235
    %v552 = vunpack.c.h.b16 %v235
    %v553 = vunpack.c.l.b16 %v236
    %v554 = vunpack.c.h.b16 %v236
    %v555 = vunpack.c.l.b16 %v237
    %v556 = vunpack.c.h.b16 %v237
    %v557 = vunpack.c.l.b16 %v238
    %v558 = vunpack.c.h.b16 %v238
    %v559 = vunpack.c.l.b16 %v239
    %v560 = vunpack.c.h.b16 %v239
    %v561 = vunpack.c.l.b16 %v240
    %v562 = vunpack.c.h.b16 %v240
    %v563 = vunpack.c.l.b16 %v241
    %v564 = vunpack.c.h.b16 %v241
    %v565 = vunpack.c.l.b16 %v242
    %v566 = vunpack.c.h.b16 %v242
    %v567 = vunpack.c.l.b16 %v243
    %v568 = vunpack.c.h.b16 %v243
    %v569 = vunpack.c.l.b16 %v244
    %v570 = vunpack.c.h.b16 %v244
    %v571 = vunpack.c.l.b16 %v245
    %v572 = vunpack.c.h.b16 %v245
    %v573 = vunpack.c.l.b16 %v246
    %v574 = vunpack.c.h.b16 %v246
    %v575 = vunpack.c.l.b16 %v247
    %v576 = vunpack.c.h.b16 %v247
    %v577 = vunpack.c.l.b16 %v248
    %v578 = vunpack.c.h.b16 %v248
    %v579 = vunpack.c.l.b16 %v249
    %v580 = vunpack.c.h.b16 %v249
    %v581 = vunpack.c.l.b16 %v250
    %v582 = vunpack.c.h.b16 %v250
    %v583 = vunpack.c.l.b16 %v251
    %v584 = vunpack.c.h.b16 %v251
    %v585 = vpack.c.b16 %v491, %v489
    %v586 = vpack.c.b16 %v492, %v490
    %v587 = vpack.c.b16 %v495, %v493
    %v588 = vpack.c.b16 %v496, %v494
    %v589 = vpack.c.b16 %v499, %v497
    %v590 = vpack.c.b16 %v500, %v498
    %v591 = vpack.c.b16 %v503, %v501
    %v592 = vpack.c.b16 %v504, %v502
    %v593 = vpack.c.b16 %v507, %v505
    %v594 = vpack.c.b16 %v508, %v506
    %v595 = vpack.c.b16 %v511, %v509
    %v596 = vpack.c.b16 %v512, %v510
    %v597 = vpack.c.b16 %v515, %v513
    %v598 = vpack.c.b16 %v516, %v514
    %v599 = vpack.c.b16 %v519, %v517
    %v600 = vpack.c.b16 %v520, %v518
    %v601 = vpack.c.b16 %v523, %v521
    %v602 = vpack.c.b16 %v524, %v522
    %v603 = vpack.c.b16 %v527, %v525
    %v604 = vpack.c.b16 %v528, %v526
    %v605 = vpack.c.b16 %v531, %v529
    %v606 = vpack.c.b16 %v532, %v530
    %v607 = vpack.c.b16 %v535, %v533
    %v608 = vpack.c.b16 %v536, %v534
    %v609 = vpack.c.b16 %v539, %v537
    %v610 = vpack.c.b16 %v540, %v538
    %v611 = vpack.c.b16 %v543, %v541
    %v612 = vpack.c.b16 %v544, %v542
    %v613 = vpack.c.b16 %v547, %v545
    %v614 = vpack.c.b16 %v548, %v546
    %v615 = vpack.c.b16 %v551, %v549
    %v616 = vpack.c.b16 %v552, %v550
    %v617 = vpack.c.b16 %v555, %v553
    %v618 = vpack.c.b16 %v556, %v554
    %v619 = vpack.c.b16 %v559, %v557
    %v620 = vpack.c.b16 %v560, %v558
    %v621 = vpack.c.b16 %v563, %v561
    %v622 = vpack.c.b16 %v564, %v562
    %v623 = vpack.c.b16 %v567, %v565
    %v624 = vpack.c.b16 %v568, %v566
    %v625 = vpack.c.b16 %v571, %v569
    %v626 = vpack.c.b16 %v572, %v570
    %v627 = vpack.c.b16 %v575, %v573
    %v628 = vpack.c.b16 %v576, %v574
    %v629 = vpack.c.b16 %v579, %v577
    %v630 = vpack.c.b16 %v580, %v578
    %v631 = vpack.c.b16 %v583, %v581
    %v632 = vpack.c.b16 %v584, %v582
    %681 = vmatprep.subr.bf16.mxu0 %v586
    %682 = vmatpush1.bf16.msra.mxu0 %v585
    %683 = vmatprep.subr.bf16.mxu0 %v588
    %684 = vmatpush1.bf16.msra.mxu0 %v587
    %685 = vmatprep.subr.bf16.mxu0 %v590
    %686 = vmatpush1.bf16.msra.mxu0 %v589
    %687 = vmatprep.subr.bf16.mxu0 %v592
    %688 = vmatpush1.bf16.msra.mxu0 %v591
    %689 = vmatprep.subr.bf16.mxu0 %v594
    %690 = vmatpush1.bf16.msra.mxu0 %v593
    %691 = vmatprep.subr.bf16.mxu0 %v596
    %692 = vmatpush1.bf16.msra.mxu0 %v595
    %693 = vmatprep.subr.bf16.mxu0 %v598
    %694 = vmatpush1.bf16.msra.mxu0 %v597
    %695 = vmatprep.subr.bf16.mxu0 %v600
    %696 = vmatpush1.bf16.msra.mxu0 %v599
    %697 = vmatprep.subr.bf16.mxu0 %v602
    %698 = vmatpush1.bf16.msra.mxu0 %v601
    %699 = vmatprep.subr.bf16.mxu0 %v604
    %700 = vmatpush1.bf16.msra.mxu0 %v603
    %701 = vmatprep.subr.bf16.mxu0 %v606
    %702 = vmatpush1.bf16.msra.mxu0 %v605
    %703 = vmatprep.subr.bf16.mxu0 %v608
    %704 = vmatpush1.bf16.msra.mxu0 %v607
    %705 = vmatprep.subr.bf16.mxu0 %v610
    %706 = vmatpush1.bf16.msra.mxu0 %v609
    %707 = vmatprep.subr.bf16.mxu0 %v612
    %708 = vmatpush1.bf16.msra.mxu0 %v611
    %709 = vmatprep.subr.bf16.mxu0 %v614
    %710 = vmatpush1.bf16.msra.mxu0 %v613
    %711 = vmatprep.subr.bf16.mxu0 %v616
    %712 = vmatpush1.bf16.msra.mxu0 %v615
    %713 = vmatprep.mubr.bf16.mxu0 %v394
    %714 = vmatmul.mubr.bf16.gmra.mrb[0].mxu0 %v393
    %v715 = vpop.f32.mrb[0].mxu0
    %v716 = vadd.f32 %v306, %v715
    %v717 = vpop.f32.mrb[0].mxu0
    %v718 = vadd.f32 %v310, %v717
    %v719 = vpop.f32.mrb[0].mxu0
    %v720 = vadd.f32 %v306, %v719
    %v721 = vpop.f32.mrb[0].mxu0
    %v722 = vadd.f32 %v310, %v721
    %723 = vmatprep.mubr.bf16.mxu0 %v397
    %724 = vmatmul.mubr.bf16.gmra.mrb[0].mxu0 %v396
    %v725 = vpop.f32.mrb[0].mxu0
    %v726 = vadd.f32 %v306, %v725
    %v727 = vpop.f32.mrb[0].mxu0
    %v728 = vadd.f32 %v310, %v727
    %v729 = vpop.f32.mrb[0].mxu0
    %v730 = vadd.f32 %v306, %v729
    %v731 = vpop.f32.mrb[0].mxu0
    %v732 = vadd.f32 %v310, %v731
    %733 = vmatprep.mubr.bf16.mxu0 %v400
    %734 = vmatmul.mubr.bf16.gmra.mrb[0].mxu0 %v399
    %v735 = vpop.f32.mrb[0].mxu0
    %v736 = vadd.f32 %v306, %v735
    %v737 = vpop.f32.mrb[0].mxu0
    %v738 = vadd.f32 %v310, %v737
    %v739 = vpop.f32.mrb[0].mxu0
    %v740 = vadd.f32 %v306, %v739
    %v741 = vpop.f32.mrb[0].mxu0
    %v742 = vadd.f32 %v310, %v741
    %743 = vmatprep.mubr.bf16.mxu0 %v403
    %744 = vmatmul.mubr.bf16.gmra.mrb[0].mxu0 %v402
    %v745 = vpop.f32.mrb[0].mxu0
    %v746 = vadd.f32 %v306, %v745
    %v747 = vpop.f32.mrb[0].mxu0
    %v748 = vadd.f32 %v310, %v747
    %v749 = vpop.f32.mrb[0].mxu0
    %v750 = vadd.f32 %v306, %v749
    %v751 = vpop.f32.mrb[0].mxu0
    %v752 = vadd.f32 %v310, %v751
    %753 = vmatprep.mubr.bf16.mxu0 %v406
    %754 = vmatmul.mubr.bf16.gmra.mrb[0].mxu0 %v405
    %v755 = vpop.f32.mrb[0].mxu0
    %v756 = vadd.f32 %v306, %v755
    %v757 = vpop.f32.mrb[0].mxu0
    %v758 = vadd.f32 %v310, %v757
    %v759 = vpop.f32.mrb[0].mxu0
    %v760 = vadd.f32 %v306, %v759
    %v761 = vpop.f32.mrb[0].mxu0
    %v762 = vadd.f32 %v310, %v761
    %763 = vmatprep.mubr.bf16.mxu0 %v409
    %764 = vmatmul.mubr.bf16.gmra.mrb[0].mxu0 %v408
    %v765 = vpop.f32.mrb[0].mxu0
    %v766 = vadd.f32 %v306, %v765
    %v767 = vpop.f32.mrb[0].mxu0
    %v768 = vadd.f32 %v310, %v767
    %v769 = vpop.f32.mrb[0].mxu0
    %v770 = vadd.f32 %v306, %v769
    %v771 = vpop.f32.mrb[0].mxu0
    %v772 = vadd.f32 %v310, %v771
    %773 = vmatprep.mubr.bf16.mxu0 %v412
    %774 = vmatmul.mubr.bf16.gmra.mrb[0].mxu0 %v411
    %v775 = vpop.f32.mrb[0].mxu0
    %v776 = vadd.f32 %v306, %v775
    %v777 = vpop.f32.mrb[0].mxu0
    %v778 = vadd.f32 %v310, %v777
    %v779 = vpop.f32.mrb[0].mxu0
    %v780 = vadd.f32 %v306, %v779
    %v781 = vpop.f32.mrb[0].mxu0
    %v782 = vadd.f32 %v310, %v781
    %783 = vmatprep.mubr.bf16.mxu0 %v415
    %784 = vmatmul.mubr.bf16.gmra.mrb[0].mxu0 %v414
    %v785 = vpop.f32.mrb[0].mxu0
    %v786 = vadd.f32 %v306, %v785
    %v787 = vpop.f32.mrb[0].mxu0
    %v788 = vadd.f32 %v310, %v787
    %v789 = vpop.f32.mrb[0].mxu0
    %v790 = vadd.f32 %v306, %v789
    %v791 = vpop.f32.mrb[0].mxu0
    %v792 = vadd.f32 %v310, %v791
    %793 = vdwg.mxu0
    %794 = vmatprep.subr.bf16.mxu0 %v618
    %795 = vmatpush1.bf16.msra.mxu0 %v617
    %796 = vmatprep.subr.bf16.mxu0 %v620
    %797 = vmatpush1.bf16.msra.mxu0 %v619
    %798 = vmatprep.subr.bf16.mxu0 %v622
    %799 = vmatpush1.bf16.msra.mxu0 %v621
    %800 = vmatprep.subr.bf16.mxu0 %v624
    %801 = vmatpush1.bf16.msra.mxu0 %v623
    %802 = vmatprep.subr.bf16.mxu0 %v626
    %803 = vmatpush1.bf16.msra.mxu0 %v625
    %804 = vmatprep.subr.bf16.mxu0 %v628
    %805 = vmatpush1.bf16.msra.mxu0 %v627
    %806 = vmatprep.subr.bf16.mxu0 %v630
    %807 = vmatpush1.bf16.msra.mxu0 %v629
    %808 = vmatprep.subr.bf16.mxu0 %v632
    %809 = vmatpush1.bf16.msra.mxu0 %v631
    %810 = vmatprep.subr.bf16.mxu0 0
    %811 = vmatpush1.bf16.msra.mxu0 0
    %812 = vmatprep.subr.bf16.mxu0 0
    %813 = vmatpush1.bf16.msra.mxu0 0
    %814 = vmatprep.subr.bf16.mxu0 0
    %815 = vmatpush1.bf16.msra.mxu0 0
    %816 = vmatprep.subr.bf16.mxu0 0
    %817 = vmatpush1.bf16.msra.mxu0 0
    %818 = vmatprep.subr.bf16.mxu0 0
    %819 = vmatpush1.bf16.msra.mxu0 0
    %820 = vmatprep.subr.bf16.mxu0 0
    %821 = vmatpush1.bf16.msra.mxu0 0
    %822 = vmatprep.subr.bf16.mxu0 0
    %823 = vmatpush1.bf16.msra.mxu0 0
    %824 = vmatprep.subr.bf16.mxu0 0
    %825 = vmatpush1.bf16.msra.mxu0 0
    %826 = vmatprep.mubr.bf16.mxu0 0
    %827 = vmatmul.mubr.bf16.gmra.mrb[0].mxu0 %v395
    %v828 = vpop.f32.mrb[0].mxu0
    %v829 = vadd.f32 %v716, %v828
    %v830 = vpop.f32.mrb[0].mxu0
    %v831 = vadd.f32 %v718, %v830
    %v832 = vpop.f32.mrb[0].mxu0
    %v833 = vadd.f32 %v720, %v832
    %v834 = vpop.f32.mrb[0].mxu0
    %v835 = vadd.f32 %v722, %v834
    %836 = vmatprep.mubr.bf16.mxu0 0
    %837 = vmatmul.mubr.bf16.gmra.mrb[0].mxu0 %v398
    %v838 = vpop.f32.mrb[0].mxu0
    %v839 = vadd.f32 %v726, %v838
    %v840 = vpop.f32.mrb[0].mxu0
    %v841 = vadd.f32 %v728, %v840
    %v842 = vpop.f32.mrb[0].mxu0
    %v843 = vadd.f32 %v730, %v842
    %v844 = vpop.f32.mrb[0].mxu0
    %v845 = vadd.f32 %v732, %v844
    %846 = vmatprep.mubr.bf16.mxu0 0
    %847 = vmatmul.mubr.bf16.gmra.mrb[0].mxu0 %v401
    %v848 = vpop.f32.mrb[0].mxu0
    %v849 = vadd.f32 %v736, %v848
    %v850 = vpop.f32.mrb[0].mxu0
    %v851 = vadd.f32 %v738, %v850
    %v852 = vpop.f32.mrb[0].mxu0
    %v853 = vadd.f32 %v740, %v852
    %v854 = vpop.f32.mrb[0].mxu0
    %v855 = vadd.f32 %v742, %v854
    %856 = vmatprep.mubr.bf16.mxu0 0
    %857 = vmatmul.mubr.bf16.gmra.mrb[0].mxu0 %v404
    %v858 = vpop.f32.mrb[0].mxu0
    %v859 = vadd.f32 %v746, %v858
    %v860 = vpop.f32.mrb[0].mxu0
    %v861 = vadd.f32 %v748, %v860
    %v862 = vpop.f32.mrb[0].mxu0
    %v863 = vadd.f32 %v750, %v862
    %v864 = vpop.f32.mrb[0].mxu0
    %v865 = vadd.f32 %v752, %v864
    %866 = vmatprep.mubr.bf16.mxu0 0
    %867 = vmatmul.mubr.bf16.gmra.mrb[0].mxu0 %v407
    %v868 = vpop.f32.mrb[0].mxu0
    %v869 = vadd.f32 %v756, %v868
    %v870 = vpop.f32.mrb[0].mxu0
    %v871 = vadd.f32 %v758, %v870
    %v872 = vpop.f32.mrb[0].mxu0
    %v873 = vadd.f32 %v760, %v872
    %v874 = vpop.f32.mrb[0].mxu0
    %v875 = vadd.f32 %v762, %v874
    %876 = vmatprep.mubr.bf16.mxu0 0
    %877 = vmatmul.mubr.bf16.gmra.mrb[0].mxu0 %v410
    %v878 = vpop.f32.mrb[0].mxu0
    %v879 = vadd.f32 %v766, %v878
    %v880 = vpop.f32.mrb[0].mxu0
    %v881 = vadd.f32 %v768, %v880
    %v882 = vpop.f32.mrb[0].mxu0
    %v883 = vadd.f32 %v770, %v882
    %v884 = vpop.f32.mrb[0].mxu0
    %v885 = vadd.f32 %v772, %v884
    %886 = vmatprep.mubr.bf16.mxu0 0
    %887 = vmatmul.mubr.bf16.gmra.mrb[0].mxu0 %v413
    %v888 = vpop.f32.mrb[0].mxu0
    %v889 = vadd.f32 %v776, %v888
    %v890 = vpop.f32.mrb[0].mxu0
    %v891 = vadd.f32 %v778, %v890
    %v892 = vpop.f32.mrb[0].mxu0
    %v893 = vadd.f32 %v780, %v892
    %v894 = vpop.f32.mrb[0].mxu0
    %v895 = vadd.f32 %v782, %v894
    %896 = vmatprep.mubr.bf16.mxu0 0
    %897 = vmatmul.mubr.bf16.gmra.mrb[0].mxu0 %v416
    %v898 = vpop.f32.mrb[0].mxu0
    %v899 = vadd.f32 %v786, %v898
    %v900 = vpop.f32.mrb[0].mxu0
    %v901 = vadd.f32 %v788, %v900
    %v902 = vpop.f32.mrb[0].mxu0
    %v903 = vadd.f32 %v790, %v902
    %v904 = vpop.f32.mrb[0].mxu0
    %v905 = vadd.f32 %v792, %v904
    %906 = vdwg.mxu0
    %v907 = vtanh.pop %v829
    %v908 = vtanh.pop %v831
    %v909 = vtanh.pop %v833
    %v910 = vtanh.pop %v835
    %v911 = vtanh.pop %v839
    %v912 = vtanh.pop %v841
    %v913 = vtanh.pop %v843
    %v914 = vtanh.pop %v845
    %v915 = vtanh.pop %v849
    %v916 = vtanh.pop %v851
    %v917 = vtanh.pop %v853
    %v918 = vtanh.pop %v855
    %v919 = vtanh.pop %v859
    %v920 = vtanh.pop %v861
    %v921 = vtanh.pop %v863
    %v922 = vtanh.pop %v865
    %v923 = vtanh.pop %v869
    %v924 = vtanh.pop %v871
    %v925 = vtanh.pop %v873
    %v926 = vtanh.pop %v875
    %v927 = vtanh.pop %v879
    %v928 = vtanh.pop %v881
    %v929 = vtanh.pop %v883
    %v930 = vtanh.pop %v885
    %v931 = vtanh.pop %v889
    %v932 = vtanh.pop %v891
    %v933 = vtanh.pop %v893
    %v934 = vtanh.pop %v895
    %v935 = vtanh.pop %v899
    %v936 = vtanh.pop %v901
    %v937 = vtanh.pop %v903
    %v938 = vtanh.pop %v905
    %v940 = vlaneseq
    %v941 = vshrl.u32 %v940, 7
    %v942 = vsub.s32 0, %v941
    %v943 = vrot.slane %v253, %v942
    %v944 = vlaneseq
    %v945 = vshrl.u32 %v944, 7
    %v946 = vsub.s32 1, %v945
    %v947 = vrot.slane %v253, %v946
    %v950 = vmul.f32 %v907, %v943
    %v951 = vmul.f32 %v908, %v947
    %v952 = vmul.f32 %v909, %v943
    %v953 = vmul.f32 %v910, %v947
    %v954 = vmul.f32 %v911, %v943
    %v955 = vmul.f32 %v912, %v947
    %v956 = vmul.f32 %v913, %v943
    %v957 = vmul.f32 %v914, %v947
    %v958 = vmul.f32 %v915, %v943
    %v959 = vmul.f32 %v916, %v947
    %v960 = vmul.f32 %v917, %v943
    %v961 = vmul.f32 %v918, %v947
    %v962 = vmul.f32 %v919, %v943
    %v963 = vmul.f32 %v920, %v947
    %v964 = vmul.f32 %v921, %v943
    %v965 = vmul.f32 %v922, %v947
    %v966 = vmul.f32 %v923, %v943
    %v967 = vmul.f32 %v924, %v947
    %v968 = vmul.f32 %v925, %v943
    %v969 = vmul.f32 %v926, %v947
    %v970 = vmul.f32 %v927, %v943
    %v971 = vmul.f32 %v928, %v947
    %v972 = vmul.f32 %v929, %v943
    %v973 = vmul.f32 %v930, %v947
    %v974 = vmul.f32 %v931, %v943
    %v975 = vmul.f32 %v932, %v947
    %v976 = vmul.f32 %v933, %v943
    %v977 = vmul.f32 %v934, %v947
    %v978 = vmul.f32 %v935, %v943
    %v979 = vmul.f32 %v936, %v947
    %v980 = vmul.f32 %v937, %v943
    %v981 = vmul.f32 %v938, %v947
    %v982 = vadd.f32 %v950, %v951
    %983 = vadd.xlane.f32.xlu0 %v982
    %v984 = vpop.xlane.xlu0 %983
    %v985 = vadd.f32 %v952, %v953
    %986 = vadd.xlane.f32.xlu0 %v985
    %v987 = vpop.xlane.xlu0 %986
    %v988 = vadd.f32 %v954, %v955
    %989 = vadd.xlane.f32.xlu0 %v988
    %v990 = vpop.xlane.xlu0 %989
    %v991 = vadd.f32 %v956, %v957
    %992 = vadd.xlane.f32.xlu0 %v991
    %v993 = vpop.xlane.xlu0 %992
    %v994 = vadd.f32 %v958, %v959
    %995 = vadd.xlane.f32.xlu0 %v994
    %v996 = vpop.xlane.xlu0 %995
    %v997 = vadd.f32 %v960, %v961
    %998 = vadd.xlane.f32.xlu0 %v997
    %v999 = vpop.xlane.xlu0 %998
    %v1000 = vadd.f32 %v962, %v963
    %1001 = vadd.xlane.f32.xlu0 %v1000
    %v1002 = vpop.xlane.xlu0 %1001
    %v1003 = vadd.f32 %v964, %v965
    %1004 = vadd.xlane.f32.xlu0 %v1003
    %v1005 = vpop.xlane.xlu0 %1004
    %v1006 = vadd.f32 %v966, %v967
    %1007 = vadd.xlane.f32.xlu0 %v1006
    %v1008 = vpop.xlane.xlu0 %1007
    %v1009 = vadd.f32 %v968, %v969
    %1010 = vadd.xlane.f32.xlu0 %v1009
    %v1011 = vpop.xlane.xlu0 %1010
    %v1012 = vadd.f32 %v970, %v971
    %1013 = vadd.xlane.f32.xlu0 %v1012
    %v1014 = vpop.xlane.xlu0 %1013
    %v1015 = vadd.f32 %v972, %v973
    %1016 = vadd.xlane.f32.xlu0 %v1015
    %v1017 = vpop.xlane.xlu0 %1016
    %v1018 = vadd.f32 %v974, %v975
    %1019 = vadd.xlane.f32.xlu0 %v1018
    %v1020 = vpop.xlane.xlu0 %1019
    %v1021 = vadd.f32 %v976, %v977
    %1022 = vadd.xlane.f32.xlu0 %v1021
    %v1023 = vpop.xlane.xlu0 %1022
    %v1024 = vadd.f32 %v978, %v979
    %1025 = vadd.xlane.f32.xlu0 %v1024
    %v1026 = vpop.xlane.xlu0 %1025
    %v1027 = vadd.f32 %v980, %v981
    %1028 = vadd.xlane.f32.xlu0 %v1027
    %v1029 = vpop.xlane.xlu0 %1028
    %v1030 = vstv %s168
    %v1031 = vadd.f32 %v984, %v1030
    %v1032 = vadd.f32 %v987, %v1030
    %v1033 = vadd.f32 %v990, %v1030
    %v1034 = vadd.f32 %v993, %v1030
    %v1035 = vadd.f32 %v996, %v1030
    %v1036 = vadd.f32 %v999, %v1030
    %v1037 = vadd.f32 %v1002, %v1030
    %v1038 = vadd.f32 %v1005, %v1030
    %v1039 = vadd.f32 %v1008, %v1030
    %v1040 = vadd.f32 %v1011, %v1030
    %v1041 = vadd.f32 %v1014, %v1030
    %v1042 = vadd.f32 %v1017, %v1030
    %v1043 = vadd.f32 %v1020, %v1030
    %v1044 = vadd.f32 %v1023, %v1030
    %v1045 = vadd.f32 %v1026, %v1030
    %v1046 = vadd.f32 %v1029, %v1030
    %v1063 = vlaneseq
    %v1064 = vand.u32 %v1063, 127
    %v1065 = vlaneseq
    %v1066 = vshrl.u32 %v1065, 7
    %v1067 = vsub.s32 %v1064, %v1066
    %v1068 = vrot.slane %v1031, %v1067
    %v1069 = vadd.s32 %v1064, 4294967288
    %v1070 = vlaneseq
    %v1071 = vshrl.u32 %v1070, 7
    %v1072 = vsub.s32 %v1069, %v1071
    %v1073 = vrot.slane %v1032, %v1072
    %vm1074 = vcmask 130112
    %v1075 = vsel %vm1074, %v1073, %v1068
    %v1076 = vlaneseq
    %v1077 = vshrl.u32 %v1076, 7
    %v1078 = vsub.s32 %v1064, %v1077
    %v1079 = vrot.slane %v1033, %v1078
    %v1080 = vlaneseq
    %v1081 = vshrl.u32 %v1080, 7
    %v1082 = vsub.s32 %v1069, %v1081
    %v1083 = vrot.slane %v1034, %v1082
    %v1084 = vsel %vm1074, %v1083, %v1079
    %v1085 = vlaneseq
    %v1086 = vshrl.u32 %v1085, 7
    %v1087 = vsub.s32 %v1064, %v1086
    %v1088 = vrot.slane %v1035, %v1087
    %v1089 = vlaneseq
    %v1090 = vshrl.u32 %v1089, 7
    %v1091 = vsub.s32 %v1069, %v1090
    %v1092 = vrot.slane %v1036, %v1091
    %v1093 = vsel %vm1074, %v1092, %v1088
    %v1094 = vlaneseq
    %v1095 = vshrl.u32 %v1094, 7
    %v1096 = vsub.s32 %v1064, %v1095
    %v1097 = vrot.slane %v1037, %v1096
    %v1098 = vlaneseq
    %v1099 = vshrl.u32 %v1098, 7
    %v1100 = vsub.s32 %v1069, %v1099
    %v1101 = vrot.slane %v1038, %v1100
    %v1102 = vsel %vm1074, %v1101, %v1097
    %v1103 = vlaneseq
    %v1104 = vshrl.u32 %v1103, 7
    %v1105 = vsub.s32 %v1064, %v1104
    %v1106 = vrot.slane %v1039, %v1105
    %v1107 = vlaneseq
    %v1108 = vshrl.u32 %v1107, 7
    %v1109 = vsub.s32 %v1069, %v1108
    %v1110 = vrot.slane %v1040, %v1109
    %v1111 = vsel %vm1074, %v1110, %v1106
    %v1112 = vlaneseq
    %v1113 = vshrl.u32 %v1112, 7
    %v1114 = vsub.s32 %v1064, %v1113
    %v1115 = vrot.slane %v1041, %v1114
    %v1116 = vlaneseq
    %v1117 = vshrl.u32 %v1116, 7
    %v1118 = vsub.s32 %v1069, %v1117
    %v1119 = vrot.slane %v1042, %v1118
    %v1120 = vsel %vm1074, %v1119, %v1115
    %v1121 = vlaneseq
    %v1122 = vshrl.u32 %v1121, 7
    %v1123 = vsub.s32 %v1064, %v1122
    %v1124 = vrot.slane %v1043, %v1123
    %v1125 = vlaneseq
    %v1126 = vshrl.u32 %v1125, 7
    %v1127 = vsub.s32 %v1069, %v1126
    %v1128 = vrot.slane %v1044, %v1127
    %v1129 = vsel %vm1074, %v1128, %v1124
    %v1130 = vlaneseq
    %v1131 = vshrl.u32 %v1130, 7
    %v1132 = vsub.s32 %v1064, %v1131
    %v1133 = vrot.slane %v1045, %v1132
    %v1134 = vlaneseq
    %v1135 = vshrl.u32 %v1134, 7
    %v1136 = vsub.s32 %v1069, %v1135
    %v1137 = vrot.slane %v1046, %v1136
    %v1138 = vsel %vm1074, %v1137, %v1133
    %vm1139 = vcmask 1041409
    %v1140 = vsel %vm1139, %v1084, %v1075
    %vm1141 = vcmask 1042434
    %v1142 = vsel %vm1141, %v1093, %v1140
    %vm1143 = vcmask 1043459
    %v1144 = vsel %vm1143, %v1102, %v1142
    %vm1145 = vcmask 1044484
    %v1146 = vsel %vm1145, %v1111, %v1144
    %vm1147 = vcmask 1045509
    %v1148 = vsel %vm1147, %v1120, %v1146
    %vm1149 = vcmask 1046534
    %v1150 = vsel %vm1149, %v1129, %v1148
    %vm1151 = vcmask 1047559
    %v1152 = vsel %vm1151, %v1138, %v1150
    %vm1154 = vcmask 130048
    %v1155 = vsel %vm1154, %v1152, -inf
    %1156 = vmax.xlane.f32.xlu0 %v1155
    %v1157 = vpop.xlane.xlu0 %1156
    %v1159 = vlaneseq
    %v1160 = vshrl.u32 %v1159, 7
    %v1161 = vsub.s32 0, %v1160
    %v1162 = vrot.slane %v1157, %v1161
    %v1163 = vlaneseq
    %v1164 = vshrl.u32 %v1163, 7
    %v1165 = vsub.s32 1, %v1164
    %v1166 = vrot.slane %v1157, %v1165
    %v1167 = vlaneseq
    %v1168 = vshrl.u32 %v1167, 7
    %v1169 = vsub.s32 2, %v1168
    %v1170 = vrot.slane %v1157, %v1169
    %v1171 = vlaneseq
    %v1172 = vshrl.u32 %v1171, 7
    %v1173 = vsub.s32 3, %v1172
    %v1174 = vrot.slane %v1157, %v1173
    %v1175 = vlaneseq
    %v1176 = vshrl.u32 %v1175, 7
    %v1177 = vsub.s32 4, %v1176
    %v1178 = vrot.slane %v1157, %v1177
    %v1179 = vlaneseq
    %v1180 = vshrl.u32 %v1179, 7
    %v1181 = vsub.s32 5, %v1180
    %v1182 = vrot.slane %v1157, %v1181
    %v1183 = vlaneseq
    %v1184 = vshrl.u32 %v1183, 7
    %v1185 = vsub.s32 6, %v1184
    %v1186 = vrot.slane %v1157, %v1185
    %v1187 = vlaneseq
    %v1188 = vshrl.u32 %v1187, 7
    %v1189 = vsub.s32 7, %v1188
    %v1190 = vrot.slane %v1157, %v1189
    %v1199 = vsub.f32 %v1031, %v1162
    %v1200 = vsub.f32 %v1032, %v1162
    %v1201 = vsub.f32 %v1033, %v1166
    %v1202 = vsub.f32 %v1034, %v1166
    %v1203 = vsub.f32 %v1035, %v1170
    %v1204 = vsub.f32 %v1036, %v1170
    %v1205 = vsub.f32 %v1037, %v1174
    %v1206 = vsub.f32 %v1038, %v1174
    %v1207 = vsub.f32 %v1039, %v1178
    %v1208 = vsub.f32 %v1040, %v1178
    %v1209 = vsub.f32 %v1041, %v1182
    %v1210 = vsub.f32 %v1042, %v1182
    %v1211 = vsub.f32 %v1043, %v1186
    %v1212 = vsub.f32 %v1044, %v1186
    %v1213 = vsub.f32 %v1045, %v1190
    %v1214 = vsub.f32 %v1046, %v1190
    %v1215 = vmul.f32 %v1199, 1.442695
    %v1216 = vpow.pop %v1215
    %v1217 = vmul.f32 %v1200, 1.442695
    %v1218 = vpow.pop %v1217
    %v1219 = vmul.f32 %v1201, 1.442695
    %v1220 = vpow.pop %v1219
    %v1221 = vmul.f32 %v1202, 1.442695
    %v1222 = vpow.pop %v1221
    %v1223 = vmul.f32 %v1203, 1.442695
    %v1224 = vpow.pop %v1223
    %v1225 = vmul.f32 %v1204, 1.442695
    %v1226 = vpow.pop %v1225
    %v1227 = vmul.f32 %v1205, 1.442695
    %v1228 = vpow.pop %v1227
    %v1229 = vmul.f32 %v1206, 1.442695
    %v1230 = vpow.pop %v1229
    %v1231 = vmul.f32 %v1207, 1.442695
    %v1232 = vpow.pop %v1231
    %v1233 = vmul.f32 %v1208, 1.442695
    %v1234 = vpow.pop %v1233
    %v1235 = vmul.f32 %v1209, 1.442695
    %v1236 = vpow.pop %v1235
    %v1237 = vmul.f32 %v1210, 1.442695
    %v1238 = vpow.pop %v1237
    %v1239 = vmul.f32 %v1211, 1.442695
    %v1240 = vpow.pop %v1239
    %v1241 = vmul.f32 %v1212, 1.442695
    %v1242 = vpow.pop %v1241
    %v1243 = vmul.f32 %v1213, 1.442695
    %v1244 = vpow.pop %v1243
    %v1245 = vmul.f32 %v1214, 1.442695
    %v1246 = vpow.pop %v1245
    %v1248 = vlaneseq
    %v1249 = vshrl.u32 %v1248, 7
    %v1250 = vsub.s32 0, %v1249
    %v1251 = vrot.slane %v203, %v1250
    %1253 = vbcast.lane.b32.xlu0 %v1251, 256
    %v1254 = vpop.permute.xlu0 %1253
    %s1256 = sor.u32 256, 8
    %1257 = vbcast.lane.b32.xlu0 %v1251, %s1256
    %v1258 = vpop.permute.xlu0 %1257
    %v1259 = vlaneseq
    %v1260 = vshrl.u32 %v1259, 7
    %v1261 = vsub.s32 1, %v1260
    %v1262 = vrot.slane %v203, %v1261
    %1264 = vbcast.lane.b32.xlu0 %v1262, 256
    %v1265 = vpop.permute.xlu0 %1264
    %s1267 = sor.u32 256, 8
    %1268 = vbcast.lane.b32.xlu0 %v1262, %s1267
    %v1269 = vpop.permute.xlu0 %1268
    %v1270 = vlaneseq
    %v1271 = vshrl.u32 %v1270, 7
    %v1272 = vsub.s32 2, %v1271
    %v1273 = vrot.slane %v203, %v1272
    %1275 = vbcast.lane.b32.xlu0 %v1273, 256
    %v1276 = vpop.permute.xlu0 %1275
    %s1278 = sor.u32 256, 8
    %1279 = vbcast.lane.b32.xlu0 %v1273, %s1278
    %v1280 = vpop.permute.xlu0 %1279
    %v1281 = vlaneseq
    %v1282 = vshrl.u32 %v1281, 7
    %v1283 = vsub.s32 3, %v1282
    %v1284 = vrot.slane %v203, %v1283
    %1286 = vbcast.lane.b32.xlu0 %v1284, 256
    %v1287 = vpop.permute.xlu0 %1286
    %s1289 = sor.u32 256, 8
    %1290 = vbcast.lane.b32.xlu0 %v1284, %s1289
    %v1291 = vpop.permute.xlu0 %1290
    %v1292 = vlaneseq
    %v1293 = vshrl.u32 %v1292, 7
    %v1294 = vsub.s32 4, %v1293
    %v1295 = vrot.slane %v203, %v1294
    %1297 = vbcast.lane.b32.xlu0 %v1295, 256
    %v1298 = vpop.permute.xlu0 %1297
    %s1300 = sor.u32 256, 8
    %1301 = vbcast.lane.b32.xlu0 %v1295, %s1300
    %v1302 = vpop.permute.xlu0 %1301
    %v1303 = vlaneseq
    %v1304 = vshrl.u32 %v1303, 7
    %v1305 = vsub.s32 5, %v1304
    %v1306 = vrot.slane %v203, %v1305
    %1308 = vbcast.lane.b32.xlu0 %v1306, 256
    %v1309 = vpop.permute.xlu0 %1308
    %s1311 = sor.u32 256, 8
    %1312 = vbcast.lane.b32.xlu0 %v1306, %s1311
    %v1313 = vpop.permute.xlu0 %1312
    %v1314 = vlaneseq
    %v1315 = vshrl.u32 %v1314, 7
    %v1316 = vsub.s32 6, %v1315
    %v1317 = vrot.slane %v203, %v1316
    %1319 = vbcast.lane.b32.xlu0 %v1317, 256
    %v1320 = vpop.permute.xlu0 %1319
    %s1322 = sor.u32 256, 8
    %1323 = vbcast.lane.b32.xlu0 %v1317, %s1322
    %v1324 = vpop.permute.xlu0 %1323
    %v1325 = vlaneseq
    %v1326 = vshrl.u32 %v1325, 7
    %v1327 = vsub.s32 7, %v1326
    %v1328 = vrot.slane %v203, %v1327
    %1330 = vbcast.lane.b32.xlu0 %v1328, 256
    %v1331 = vpop.permute.xlu0 %1330
    %s1333 = sor.u32 256, 8
    %1334 = vbcast.lane.b32.xlu0 %v1328, %s1333
    %v1335 = vpop.permute.xlu0 %1334
    %v1352 = vmul.f32 %v1216, %v1254
    %v1353 = vmul.f32 %v1218, %v1258
    %v1354 = vmul.f32 %v1220, %v1265
    %v1355 = vmul.f32 %v1222, %v1269
    %v1356 = vmul.f32 %v1224, %v1276
    %v1357 = vmul.f32 %v1226, %v1280
    %v1358 = vmul.f32 %v1228, %v1287
    %v1359 = vmul.f32 %v1230, %v1291
    %v1360 = vmul.f32 %v1232, %v1298
    %v1361 = vmul.f32 %v1234, %v1302
    %v1362 = vmul.f32 %v1236, %v1309
    %v1363 = vmul.f32 %v1238, %v1313
    %v1364 = vmul.f32 %v1240, %v1320
    %v1365 = vmul.f32 %v1242, %v1324
    %v1366 = vmul.f32 %v1244, %v1331
    %v1367 = vmul.f32 %v1246, %v1335
    %1384 = vset.pattern.permute.xlu0 0
    %1385 = vperm.xlu0 %1384, %v1352
    %v1386 = vpop.permute.xlu0 %1385
    %1387 = vset.pattern.permute.xlu0 0
    %1388 = vperm.xlu0 %1387, %v1353
    %v1389 = vpop.permute.xlu0 %1388
    %1390 = vset.pattern.permute.xlu0 0
    %1391 = vperm.xlu0 %1390, %v1354
    %v1392 = vpop.permute.xlu0 %1391
    %1393 = vset.pattern.permute.xlu0 0
    %1394 = vperm.xlu0 %1393, %v1355
    %v1395 = vpop.permute.xlu0 %1394
    %1396 = vset.pattern.permute.xlu0 0
    %1397 = vperm.xlu0 %1396, %v1356
    %v1398 = vpop.permute.xlu0 %1397
    %1399 = vset.pattern.permute.xlu0 0
    %1400 = vperm.xlu0 %1399, %v1357
    %v1401 = vpop.permute.xlu0 %1400
    %1402 = vset.pattern.permute.xlu0 0
    %1403 = vperm.xlu0 %1402, %v1358
    %v1404 = vpop.permute.xlu0 %1403
    %1405 = vset.pattern.permute.xlu0 0
    %1406 = vperm.xlu0 %1405, %v1359
    %v1407 = vpop.permute.xlu0 %1406
    %1408 = vset.pattern.permute.xlu0 0
    %1409 = vperm.xlu0 %1408, %v1360
    %v1410 = vpop.permute.xlu0 %1409
    %1411 = vset.pattern.permute.xlu0 0
    %1412 = vperm.xlu0 %1411, %v1361
    %v1413 = vpop.permute.xlu0 %1412
    %1414 = vset.pattern.permute.xlu0 0
    %1415 = vperm.xlu0 %1414, %v1362
    %v1416 = vpop.permute.xlu0 %1415
    %1417 = vset.pattern.permute.xlu0 0
    %1418 = vperm.xlu0 %1417, %v1363
    %v1419 = vpop.permute.xlu0 %1418
    %1420 = vset.pattern.permute.xlu0 0
    %1421 = vperm.xlu0 %1420, %v1364
    %v1422 = vpop.permute.xlu0 %1421
    %1423 = vset.pattern.permute.xlu0 0
    %1424 = vperm.xlu0 %1423, %v1365
    %v1425 = vpop.permute.xlu0 %1424
    %1426 = vset.pattern.permute.xlu0 0
    %1427 = vperm.xlu0 %1426, %v1366
    %v1428 = vpop.permute.xlu0 %1427
    %1429 = vset.pattern.permute.xlu0 0
    %1430 = vperm.xlu0 %1429, %v1367
    %v1431 = vpop.permute.xlu0 %1430
    %v1432 = vlaneseq
    %v1433 = vshrl.u32 %v1432, 7
    %v1434 = vsub.s32 %v1064, %v1433
    %v1435 = vrot.slane %v1386, %v1434
    %v1436 = vlaneseq
    %v1437 = vshrl.u32 %v1436, 7
    %v1438 = vsub.s32 %v1069, %v1437
    %v1439 = vrot.slane %v1389, %v1438
    %v1440 = vsel %vm1074, %v1439, %v1435
    %v1441 = vlaneseq
    %v1442 = vshrl.u32 %v1441, 7
    %v1443 = vsub.s32 %v1064, %v1442
    %v1444 = vrot.slane %v1392, %v1443
    %v1445 = vlaneseq
    %v1446 = vshrl.u32 %v1445, 7
    %v1447 = vsub.s32 %v1069, %v1446
    %v1448 = vrot.slane %v1395, %v1447
    %v1449 = vsel %vm1074, %v1448, %v1444
    %v1450 = vlaneseq
    %v1451 = vshrl.u32 %v1450, 7
    %v1452 = vsub.s32 %v1064, %v1451
    %v1453 = vrot.slane %v1398, %v1452
    %v1454 = vlaneseq
    %v1455 = vshrl.u32 %v1454, 7
    %v1456 = vsub.s32 %v1069, %v1455
    %v1457 = vrot.slane %v1401, %v1456
    %v1458 = vsel %vm1074, %v1457, %v1453
    %v1459 = vlaneseq
    %v1460 = vshrl.u32 %v1459, 7
    %v1461 = vsub.s32 %v1064, %v1460
    %v1462 = vrot.slane %v1404, %v1461
    %v1463 = vlaneseq
    %v1464 = vshrl.u32 %v1463, 7
    %v1465 = vsub.s32 %v1069, %v1464
    %v1466 = vrot.slane %v1407, %v1465
    %v1467 = vsel %vm1074, %v1466, %v1462
    %v1468 = vlaneseq
    %v1469 = vshrl.u32 %v1468, 7
    %v1470 = vsub.s32 %v1064, %v1469
    %v1471 = vrot.slane %v1410, %v1470
    %v1472 = vlaneseq
    %v1473 = vshrl.u32 %v1472, 7
    %v1474 = vsub.s32 %v1069, %v1473
    %v1475 = vrot.slane %v1413, %v1474
    %v1476 = vsel %vm1074, %v1475, %v1471
    %v1477 = vlaneseq
    %v1478 = vshrl.u32 %v1477, 7
    %v1479 = vsub.s32 %v1064, %v1478
    %v1480 = vrot.slane %v1416, %v1479
    %v1481 = vlaneseq
    %v1482 = vshrl.u32 %v1481, 7
    %v1483 = vsub.s32 %v1069, %v1482
    %v1484 = vrot.slane %v1419, %v1483
    %v1485 = vsel %vm1074, %v1484, %v1480
    %v1486 = vlaneseq
    %v1487 = vshrl.u32 %v1486, 7
    %v1488 = vsub.s32 %v1064, %v1487
    %v1489 = vrot.slane %v1422, %v1488
    %v1490 = vlaneseq
    %v1491 = vshrl.u32 %v1490, 7
    %v1492 = vsub.s32 %v1069, %v1491
    %v1493 = vrot.slane %v1425, %v1492
    %v1494 = vsel %vm1074, %v1493, %v1489
    %v1495 = vlaneseq
    %v1496 = vshrl.u32 %v1495, 7
    %v1497 = vsub.s32 %v1064, %v1496
    %v1498 = vrot.slane %v1428, %v1497
    %v1499 = vlaneseq
    %v1500 = vshrl.u32 %v1499, 7
    %v1501 = vsub.s32 %v1069, %v1500
    %v1502 = vrot.slane %v1431, %v1501
    %v1503 = vsel %vm1074, %v1502, %v1498
    %v1504 = vsel %vm1139, %v1449, %v1440
    %v1505 = vsel %vm1141, %v1458, %v1504
    %v1506 = vsel %vm1143, %v1467, %v1505
    %v1507 = vsel %vm1145, %v1476, %v1506
    %v1508 = vsel %vm1147, %v1485, %v1507
    %v1509 = vsel %vm1149, %v1494, %v1508
    %v1510 = vsel %vm1151, %v1503, %v1509
    %v1512 = vsel %vm1154, %v1510, 0.0
    %1513 = vadd.xlane.f32.xlu0 %v1512
    %v1514 = vpop.xlane.xlu0 %1513
    %v1515 = vsub.f32 0.0, %v1157
    %v1516 = vmul.f32 %v1515, 1.442695
    %v1517 = vpow.pop %v1516
    %v1518 = vmul.f32 %v1517, 1e-08
    %v1519 = vadd.f32 %v1514, %v1518
    %v1520 = vmax.f32 %v1519, 1e-30
    %v1521 = vrcp.pop %v1520
    %v1523 = vlaneseq
    %v1524 = vshrl.u32 %v1523, 7
    %v1525 = vsub.s32 0, %v1524
    %v1526 = vrot.slane %v1521, %v1525
    %v1527 = vlaneseq
    %v1528 = vshrl.u32 %v1527, 7
    %v1529 = vsub.s32 1, %v1528
    %v1530 = vrot.slane %v1521, %v1529
    %v1531 = vlaneseq
    %v1532 = vshrl.u32 %v1531, 7
    %v1533 = vsub.s32 2, %v1532
    %v1534 = vrot.slane %v1521, %v1533
    %v1535 = vlaneseq
    %v1536 = vshrl.u32 %v1535, 7
    %v1537 = vsub.s32 3, %v1536
    %v1538 = vrot.slane %v1521, %v1537
    %v1539 = vlaneseq
    %v1540 = vshrl.u32 %v1539, 7
    %v1541 = vsub.s32 4, %v1540
    %v1542 = vrot.slane %v1521, %v1541
    %v1543 = vlaneseq
    %v1544 = vshrl.u32 %v1543, 7
    %v1545 = vsub.s32 5, %v1544
    %v1546 = vrot.slane %v1521, %v1545
    %v1547 = vlaneseq
    %v1548 = vshrl.u32 %v1547, 7
    %v1549 = vsub.s32 6, %v1548
    %v1550 = vrot.slane %v1521, %v1549
    %v1551 = vlaneseq
    %v1552 = vshrl.u32 %v1551, 7
    %v1553 = vsub.s32 7, %v1552
    %v1554 = vrot.slane %v1521, %v1553
    %v1563 = vmul.f32 %v1352, %v1526
    %v1564 = vmul.f32 %v1353, %v1526
    %v1565 = vmul.f32 %v1354, %v1530
    %v1566 = vmul.f32 %v1355, %v1530
    %v1567 = vmul.f32 %v1356, %v1534
    %v1568 = vmul.f32 %v1357, %v1534
    %v1569 = vmul.f32 %v1358, %v1538
    %v1570 = vmul.f32 %v1359, %v1538
    %v1571 = vmul.f32 %v1360, %v1542
    %v1572 = vmul.f32 %v1361, %v1542
    %v1573 = vmul.f32 %v1362, %v1546
    %v1574 = vmul.f32 %v1363, %v1546
    %v1575 = vmul.f32 %v1364, %v1550
    %v1576 = vmul.f32 %v1365, %v1550
    %v1577 = vmul.f32 %v1366, %v1554
    %v1578 = vmul.f32 %v1367, %v1554
    %1580 = vset.pattern.permute.xlu0 0
    %1581 = vperm.xlu0 %1580, %v1563
    %v1582 = vpop.permute.xlu0 %1581
    %1585 = vset.pattern.permute.xlu0 0
    %1586 = vperm.xlu0 %1585, %v1564
    %v1587 = vpop.permute.xlu0 %1586
    %1590 = vset.pattern.permute.xlu0 0
    %1591 = vperm.xlu0 %1590, %v1565
    %v1592 = vpop.permute.xlu0 %1591
    %1595 = vset.pattern.permute.xlu0 0
    %1596 = vperm.xlu0 %1595, %v1566
    %v1597 = vpop.permute.xlu0 %1596
    %1600 = vset.pattern.permute.xlu0 0
    %1601 = vperm.xlu0 %1600, %v1567
    %v1602 = vpop.permute.xlu0 %1601
    %1605 = vset.pattern.permute.xlu0 0
    %1606 = vperm.xlu0 %1605, %v1568
    %v1607 = vpop.permute.xlu0 %1606
    %1610 = vset.pattern.permute.xlu0 0
    %1611 = vperm.xlu0 %1610, %v1569
    %v1612 = vpop.permute.xlu0 %1611
    %1615 = vset.pattern.permute.xlu0 0
    %1616 = vperm.xlu0 %1615, %v1570
    %v1617 = vpop.permute.xlu0 %1616
    %1620 = vset.pattern.permute.xlu0 0
    %1621 = vperm.xlu0 %1620, %v1571
    %v1622 = vpop.permute.xlu0 %1621
    %1625 = vset.pattern.permute.xlu0 0
    %1626 = vperm.xlu0 %1625, %v1572
    %v1627 = vpop.permute.xlu0 %1626
    %1630 = vset.pattern.permute.xlu0 0
    %1631 = vperm.xlu0 %1630, %v1573
    %v1632 = vpop.permute.xlu0 %1631
    %1635 = vset.pattern.permute.xlu0 0
    %1636 = vperm.xlu0 %1635, %v1574
    %v1637 = vpop.permute.xlu0 %1636
    %1640 = vset.pattern.permute.xlu0 0
    %1641 = vperm.xlu0 %1640, %v1575
    %v1642 = vpop.permute.xlu0 %1641
    %1645 = vset.pattern.permute.xlu0 0
    %1646 = vperm.xlu0 %1645, %v1576
    %v1647 = vpop.permute.xlu0 %1646
    %1650 = vset.pattern.permute.xlu0 0
    %1651 = vperm.xlu0 %1650, %v1577
    %v1652 = vpop.permute.xlu0 %1651
    %1655 = vset.pattern.permute.xlu0 0
    %1656 = vperm.xlu0 %1655, %v1578
    %v1657 = vpop.permute.xlu0 %1656
    %v1659 = vmul.f32 %v254, %v1582
    %v1660 = vmul.f32 %v255, %v1582
    %v1661 = vmul.f32 %v256, %v1582
    %v1662 = vmul.f32 %v257, %v1587
    %v1663 = vmul.f32 %v258, %v1587
    %v1664 = vmul.f32 %v259, %v1587
    %v1665 = vmul.f32 %v260, %v1592
    %v1666 = vmul.f32 %v261, %v1592
    %v1667 = vmul.f32 %v262, %v1592
    %v1668 = vmul.f32 %v263, %v1597
    %v1669 = vmul.f32 %v264, %v1597
    %v1670 = vmul.f32 %v265, %v1597
    %v1671 = vmul.f32 %v266, %v1602
    %v1672 = vmul.f32 %v267, %v1602
    %v1673 = vmul.f32 %v268, %v1602
    %v1674 = vmul.f32 %v269, %v1607
    %v1675 = vmul.f32 %v270, %v1607
    %v1676 = vmul.f32 %v271, %v1607
    %v1677 = vmul.f32 %v272, %v1612
    %v1678 = vmul.f32 %v273, %v1612
    %v1679 = vmul.f32 %v274, %v1612
    %v1680 = vmul.f32 %v275, %v1617
    %v1681 = vmul.f32 %v276, %v1617
    %v1682 = vmul.f32 %v277, %v1617
    %v1683 = vmul.f32 %v278, %v1622
    %v1684 = vmul.f32 %v279, %v1622
    %v1685 = vmul.f32 %v280, %v1622
    %v1686 = vmul.f32 %v281, %v1627
    %v1687 = vmul.f32 %v282, %v1627
    %v1688 = vmul.f32 %v283, %v1627
    %v1689 = vmul.f32 %v284, %v1632
    %v1690 = vmul.f32 %v285, %v1632
    %v1691 = vmul.f32 %v286, %v1632
    %v1692 = vmul.f32 %v287, %v1637
    %v1693 = vmul.f32 %v288, %v1637
    %v1694 = vmul.f32 %v289, %v1637
    %v1695 = vmul.f32 %v290, %v1642
    %v1696 = vmul.f32 %v291, %v1642
    %v1697 = vmul.f32 %v292, %v1642
    %v1698 = vmul.f32 %v293, %v1647
    %v1699 = vmul.f32 %v294, %v1647
    %v1700 = vmul.f32 %v295, %v1647
    %v1701 = vmul.f32 %v296, %v1652
    %v1702 = vmul.f32 %v297, %v1652
    %v1703 = vmul.f32 %v298, %v1652
    %v1704 = vmul.f32 %v299, %v1657
    %v1705 = vmul.f32 %v300, %v1657
    %v1706 = vmul.f32 %v301, %v1657
    %v1707 = vadd.f32 %v1659, %v1662
    %v1708 = vrot.slane %v1707, 4
    %v1709 = vadd.f32 %v1707, %v1708
    %v1710 = vrot.slane %v1709, 2
    %v1711 = vadd.f32 %v1709, %v1710
    %v1712 = vrot.slane %v1711, 1
    %v1713 = vadd.f32 %v1711, %v1712
    %v1714 = vadd.f32 %v1660, %v1663
    %v1715 = vrot.slane %v1714, 4
    %v1716 = vadd.f32 %v1714, %v1715
    %v1717 = vrot.slane %v1716, 2
    %v1718 = vadd.f32 %v1716, %v1717
    %v1719 = vrot.slane %v1718, 1
    %v1720 = vadd.f32 %v1718, %v1719
    %v1721 = vadd.f32 %v1661, %v1664
    %v1722 = vrot.slane %v1721, 4
    %v1723 = vadd.f32 %v1721, %v1722
    %v1724 = vrot.slane %v1723, 2
    %v1725 = vadd.f32 %v1723, %v1724
    %v1726 = vrot.slane %v1725, 1
    %v1727 = vadd.f32 %v1725, %v1726
    %v1728 = vadd.f32 %v1665, %v1668
    %v1729 = vrot.slane %v1728, 4
    %v1730 = vadd.f32 %v1728, %v1729
    %v1731 = vrot.slane %v1730, 2
    %v1732 = vadd.f32 %v1730, %v1731
    %v1733 = vrot.slane %v1732, 1
    %v1734 = vadd.f32 %v1732, %v1733
    %v1735 = vadd.f32 %v1666, %v1669
    %v1736 = vrot.slane %v1735, 4
    %v1737 = vadd.f32 %v1735, %v1736
    %v1738 = vrot.slane %v1737, 2
    %v1739 = vadd.f32 %v1737, %v1738
    %v1740 = vrot.slane %v1739, 1
    %v1741 = vadd.f32 %v1739, %v1740
    %v1742 = vadd.f32 %v1667, %v1670
    %v1743 = vrot.slane %v1742, 4
    %v1744 = vadd.f32 %v1742, %v1743
    %v1745 = vrot.slane %v1744, 2
    %v1746 = vadd.f32 %v1744, %v1745
    %v1747 = vrot.slane %v1746, 1
    %v1748 = vadd.f32 %v1746, %v1747
    %v1749 = vadd.f32 %v1671, %v1674
    %v1750 = vrot.slane %v1749, 4
    %v1751 = vadd.f32 %v1749, %v1750
    %v1752 = vrot.slane %v1751, 2
    %v1753 = vadd.f32 %v1751, %v1752
    %v1754 = vrot.slane %v1753, 1
    %v1755 = vadd.f32 %v1753, %v1754
    %v1756 = vadd.f32 %v1672, %v1675
    %v1757 = vrot.slane %v1756, 4
    %v1758 = vadd.f32 %v1756, %v1757
    %v1759 = vrot.slane %v1758, 2
    %v1760 = vadd.f32 %v1758, %v1759
    %v1761 = vrot.slane %v1760, 1
    %v1762 = vadd.f32 %v1760, %v1761
    %v1763 = vadd.f32 %v1673, %v1676
    %v1764 = vrot.slane %v1763, 4
    %v1765 = vadd.f32 %v1763, %v1764
    %v1766 = vrot.slane %v1765, 2
    %v1767 = vadd.f32 %v1765, %v1766
    %v1768 = vrot.slane %v1767, 1
    %v1769 = vadd.f32 %v1767, %v1768
    %v1770 = vadd.f32 %v1677, %v1680
    %v1771 = vrot.slane %v1770, 4
    %v1772 = vadd.f32 %v1770, %v1771
    %v1773 = vrot.slane %v1772, 2
    %v1774 = vadd.f32 %v1772, %v1773
    %v1775 = vrot.slane %v1774, 1
    %v1776 = vadd.f32 %v1774, %v1775
    %v1777 = vadd.f32 %v1678, %v1681
    %v1778 = vrot.slane %v1777, 4
    %v1779 = vadd.f32 %v1777, %v1778
    %v1780 = vrot.slane %v1779, 2
    %v1781 = vadd.f32 %v1779, %v1780
    %v1782 = vrot.slane %v1781, 1
    %v1783 = vadd.f32 %v1781, %v1782
    %v1784 = vadd.f32 %v1679, %v1682
    %v1785 = vrot.slane %v1784, 4
    %v1786 = vadd.f32 %v1784, %v1785
    %v1787 = vrot.slane %v1786, 2
    %v1788 = vadd.f32 %v1786, %v1787
    %v1789 = vrot.slane %v1788, 1
    %v1790 = vadd.f32 %v1788, %v1789
    %v1791 = vadd.f32 %v1683, %v1686
    %v1792 = vrot.slane %v1791, 4
    %v1793 = vadd.f32 %v1791, %v1792
    %v1794 = vrot.slane %v1793, 2
    %v1795 = vadd.f32 %v1793, %v1794
    %v1796 = vrot.slane %v1795, 1
    %v1797 = vadd.f32 %v1795, %v1796
    %v1798 = vadd.f32 %v1684, %v1687
    %v1799 = vrot.slane %v1798, 4
    %v1800 = vadd.f32 %v1798, %v1799
    %v1801 = vrot.slane %v1800, 2
    %v1802 = vadd.f32 %v1800, %v1801
    %v1803 = vrot.slane %v1802, 1
    %v1804 = vadd.f32 %v1802, %v1803
    %v1805 = vadd.f32 %v1685, %v1688
    %v1806 = vrot.slane %v1805, 4
    %v1807 = vadd.f32 %v1805, %v1806
    %v1808 = vrot.slane %v1807, 2
    %v1809 = vadd.f32 %v1807, %v1808
    %v1810 = vrot.slane %v1809, 1
    %v1811 = vadd.f32 %v1809, %v1810
    %v1812 = vadd.f32 %v1689, %v1692
    %v1813 = vrot.slane %v1812, 4
    %v1814 = vadd.f32 %v1812, %v1813
    %v1815 = vrot.slane %v1814, 2
    %v1816 = vadd.f32 %v1814, %v1815
    %v1817 = vrot.slane %v1816, 1
    %v1818 = vadd.f32 %v1816, %v1817
    %v1819 = vadd.f32 %v1690, %v1693
    %v1820 = vrot.slane %v1819, 4
    %v1821 = vadd.f32 %v1819, %v1820
    %v1822 = vrot.slane %v1821, 2
    %v1823 = vadd.f32 %v1821, %v1822
    %v1824 = vrot.slane %v1823, 1
    %v1825 = vadd.f32 %v1823, %v1824
    %v1826 = vadd.f32 %v1691, %v1694
    %v1827 = vrot.slane %v1826, 4
    %v1828 = vadd.f32 %v1826, %v1827
    %v1829 = vrot.slane %v1828, 2
    %v1830 = vadd.f32 %v1828, %v1829
    %v1831 = vrot.slane %v1830, 1
    %v1832 = vadd.f32 %v1830, %v1831
    %v1833 = vadd.f32 %v1695, %v1698
    %v1834 = vrot.slane %v1833, 4
    %v1835 = vadd.f32 %v1833, %v1834
    %v1836 = vrot.slane %v1835, 2
    %v1837 = vadd.f32 %v1835, %v1836
    %v1838 = vrot.slane %v1837, 1
    %v1839 = vadd.f32 %v1837, %v1838
    %v1840 = vadd.f32 %v1696, %v1699
    %v1841 = vrot.slane %v1840, 4
    %v1842 = vadd.f32 %v1840, %v1841
    %v1843 = vrot.slane %v1842, 2
    %v1844 = vadd.f32 %v1842, %v1843
    %v1845 = vrot.slane %v1844, 1
    %v1846 = vadd.f32 %v1844, %v1845
    %v1847 = vadd.f32 %v1697, %v1700
    %v1848 = vrot.slane %v1847, 4
    %v1849 = vadd.f32 %v1847, %v1848
    %v1850 = vrot.slane %v1849, 2
    %v1851 = vadd.f32 %v1849, %v1850
    %v1852 = vrot.slane %v1851, 1
    %v1853 = vadd.f32 %v1851, %v1852
    %v1854 = vadd.f32 %v1701, %v1704
    %v1855 = vrot.slane %v1854, 4
    %v1856 = vadd.f32 %v1854, %v1855
    %v1857 = vrot.slane %v1856, 2
    %v1858 = vadd.f32 %v1856, %v1857
    %v1859 = vrot.slane %v1858, 1
    %v1860 = vadd.f32 %v1858, %v1859
    %v1861 = vadd.f32 %v1702, %v1705
    %v1862 = vrot.slane %v1861, 4
    %v1863 = vadd.f32 %v1861, %v1862
    %v1864 = vrot.slane %v1863, 2
    %v1865 = vadd.f32 %v1863, %v1864
    %v1866 = vrot.slane %v1865, 1
    %v1867 = vadd.f32 %v1865, %v1866
    %v1868 = vadd.f32 %v1703, %v1706
    %v1869 = vrot.slane %v1868, 4
    %v1870 = vadd.f32 %v1868, %v1869
    %v1871 = vrot.slane %v1870, 2
    %v1872 = vadd.f32 %v1870, %v1871
    %v1873 = vrot.slane %v1872, 1
    %v1874 = vadd.f32 %v1872, %v1873
    %v1875 = vpack.c.bf16 %v1713, %v1713
    %v1876 = vpack.c.bf16 %v1720, %v1720
    %v1877 = vpack.c.bf16 %v1727, %v1727
    %v1878 = vpack.c.bf16 %v1734, %v1734
    %v1879 = vpack.c.bf16 %v1741, %v1741
    %v1880 = vpack.c.bf16 %v1748, %v1748
    %v1881 = vpack.c.bf16 %v1755, %v1755
    %v1882 = vpack.c.bf16 %v1762, %v1762
    %v1883 = vpack.c.bf16 %v1769, %v1769
    %v1884 = vpack.c.bf16 %v1776, %v1776
    %v1885 = vpack.c.bf16 %v1783, %v1783
    %v1886 = vpack.c.bf16 %v1790, %v1790
    %v1887 = vpack.c.bf16 %v1797, %v1797
    %v1888 = vpack.c.bf16 %v1804, %v1804
    %v1889 = vpack.c.bf16 %v1811, %v1811
    %v1890 = vpack.c.bf16 %v1818, %v1818
    %v1891 = vpack.c.bf16 %v1825, %v1825
    %v1892 = vpack.c.bf16 %v1832, %v1832
    %v1893 = vpack.c.bf16 %v1839, %v1839
    %v1894 = vpack.c.bf16 %v1846, %v1846
    %v1895 = vpack.c.bf16 %v1853, %v1853
    %v1896 = vpack.c.bf16 %v1860, %v1860
    %v1897 = vpack.c.bf16 %v1867, %v1867
    %v1898 = vpack.c.bf16 %v1874, %v1874
    %v1899 = vld [vmem:[%s13] sm:$0xf]
    %v1900 = vld [vmem:[%s13 + $0x4] sm:$0xf]
    %v1901 = vld [vmem:[%s13 + $0x8] sm:$0xf]
    %v1902 = vld [vmem:[%s13 + $0xc] sm:$0xf]
    %v1903 = vld [vmem:[%s13 + $0x10] sm:$0xf]
    %v1904 = vld [vmem:[%s13 + $0x14] sm:$0xf]
    %v1905 = vld [vmem:[%s13 + $0x18] sm:$0xf]
    %v1906 = vld [vmem:[%s13 + $0x1c] sm:$0xf]
    %v1907 = vld [vmem:[%s13 + $0x20] sm:$0xf]
    %v1908 = vld [vmem:[%s13 + $0x24] sm:$0xf]
    %v1909 = vld [vmem:[%s13 + $0x28] sm:$0xf]
    %v1910 = vld [vmem:[%s13 + $0x2c] sm:$0xf]
    %v1911 = vld [vmem:[%s13 + $0x30] sm:$0xf]
    %v1912 = vld [vmem:[%s13 + $0x34] sm:$0xf]
    %v1913 = vld [vmem:[%s13 + $0x38] sm:$0xf]
    %v1914 = vld [vmem:[%s13 + $0x3c] sm:$0xf]
    %v1915 = vld [vmem:[%s13 + $0x40] sm:$0xf]
    %v1916 = vld [vmem:[%s13 + $0x44] sm:$0xf]
    %v1917 = vld [vmem:[%s13 + $0x48] sm:$0xf]
    %v1918 = vld [vmem:[%s13 + $0x4c] sm:$0xf]
    %v1919 = vld [vmem:[%s13 + $0x50] sm:$0xf]
    %v1920 = vld [vmem:[%s13 + $0x54] sm:$0xf]
    %v1921 = vld [vmem:[%s13 + $0x58] sm:$0xf]
    %v1922 = vld [vmem:[%s13 + $0x5c] sm:$0xf]
    %v1923 = vld [vmem:[%s13 + $0x60] sm:$0xf]
    %v1924 = vld [vmem:[%s13 + $0x64] sm:$0xf]
    %v1925 = vld [vmem:[%s13 + $0x68] sm:$0xf]
    %v1926 = vld [vmem:[%s13 + $0x6c] sm:$0xf]
    %v1927 = vld [vmem:[%s13 + $0x70] sm:$0xf]
    %v1928 = vld [vmem:[%s13 + $0x74] sm:$0xf]
    %v1929 = vld [vmem:[%s13 + $0x78] sm:$0xf]
    %v1930 = vld [vmem:[%s13 + $0x7c] sm:$0xf]
    %v1931 = vld [vmem:[%s13 + $0x80] sm:$0xf]
    %v1932 = vld [vmem:[%s13 + $0x84] sm:$0xf]
    %v1933 = vld [vmem:[%s13 + $0x88] sm:$0xf]
    %v1934 = vld [vmem:[%s13 + $0x8c] sm:$0xf]
    %v1935 = vld [vmem:[%s13 + $0x90] sm:$0xf]
    %v1936 = vld [vmem:[%s13 + $0x94] sm:$0xf]
    %v1937 = vld [vmem:[%s13 + $0x98] sm:$0xf]
    %v1938 = vld [vmem:[%s13 + $0x9c] sm:$0xf]
    %v1939 = vld [vmem:[%s13 + $0xa0] sm:$0xf]
    %v1940 = vld [vmem:[%s13 + $0xa4] sm:$0xf]
    %v1941 = vld [vmem:[%s13 + $0xa8] sm:$0xf]
    %v1942 = vld [vmem:[%s13 + $0xac] sm:$0xf]
    %v1943 = vld [vmem:[%s13 + $0xb0] sm:$0xf]
    %v1944 = vld [vmem:[%s13 + $0xb4] sm:$0xf]
    %v1945 = vld [vmem:[%s13 + $0xb8] sm:$0xf]
    %v1946 = vld [vmem:[%s13 + $0xbc] sm:$0xf]
    %v1947 = vld [vmem:[%s15] sm:$0x1]
    %v1949 = vlaneseq
    %v1950 = vshrl.u32 %v1949, 7
    %v1951 = vsub.s32 0, %v1950
    %v1952 = vrot.slane %v1947, %v1951
    %v1978 = vunpack.c.l.b16 %v1875
    %v1979 = vunpack.c.l.b16 %v1876
    %v1980 = vunpack.c.l.b16 %v1877
    %v1981 = vunpack.c.l.b16 %v1878
    %v1982 = vunpack.c.l.b16 %v1879
    %v1983 = vunpack.c.l.b16 %v1880
    %v1984 = vunpack.c.l.b16 %v1881
    %v1985 = vunpack.c.l.b16 %v1882
    %v1986 = vunpack.c.l.b16 %v1883
    %v1987 = vunpack.c.l.b16 %v1884
    %v1988 = vunpack.c.l.b16 %v1885
    %v1989 = vunpack.c.l.b16 %v1886
    %v1990 = vunpack.c.l.b16 %v1887
    %v1991 = vunpack.c.l.b16 %v1888
    %v1992 = vunpack.c.l.b16 %v1889
    %v1993 = vunpack.c.l.b16 %v1890
    %v1994 = vunpack.c.l.b16 %v1891
    %v1995 = vunpack.c.l.b16 %v1892
    %v1996 = vunpack.c.l.b16 %v1893
    %v1997 = vunpack.c.l.b16 %v1894
    %v1998 = vunpack.c.l.b16 %v1895
    %v1999 = vunpack.c.l.b16 %v1896
    %v2000 = vunpack.c.l.b16 %v1897
    %v2001 = vunpack.c.l.b16 %v1898
    %v2002 = vsel %vm1139, %v1981, %v1978
    %v2003 = vsel %vm1141, %v1984, %v2002
    %v2004 = vsel %vm1143, %v1987, %v2003
    %v2005 = vsel %vm1145, %v1990, %v2004
    %v2006 = vsel %vm1147, %v1993, %v2005
    %v2007 = vsel %vm1149, %v1996, %v2006
    %v2008 = vsel %vm1151, %v1999, %v2007
    %v2009 = vsel %vm1139, %v1982, %v1979
    %v2010 = vsel %vm1141, %v1985, %v2009
    %v2011 = vsel %vm1143, %v1988, %v2010
    %v2012 = vsel %vm1145, %v1991, %v2011
    %v2013 = vsel %vm1147, %v1994, %v2012
    %v2014 = vsel %vm1149, %v1997, %v2013
    %v2015 = vsel %vm1151, %v2000, %v2014
    %v2016 = vsel %vm1139, %v1983, %v1980
    %v2017 = vsel %vm1141, %v1986, %v2016
    %v2018 = vsel %vm1143, %v1989, %v2017
    %v2019 = vsel %vm1145, %v1992, %v2018
    %v2020 = vsel %vm1147, %v1995, %v2019
    %v2021 = vsel %vm1149, %v1998, %v2020
    %v2022 = vsel %vm1151, %v2001, %v2021
    %v2023 = vpack.c.b16 %v2008, %v2008
    %v2024 = vpack.c.b16 %v2015, %v2015
    %v2025 = vpack.c.b16 %v2022, %v2022
    %v2077 = vunpack.c.l.b16 %v1899
    %v2078 = vunpack.c.l.b16 %v1900
    %v2079 = vunpack.c.l.b16 %v1901
    %v2080 = vunpack.c.l.b16 %v1902
    %v2081 = vunpack.c.l.b16 %v1903
    %v2082 = vunpack.c.l.b16 %v1904
    %v2083 = vunpack.c.l.b16 %v1905
    %v2084 = vunpack.c.l.b16 %v1906
    %v2085 = vunpack.c.l.b16 %v1907
    %v2086 = vunpack.c.l.b16 %v1908
    %v2087 = vunpack.c.l.b16 %v1909
    %v2088 = vunpack.c.l.b16 %v1910
    %v2089 = vunpack.c.l.b16 %v1911
    %v2090 = vunpack.c.l.b16 %v1912
    %v2091 = vunpack.c.l.b16 %v1913
    %v2092 = vunpack.c.l.b16 %v1914
    %v2093 = vunpack.c.l.b16 %v1915
    %v2094 = vunpack.c.l.b16 %v1916
    %v2095 = vunpack.c.l.b16 %v1917
    %v2096 = vunpack.c.l.b16 %v1918
    %v2097 = vunpack.c.l.b16 %v1919
    %v2098 = vunpack.c.l.b16 %v1920
    %v2099 = vunpack.c.l.b16 %v1921
    %v2100 = vunpack.c.l.b16 %v1922
    %v2101 = vunpack.c.l.b16 %v1923
    %v2102 = vunpack.c.l.b16 %v1924
    %v2103 = vunpack.c.l.b16 %v1925
    %v2104 = vunpack.c.l.b16 %v1926
    %v2105 = vunpack.c.l.b16 %v1927
    %v2106 = vunpack.c.l.b16 %v1928
    %v2107 = vunpack.c.l.b16 %v1929
    %v2108 = vunpack.c.l.b16 %v1930
    %v2109 = vunpack.c.l.b16 %v1931
    %v2110 = vunpack.c.l.b16 %v1932
    %v2111 = vunpack.c.l.b16 %v1933
    %v2112 = vunpack.c.l.b16 %v1934
    %v2113 = vunpack.c.l.b16 %v1935
    %v2114 = vunpack.c.l.b16 %v1936
    %v2115 = vunpack.c.l.b16 %v1937
    %v2116 = vunpack.c.l.b16 %v1938
    %v2117 = vunpack.c.l.b16 %v1939
    %v2118 = vunpack.c.l.b16 %v1940
    %v2119 = vunpack.c.l.b16 %v1941
    %v2120 = vunpack.c.l.b16 %v1942
    %v2121 = vunpack.c.l.b16 %v1943
    %v2122 = vunpack.c.l.b16 %v1944
    %v2123 = vunpack.c.l.b16 %v1945
    %v2124 = vunpack.c.l.b16 %v1946
    %v2125 = vpack.c.b16 %v2078, %v2077
    %v2126 = vpack.c.b16 %v2080, %v2079
    %v2127 = vpack.c.b16 %v2082, %v2081
    %v2128 = vpack.c.b16 %v2084, %v2083
    %v2129 = vpack.c.b16 %v2086, %v2085
    %v2130 = vpack.c.b16 %v2088, %v2087
    %v2131 = vpack.c.b16 %v2090, %v2089
    %v2132 = vpack.c.b16 %v2092, %v2091
    %v2133 = vpack.c.b16 %v2094, %v2093
    %v2134 = vpack.c.b16 %v2096, %v2095
    %v2135 = vpack.c.b16 %v2098, %v2097
    %v2136 = vpack.c.b16 %v2100, %v2099
    %v2137 = vpack.c.b16 %v2102, %v2101
    %v2138 = vpack.c.b16 %v2104, %v2103
    %v2139 = vpack.c.b16 %v2106, %v2105
    %v2140 = vpack.c.b16 %v2108, %v2107
    %v2141 = vpack.c.b16 %v2110, %v2109
    %v2142 = vpack.c.b16 %v2112, %v2111
    %v2143 = vpack.c.b16 %v2114, %v2113
    %v2144 = vpack.c.b16 %v2116, %v2115
    %v2145 = vpack.c.b16 %v2118, %v2117
    %v2146 = vpack.c.b16 %v2120, %v2119
    %v2147 = vpack.c.b16 %v2122, %v2121
    %v2148 = vpack.c.b16 %v2124, %v2123
    %2173 = vmatprep.subr.bf16.mxu0 0
    %2174 = vmatpush1.bf16.msra.mxu0 %v2125
    %2175 = vmatprep.subr.bf16.mxu0 0
    %2176 = vmatpush1.bf16.msra.mxu0 %v2126
    %2177 = vmatprep.subr.bf16.mxu0 0
    %2178 = vmatpush1.bf16.msra.mxu0 %v2127
    %2179 = vmatprep.subr.bf16.mxu0 0
    %2180 = vmatpush1.bf16.msra.mxu0 %v2128
    %2181 = vmatprep.subr.bf16.mxu0 0
    %2182 = vmatpush1.bf16.msra.mxu0 %v2129
    %2183 = vmatprep.subr.bf16.mxu0 0
    %2184 = vmatpush1.bf16.msra.mxu0 %v2130
    %2185 = vmatprep.subr.bf16.mxu0 0
    %2186 = vmatpush1.bf16.msra.mxu0 %v2131
    %2187 = vmatprep.subr.bf16.mxu0 0
    %2188 = vmatpush1.bf16.msra.mxu0 %v2132
    %2189 = vmatprep.subr.bf16.mxu0 0
    %2190 = vmatpush1.bf16.msra.mxu0 %v2133
    %2191 = vmatprep.subr.bf16.mxu0 0
    %2192 = vmatpush1.bf16.msra.mxu0 %v2134
    %2193 = vmatprep.subr.bf16.mxu0 0
    %2194 = vmatpush1.bf16.msra.mxu0 %v2135
    %2195 = vmatprep.subr.bf16.mxu0 0
    %2196 = vmatpush1.bf16.msra.mxu0 %v2136
    %2197 = vmatprep.subr.bf16.mxu0 0
    %2198 = vmatpush1.bf16.msra.mxu0 %v2137
    %2199 = vmatprep.subr.bf16.mxu0 0
    %2200 = vmatpush1.bf16.msra.mxu0 %v2138
    %2201 = vmatprep.subr.bf16.mxu0 0
    %2202 = vmatpush1.bf16.msra.mxu0 %v2139
    %2203 = vmatprep.subr.bf16.mxu0 0
    %2204 = vmatpush1.bf16.msra.mxu0 %v2140
    %2205 = vmatprep.mubr.bf16.mxu0 %v2024
    %2206 = vmatmul.mubr.bf16.gmra.mrb[0].mxu0 %v2023
    %v2207 = vpop.f32.mrb[0].mxu0
    %v2208 = vadd.f32 %v1952, %v2207
    %v2209 = vpop.f32.mrb[0].mxu0
    %v2210 = vpop.f32.mrb[0].mxu0
    %v2211 = vpop.f32.mrb[0].mxu0
    %2212 = vdwg.mxu0
    %2213 = vmatprep.subr.bf16.mxu0 0
    %2214 = vmatpush1.bf16.msra.mxu0 %v2141
    %2215 = vmatprep.subr.bf16.mxu0 0
    %2216 = vmatpush1.bf16.msra.mxu0 %v2142
    %2217 = vmatprep.subr.bf16.mxu0 0
    %2218 = vmatpush1.bf16.msra.mxu0 %v2143
    %2219 = vmatprep.subr.bf16.mxu0 0
    %2220 = vmatpush1.bf16.msra.mxu0 %v2144
    %2221 = vmatprep.subr.bf16.mxu0 0
    %2222 = vmatpush1.bf16.msra.mxu0 %v2145
    %2223 = vmatprep.subr.bf16.mxu0 0
    %2224 = vmatpush1.bf16.msra.mxu0 %v2146
    %2225 = vmatprep.subr.bf16.mxu0 0
    %2226 = vmatpush1.bf16.msra.mxu0 %v2147
    %2227 = vmatprep.subr.bf16.mxu0 0
    %2228 = vmatpush1.bf16.msra.mxu0 %v2148
    %2229 = vmatprep.subr.bf16.mxu0 0
    %2230 = vmatpush1.bf16.msra.mxu0 0
    %2231 = vmatprep.subr.bf16.mxu0 0
    %2232 = vmatpush1.bf16.msra.mxu0 0
    %2233 = vmatprep.subr.bf16.mxu0 0
    %2234 = vmatpush1.bf16.msra.mxu0 0
    %2235 = vmatprep.subr.bf16.mxu0 0
    %2236 = vmatpush1.bf16.msra.mxu0 0
    %2237 = vmatprep.subr.bf16.mxu0 0
    %2238 = vmatpush1.bf16.msra.mxu0 0
    %2239 = vmatprep.subr.bf16.mxu0 0
    %2240 = vmatpush1.bf16.msra.mxu0 0
    %2241 = vmatprep.subr.bf16.mxu0 0
    %2242 = vmatpush1.bf16.msra.mxu0 0
    %2243 = vmatprep.subr.bf16.mxu0 0
    %2244 = vmatpush1.bf16.msra.mxu0 0
    %2245 = vmatprep.mubr.bf16.mxu0 0
    %2246 = vmatmul.mubr.bf16.gmra.mrb[0].mxu0 %v2025
    %v2247 = vpop.f32.mrb[0].mxu0
    %v2248 = vadd.f32 %v2208, %v2247
    %v2249 = vpop.f32.mrb[0].mxu0
    %v2250 = vpop.f32.mrb[0].mxu0
    %v2251 = vpop.f32.mrb[0].mxu0
    %2252 = vdwg.mxu0
    %v2253 = vld [vmem:[%s17] sm:$0xff]
    %v2254 = vld [vmem:[%s17 + $0x8] sm:$0xff]
    %v2255 = vld [vmem:[%s17 + $0x10] sm:$0xff]
    %v2256 = vld [vmem:[%s17 + $0x18] sm:$0xff]
    %v2257 = vld [vmem:[%s17 + $0x20] sm:$0xff]
    %v2258 = vld [vmem:[%s17 + $0x28] sm:$0xff]
    %v2259 = vld [vmem:[%s17 + $0x30] sm:$0xff]
    %v2260 = vld [vmem:[%s17 + $0x38] sm:$0xff]
    %v2261 = vld [vmem:[%s19] sm:$0xff]
    %v2262 = vld [vmem:[%s21] sm:$0xff]
    %v2263 = vld [vmem:[%s21 + $0x8] sm:$0xff]
    %v2264 = vld [vmem:[%s21 + $0x10] sm:$0xff]
    %v2265 = vld [vmem:[%s21 + $0x18] sm:$0xff]
    %v2266 = vld [vmem:[%s21 + $0x20] sm:$0xff]
    %v2267 = vld [vmem:[%s21 + $0x28] sm:$0xff]
    %v2268 = vld [vmem:[%s21 + $0x30] sm:$0xff]
    %v2269 = vld [vmem:[%s21 + $0x38] sm:$0xff]
    %v2270 = vld [vmem:[%s23] sm:$0x1]
    %v2271 = vld [vmem:[%s25] sm:$0x1]
    %v2273 = vlaneseq
    %v2274 = vshrl.u32 %v2273, 7
    %v2275 = vsub.s32 0, %v2274
    %v2276 = vrot.slane %v2270, %v2275
    %vm2278 = vcmask 523264
    %v2280 = vsel %vm2278, %v2253, 0
    %v2283 = vsel %vm2278, %v2254, 0
    %v2286 = vsel %vm2278, %v2255, 0
    %v2289 = vsel %vm2278, %v2256, 0
    %v2292 = vsel %vm2278, %v2257, 0
    %v2295 = vsel %vm2278, %v2258, 0
    %v2298 = vsel %vm2278, %v2259, 0
    %v2301 = vsel %vm2278, %v2260, 0
    %2303 = vmatprep.subr.mxu0 0.0
    %2304 = vmatpush1.msra.mxu0 %v2262
    %2305 = vmatprep.subr.mxu0 0.0
    %2306 = vmatpush1.msra.mxu0 %v2263
    %2307 = vmatprep.subr.mxu0 0.0
    %2308 = vmatpush1.msra.mxu0 %v2264
    %2309 = vmatprep.subr.mxu0 0.0
    %2310 = vmatpush1.msra.mxu0 %v2265
    %2311 = vmatprep.subr.mxu0 0.0
    %2312 = vmatpush1.msra.mxu0 %v2266
    %2313 = vmatprep.subr.mxu0 0.0
    %2314 = vmatpush1.msra.mxu0 %v2267
    %2315 = vmatprep.subr.mxu0 0.0
    %2316 = vmatpush1.msra.mxu0 %v2268
    %2317 = vmatprep.subr.mxu0 0.0
    %2318 = vmatpush1.msra.mxu0 %v2269
    %2319 = vmatprep.subr.mxu0 0.0
    %2320 = vmatpush1.msra.mxu0 0.0
    %2321 = vmatprep.subr.mxu0 0.0
    %2322 = vmatpush1.msra.mxu0 0.0
    %2323 = vmatprep.subr.mxu0 0.0
    %2324 = vmatpush1.msra.mxu0 0.0
    %2325 = vmatprep.subr.mxu0 0.0
    %2326 = vmatpush1.msra.mxu0 0.0
    %2327 = vmatprep.subr.mxu0 0.0
    %2328 = vmatpush1.msra.mxu0 0.0
    %2329 = vmatprep.subr.mxu0 0.0
    %2330 = vmatpush1.msra.mxu0 0.0
    %2331 = vmatprep.subr.mxu0 0.0
    %2332 = vmatpush1.msra.mxu0 0.0
    %2333 = vmatprep.subr.mxu0 0.0
    %2334 = vmatpush1.msra.mxu0 0.0
    %2335 = vmatprep.subr.mxu0 0.0
    %2336 = vmatpush1.msra.mxu0 0.0
    %2337 = vmatprep.subr.mxu0 0.0
    %2338 = vmatpush1.msra.mxu0 0.0
    %2339 = vmatprep.subr.mxu0 0.0
    %2340 = vmatpush1.msra.mxu0 0.0
    %2341 = vmatprep.subr.mxu0 0.0
    %2342 = vmatpush1.msra.mxu0 0.0
    %2343 = vmatprep.subr.mxu0 0.0
    %2344 = vmatpush1.msra.mxu0 0.0
    %2345 = vmatprep.subr.mxu0 0.0
    %2346 = vmatpush1.msra.mxu0 0.0
    %2347 = vmatprep.subr.mxu0 0.0
    %2348 = vmatpush1.msra.mxu0 0.0
    %2349 = vmatprep.subr.mxu0 0.0
    %2350 = vmatpush1.msra.mxu0 0.0
    %2351 = vmatprep.subr.mxu0 0.0
    %2352 = vmatpush1.msra.mxu0 0.0
    %2353 = vmatprep.subr.mxu0 0.0
    %2354 = vmatpush1.msra.mxu0 0.0
    %2355 = vmatprep.subr.mxu0 0.0
    %2356 = vmatpush1.msra.mxu0 0.0
    %2357 = vmatprep.subr.mxu0 0.0
    %2358 = vmatpush1.msra.mxu0 0.0
    %2359 = vmatprep.subr.mxu0 0.0
    %2360 = vmatpush1.msra.mxu0 0.0
    %2361 = vmatprep.subr.mxu0 0.0
    %2362 = vmatpush1.msra.mxu0 0.0
    %2363 = vmatprep.subr.mxu0 0.0
    %2364 = vmatpush1.msra.mxu0 0.0
    %2365 = vmatprep.subr.mxu0 0.0
    %2366 = vmatpush1.msra.mxu0 0.0
    %2367 = vmatprep.mubr.f32.mxu0 0.0
    %2368 = vmatmul.mubr.f32.gmra.mrb[0].mxu0 %v2280
    %v2369 = vpop.f32.mrb[0].mxu0
    %v2370 = vadd.f32 %v2276, %v2369
    %v2371 = vpop.f32.mrb[0].mxu0
    %2372 = vmatprep.mubr.f32.mxu0 0.0
    %2373 = vmatmul.mubr.f32.gmra.mrb[0].mxu0 %v2283
    %v2374 = vpop.f32.mrb[0].mxu0
    %v2375 = vadd.f32 %v2276, %v2374
    %v2376 = vpop.f32.mrb[0].mxu0
    %2377 = vmatprep.mubr.f32.mxu0 0.0
    %2378 = vmatmul.mubr.f32.gmra.mrb[0].mxu0 %v2286
    %v2379 = vpop.f32.mrb[0].mxu0
    %v2380 = vadd.f32 %v2276, %v2379
    %v2381 = vpop.f32.mrb[0].mxu0
    %2382 = vmatprep.mubr.f32.mxu0 0.0
    %2383 = vmatmul.mubr.f32.gmra.mrb[0].mxu0 %v2289
    %v2384 = vpop.f32.mrb[0].mxu0
    %v2385 = vadd.f32 %v2276, %v2384
    %v2386 = vpop.f32.mrb[0].mxu0
    %2387 = vmatprep.mubr.f32.mxu0 0.0
    %2388 = vmatmul.mubr.f32.gmra.mrb[0].mxu0 %v2292
    %v2389 = vpop.f32.mrb[0].mxu0
    %v2390 = vadd.f32 %v2276, %v2389
    %v2391 = vpop.f32.mrb[0].mxu0
    %2392 = vmatprep.mubr.f32.mxu0 0.0
    %2393 = vmatmul.mubr.f32.gmra.mrb[0].mxu0 %v2295
    %v2394 = vpop.f32.mrb[0].mxu0
    %v2395 = vadd.f32 %v2276, %v2394
    %v2396 = vpop.f32.mrb[0].mxu0
    %2397 = vmatprep.mubr.f32.mxu0 0.0
    %2398 = vmatmul.mubr.f32.gmra.mrb[0].mxu0 %v2298
    %v2399 = vpop.f32.mrb[0].mxu0
    %v2400 = vadd.f32 %v2276, %v2399
    %v2401 = vpop.f32.mrb[0].mxu0
    %2402 = vmatprep.mubr.f32.mxu0 0.0
    %2403 = vmatmul.mubr.f32.gmra.mrb[0].mxu0 %v2301
    %v2404 = vpop.f32.mrb[0].mxu0
    %v2405 = vadd.f32 %v2276, %v2404
    %v2406 = vpop.f32.mrb[0].mxu0
    %2407 = vdwg.mxu0
    %v2408 = vtanh.pop %v2370
    %v2409 = vtanh.pop %v2375
    %v2410 = vtanh.pop %v2380
    %v2411 = vtanh.pop %v2385
    %v2412 = vtanh.pop %v2390
    %v2413 = vtanh.pop %v2395
    %v2414 = vtanh.pop %v2400
    %v2415 = vtanh.pop %v2405
    %v2417 = vlaneseq
    %v2418 = vshrl.u32 %v2417, 7
    %v2419 = vsub.s32 0, %v2418
    %v2420 = vrot.slane %v2271, %v2419
    %v2422 = vmul.f32 %v2408, %v2420
    %v2423 = vmul.f32 %v2409, %v2420
    %v2424 = vmul.f32 %v2410, %v2420
    %v2425 = vmul.f32 %v2411, %v2420
    %v2426 = vmul.f32 %v2412, %v2420
    %v2427 = vmul.f32 %v2413, %v2420
    %v2428 = vmul.f32 %v2414, %v2420
    %v2429 = vmul.f32 %v2415, %v2420
    %2430 = vadd.xlane.f32.xlu0 %v2422
    %v2431 = vpop.xlane.xlu0 %2430
    %2432 = vadd.xlane.f32.xlu0 %v2423
    %v2433 = vpop.xlane.xlu0 %2432
    %2434 = vadd.xlane.f32.xlu0 %v2424
    %v2435 = vpop.xlane.xlu0 %2434
    %2436 = vadd.xlane.f32.xlu0 %v2425
    %v2437 = vpop.xlane.xlu0 %2436
    %2438 = vadd.xlane.f32.xlu0 %v2426
    %v2439 = vpop.xlane.xlu0 %2438
    %2440 = vadd.xlane.f32.xlu0 %v2427
    %v2441 = vpop.xlane.xlu0 %2440
    %2442 = vadd.xlane.f32.xlu0 %v2428
    %v2443 = vpop.xlane.xlu0 %2442
    %2444 = vadd.xlane.f32.xlu0 %v2429
    %v2445 = vpop.xlane.xlu0 %2444
    %v2446 = vstv %s169
    %v2447 = vadd.f32 %v2431, %v2446
    %v2448 = vadd.f32 %v2433, %v2446
    %v2449 = vadd.f32 %v2435, %v2446
    %v2450 = vadd.f32 %v2437, %v2446
    %v2451 = vadd.f32 %v2439, %v2446
    %v2452 = vadd.f32 %v2441, %v2446
    %v2453 = vadd.f32 %v2443, %v2446
    %v2454 = vadd.f32 %v2445, %v2446
    %v2463 = vlaneseq
    %v2464 = vshrl.u32 %v2463, 7
    %v2465 = vsub.s32 %v1064, %v2464
    %v2466 = vrot.slane %v2447, %v2465
    %v2467 = vlaneseq
    %v2468 = vshrl.u32 %v2467, 7
    %v2469 = vsub.s32 %v1064, %v2468
    %v2470 = vrot.slane %v2448, %v2469
    %v2471 = vlaneseq
    %v2472 = vshrl.u32 %v2471, 7
    %v2473 = vsub.s32 %v1064, %v2472
    %v2474 = vrot.slane %v2449, %v2473
    %v2475 = vlaneseq
    %v2476 = vshrl.u32 %v2475, 7
    %v2477 = vsub.s32 %v1064, %v2476
    %v2478 = vrot.slane %v2450, %v2477
    %v2479 = vlaneseq
    %v2480 = vshrl.u32 %v2479, 7
    %v2481 = vsub.s32 %v1064, %v2480
    %v2482 = vrot.slane %v2451, %v2481
    %v2483 = vlaneseq
    %v2484 = vshrl.u32 %v2483, 7
    %v2485 = vsub.s32 %v1064, %v2484
    %v2486 = vrot.slane %v2452, %v2485
    %v2487 = vlaneseq
    %v2488 = vshrl.u32 %v2487, 7
    %v2489 = vsub.s32 %v1064, %v2488
    %v2490 = vrot.slane %v2453, %v2489
    %v2491 = vlaneseq
    %v2492 = vshrl.u32 %v2491, 7
    %v2493 = vsub.s32 %v1064, %v2492
    %v2494 = vrot.slane %v2454, %v2493
    %v2495 = vsel %vm1139, %v2470, %v2466
    %v2496 = vsel %vm1141, %v2474, %v2495
    %v2497 = vsel %vm1143, %v2478, %v2496
    %v2498 = vsel %vm1145, %v2482, %v2497
    %v2499 = vsel %vm1147, %v2486, %v2498
    %v2500 = vsel %vm1149, %v2490, %v2499
    %v2501 = vsel %vm1151, %v2494, %v2500
    %vm2503 = vcmask 64512
    %v2504 = vsel %vm2503, %v2501, -inf
    %2505 = vmax.xlane.f32.xlu0 %v2504
    %v2506 = vpop.xlane.xlu0 %2505
    %v2508 = vlaneseq
    %v2509 = vshrl.u32 %v2508, 7
    %v2510 = vsub.s32 0, %v2509
    %v2511 = vrot.slane %v2506, %v2510
    %v2512 = vlaneseq
    %v2513 = vshrl.u32 %v2512, 7
    %v2514 = vsub.s32 1, %v2513
    %v2515 = vrot.slane %v2506, %v2514
    %v2516 = vlaneseq
    %v2517 = vshrl.u32 %v2516, 7
    %v2518 = vsub.s32 2, %v2517
    %v2519 = vrot.slane %v2506, %v2518
    %v2520 = vlaneseq
    %v2521 = vshrl.u32 %v2520, 7
    %v2522 = vsub.s32 3, %v2521
    %v2523 = vrot.slane %v2506, %v2522
    %v2524 = vlaneseq
    %v2525 = vshrl.u32 %v2524, 7
    %v2526 = vsub.s32 4, %v2525
    %v2527 = vrot.slane %v2506, %v2526
    %v2528 = vlaneseq
    %v2529 = vshrl.u32 %v2528, 7
    %v2530 = vsub.s32 5, %v2529
    %v2531 = vrot.slane %v2506, %v2530
    %v2532 = vlaneseq
    %v2533 = vshrl.u32 %v2532, 7
    %v2534 = vsub.s32 6, %v2533
    %v2535 = vrot.slane %v2506, %v2534
    %v2536 = vlaneseq
    %v2537 = vshrl.u32 %v2536, 7
    %v2538 = vsub.s32 7, %v2537
    %v2539 = vrot.slane %v2506, %v2538
    %v2548 = vsub.f32 %v2447, %v2511
    %v2549 = vsub.f32 %v2448, %v2515
    %v2550 = vsub.f32 %v2449, %v2519
    %v2551 = vsub.f32 %v2450, %v2523
    %v2552 = vsub.f32 %v2451, %v2527
    %v2553 = vsub.f32 %v2452, %v2531
    %v2554 = vsub.f32 %v2453, %v2535
    %v2555 = vsub.f32 %v2454, %v2539
    %v2556 = vmul.f32 %v2548, 1.442695
    %v2557 = vpow.pop %v2556
    %v2558 = vmul.f32 %v2549, 1.442695
    %v2559 = vpow.pop %v2558
    %v2560 = vmul.f32 %v2550, 1.442695
    %v2561 = vpow.pop %v2560
    %v2562 = vmul.f32 %v2551, 1.442695
    %v2563 = vpow.pop %v2562
    %v2564 = vmul.f32 %v2552, 1.442695
    %v2565 = vpow.pop %v2564
    %v2566 = vmul.f32 %v2553, 1.442695
    %v2567 = vpow.pop %v2566
    %v2568 = vmul.f32 %v2554, 1.442695
    %v2569 = vpow.pop %v2568
    %v2570 = vmul.f32 %v2555, 1.442695
    %v2571 = vpow.pop %v2570
    %v2573 = vlaneseq
    %v2574 = vshrl.u32 %v2573, 7
    %v2575 = vsub.s32 0, %v2574
    %v2576 = vrot.slane %v2261, %v2575
    %2578 = vbcast.lane.b32.xlu0 %v2576, 256
    %v2579 = vpop.permute.xlu0 %2578
    %v2580 = vlaneseq
    %v2581 = vshrl.u32 %v2580, 7
    %v2582 = vsub.s32 1, %v2581
    %v2583 = vrot.slane %v2261, %v2582
    %2585 = vbcast.lane.b32.xlu0 %v2583, 256
    %v2586 = vpop.permute.xlu0 %2585
    %v2587 = vlaneseq
    %v2588 = vshrl.u32 %v2587, 7
    %v2589 = vsub.s32 2, %v2588
    %v2590 = vrot.slane %v2261, %v2589
    %2592 = vbcast.lane.b32.xlu0 %v2590, 256
    %v2593 = vpop.permute.xlu0 %2592
    %v2594 = vlaneseq
    %v2595 = vshrl.u32 %v2594, 7
    %v2596 = vsub.s32 3, %v2595
    %v2597 = vrot.slane %v2261, %v2596
    %2599 = vbcast.lane.b32.xlu0 %v2597, 256
    %v2600 = vpop.permute.xlu0 %2599
    %v2601 = vlaneseq
    %v2602 = vshrl.u32 %v2601, 7
    %v2603 = vsub.s32 4, %v2602
    %v2604 = vrot.slane %v2261, %v2603
    %2606 = vbcast.lane.b32.xlu0 %v2604, 256
    %v2607 = vpop.permute.xlu0 %2606
    %v2608 = vlaneseq
    %v2609 = vshrl.u32 %v2608, 7
    %v2610 = vsub.s32 5, %v2609
    %v2611 = vrot.slane %v2261, %v2610
    %2613 = vbcast.lane.b32.xlu0 %v2611, 256
    %v2614 = vpop.permute.xlu0 %2613
    %v2615 = vlaneseq
    %v2616 = vshrl.u32 %v2615, 7
    %v2617 = vsub.s32 6, %v2616
    %v2618 = vrot.slane %v2261, %v2617
    %2620 = vbcast.lane.b32.xlu0 %v2618, 256
    %v2621 = vpop.permute.xlu0 %2620
    %v2622 = vlaneseq
    %v2623 = vshrl.u32 %v2622, 7
    %v2624 = vsub.s32 7, %v2623
    %v2625 = vrot.slane %v2261, %v2624
    %2627 = vbcast.lane.b32.xlu0 %v2625, 256
    %v2628 = vpop.permute.xlu0 %2627
    %v2637 = vmul.f32 %v2557, %v2579
    %v2638 = vmul.f32 %v2559, %v2586
    %v2639 = vmul.f32 %v2561, %v2593
    %v2640 = vmul.f32 %v2563, %v2600
    %v2641 = vmul.f32 %v2565, %v2607
    %v2642 = vmul.f32 %v2567, %v2614
    %v2643 = vmul.f32 %v2569, %v2621
    %v2644 = vmul.f32 %v2571, %v2628
    %2653 = vset.pattern.permute.xlu0 0
    %2654 = vperm.xlu0 %2653, %v2637
    %v2655 = vpop.permute.xlu0 %2654
    %2656 = vset.pattern.permute.xlu0 0
    %2657 = vperm.xlu0 %2656, %v2638
    %v2658 = vpop.permute.xlu0 %2657
    %2659 = vset.pattern.permute.xlu0 0
    %2660 = vperm.xlu0 %2659, %v2639
    %v2661 = vpop.permute.xlu0 %2660
    %2662 = vset.pattern.permute.xlu0 0
    %2663 = vperm.xlu0 %2662, %v2640
    %v2664 = vpop.permute.xlu0 %2663
    %2665 = vset.pattern.permute.xlu0 0
    %2666 = vperm.xlu0 %2665, %v2641
    %v2667 = vpop.permute.xlu0 %2666
    %2668 = vset.pattern.permute.xlu0 0
    %2669 = vperm.xlu0 %2668, %v2642
    %v2670 = vpop.permute.xlu0 %2669
    %2671 = vset.pattern.permute.xlu0 0
    %2672 = vperm.xlu0 %2671, %v2643
    %v2673 = vpop.permute.xlu0 %2672
    %2674 = vset.pattern.permute.xlu0 0
    %2675 = vperm.xlu0 %2674, %v2644
    %v2676 = vpop.permute.xlu0 %2675
    %v2677 = vlaneseq
    %v2678 = vshrl.u32 %v2677, 7
    %v2679 = vsub.s32 %v1064, %v2678
    %v2680 = vrot.slane %v2655, %v2679
    %v2681 = vlaneseq
    %v2682 = vshrl.u32 %v2681, 7
    %v2683 = vsub.s32 %v1064, %v2682
    %v2684 = vrot.slane %v2658, %v2683
    %v2685 = vlaneseq
    %v2686 = vshrl.u32 %v2685, 7
    %v2687 = vsub.s32 %v1064, %v2686
    %v2688 = vrot.slane %v2661, %v2687
    %v2689 = vlaneseq
    %v2690 = vshrl.u32 %v2689, 7
    %v2691 = vsub.s32 %v1064, %v2690
    %v2692 = vrot.slane %v2664, %v2691
    %v2693 = vlaneseq
    %v2694 = vshrl.u32 %v2693, 7
    %v2695 = vsub.s32 %v1064, %v2694
    %v2696 = vrot.slane %v2667, %v2695
    %v2697 = vlaneseq
    %v2698 = vshrl.u32 %v2697, 7
    %v2699 = vsub.s32 %v1064, %v2698
    %v2700 = vrot.slane %v2670, %v2699
    %v2701 = vlaneseq
    %v2702 = vshrl.u32 %v2701, 7
    %v2703 = vsub.s32 %v1064, %v2702
    %v2704 = vrot.slane %v2673, %v2703
    %v2705 = vlaneseq
    %v2706 = vshrl.u32 %v2705, 7
    %v2707 = vsub.s32 %v1064, %v2706
    %v2708 = vrot.slane %v2676, %v2707
    %v2709 = vsel %vm1139, %v2684, %v2680
    %v2710 = vsel %vm1141, %v2688, %v2709
    %v2711 = vsel %vm1143, %v2692, %v2710
    %v2712 = vsel %vm1145, %v2696, %v2711
    %v2713 = vsel %vm1147, %v2700, %v2712
    %v2714 = vsel %vm1149, %v2704, %v2713
    %v2715 = vsel %vm1151, %v2708, %v2714
    %v2717 = vsel %vm2503, %v2715, 0.0
    %2718 = vadd.xlane.f32.xlu0 %v2717
    %v2719 = vpop.xlane.xlu0 %2718
    %v2720 = vsub.f32 0.0, %v2506
    %v2721 = vmul.f32 %v2720, 1.442695
    %v2722 = vpow.pop %v2721
    %v2723 = vmul.f32 %v2722, 1e-08
    %v2724 = vadd.f32 %v2719, %v2723
    %v2725 = vmax.f32 %v2724, 1e-30
    %v2726 = vrcp.pop %v2725
    %v2728 = vlaneseq
    %v2729 = vshrl.u32 %v2728, 7
    %v2730 = vsub.s32 0, %v2729
    %v2731 = vrot.slane %v2726, %v2730
    %v2732 = vlaneseq
    %v2733 = vshrl.u32 %v2732, 7
    %v2734 = vsub.s32 1, %v2733
    %v2735 = vrot.slane %v2726, %v2734
    %v2736 = vlaneseq
    %v2737 = vshrl.u32 %v2736, 7
    %v2738 = vsub.s32 2, %v2737
    %v2739 = vrot.slane %v2726, %v2738
    %v2740 = vlaneseq
    %v2741 = vshrl.u32 %v2740, 7
    %v2742 = vsub.s32 3, %v2741
    %v2743 = vrot.slane %v2726, %v2742
    %v2744 = vlaneseq
    %v2745 = vshrl.u32 %v2744, 7
    %v2746 = vsub.s32 4, %v2745
    %v2747 = vrot.slane %v2726, %v2746
    %v2748 = vlaneseq
    %v2749 = vshrl.u32 %v2748, 7
    %v2750 = vsub.s32 5, %v2749
    %v2751 = vrot.slane %v2726, %v2750
    %v2752 = vlaneseq
    %v2753 = vshrl.u32 %v2752, 7
    %v2754 = vsub.s32 6, %v2753
    %v2755 = vrot.slane %v2726, %v2754
    %v2756 = vlaneseq
    %v2757 = vshrl.u32 %v2756, 7
    %v2758 = vsub.s32 7, %v2757
    %v2759 = vrot.slane %v2726, %v2758
    %v2768 = vmul.f32 %v2637, %v2731
    %v2769 = vmul.f32 %v2638, %v2735
    %v2770 = vmul.f32 %v2639, %v2739
    %v2771 = vmul.f32 %v2640, %v2743
    %v2772 = vmul.f32 %v2641, %v2747
    %v2773 = vmul.f32 %v2642, %v2751
    %v2774 = vmul.f32 %v2643, %v2755
    %v2775 = vmul.f32 %v2644, %v2759
    %2777 = vset.pattern.permute.xlu0 0
    %2778 = vperm.xlu0 %2777, %v2768
    %v2779 = vpop.permute.xlu0 %2778
    %2782 = vset.pattern.permute.xlu0 0
    %2783 = vperm.xlu0 %2782, %v2769
    %v2784 = vpop.permute.xlu0 %2783
    %2787 = vset.pattern.permute.xlu0 0
    %2788 = vperm.xlu0 %2787, %v2770
    %v2789 = vpop.permute.xlu0 %2788
    %2792 = vset.pattern.permute.xlu0 0
    %2793 = vperm.xlu0 %2792, %v2771
    %v2794 = vpop.permute.xlu0 %2793
    %2797 = vset.pattern.permute.xlu0 0
    %2798 = vperm.xlu0 %2797, %v2772
    %v2799 = vpop.permute.xlu0 %2798
    %2802 = vset.pattern.permute.xlu0 0
    %2803 = vperm.xlu0 %2802, %v2773
    %v2804 = vpop.permute.xlu0 %2803
    %2807 = vset.pattern.permute.xlu0 0
    %2808 = vperm.xlu0 %2807, %v2774
    %v2809 = vpop.permute.xlu0 %2808
    %2812 = vset.pattern.permute.xlu0 0
    %2813 = vperm.xlu0 %2812, %v2775
    %v2814 = vpop.permute.xlu0 %2813
    %v2816 = vmul.f32 %v2253, %v2779
    %v2817 = vmul.f32 %v2254, %v2784
    %v2818 = vmul.f32 %v2255, %v2789
    %v2819 = vmul.f32 %v2256, %v2794
    %v2820 = vmul.f32 %v2257, %v2799
    %v2821 = vmul.f32 %v2258, %v2804
    %v2822 = vmul.f32 %v2259, %v2809
    %v2823 = vmul.f32 %v2260, %v2814
    %v2824 = vsel %vm2278, %v2816, 0.0
    %v2825 = vrot.slane %v2824, 4
    %v2826 = vadd.f32 %v2824, %v2825
    %v2827 = vrot.slane %v2826, 2
    %v2828 = vadd.f32 %v2826, %v2827
    %v2829 = vrot.slane %v2828, 1
    %v2830 = vadd.f32 %v2828, %v2829
    %v2831 = vsel %vm2278, %v2817, 0.0
    %v2832 = vrot.slane %v2831, 4
    %v2833 = vadd.f32 %v2831, %v2832
    %v2834 = vrot.slane %v2833, 2
    %v2835 = vadd.f32 %v2833, %v2834
    %v2836 = vrot.slane %v2835, 1
    %v2837 = vadd.f32 %v2835, %v2836
    %v2838 = vsel %vm2278, %v2818, 0.0
    %v2839 = vrot.slane %v2838, 4
    %v2840 = vadd.f32 %v2838, %v2839
    %v2841 = vrot.slane %v2840, 2
    %v2842 = vadd.f32 %v2840, %v2841
    %v2843 = vrot.slane %v2842, 1
    %v2844 = vadd.f32 %v2842, %v2843
    %v2845 = vsel %vm2278, %v2819, 0.0
    %v2846 = vrot.slane %v2845, 4
    %v2847 = vadd.f32 %v2845, %v2846
    %v2848 = vrot.slane %v2847, 2
    %v2849 = vadd.f32 %v2847, %v2848
    %v2850 = vrot.slane %v2849, 1
    %v2851 = vadd.f32 %v2849, %v2850
    %v2852 = vsel %vm2278, %v2820, 0.0
    %v2853 = vrot.slane %v2852, 4
    %v2854 = vadd.f32 %v2852, %v2853
    %v2855 = vrot.slane %v2854, 2
    %v2856 = vadd.f32 %v2854, %v2855
    %v2857 = vrot.slane %v2856, 1
    %v2858 = vadd.f32 %v2856, %v2857
    %v2859 = vsel %vm2278, %v2821, 0.0
    %v2860 = vrot.slane %v2859, 4
    %v2861 = vadd.f32 %v2859, %v2860
    %v2862 = vrot.slane %v2861, 2
    %v2863 = vadd.f32 %v2861, %v2862
    %v2864 = vrot.slane %v2863, 1
    %v2865 = vadd.f32 %v2863, %v2864
    %v2866 = vsel %vm2278, %v2822, 0.0
    %v2867 = vrot.slane %v2866, 4
    %v2868 = vadd.f32 %v2866, %v2867
    %v2869 = vrot.slane %v2868, 2
    %v2870 = vadd.f32 %v2868, %v2869
    %v2871 = vrot.slane %v2870, 1
    %v2872 = vadd.f32 %v2870, %v2871
    %v2873 = vsel %vm2278, %v2823, 0.0
    %v2874 = vrot.slane %v2873, 4
    %v2875 = vadd.f32 %v2873, %v2874
    %v2876 = vrot.slane %v2875, 2
    %v2877 = vadd.f32 %v2875, %v2876
    %v2878 = vrot.slane %v2877, 1
    %v2879 = vadd.f32 %v2877, %v2878
    %v2880 = vld [vmem:[%s27] sm:$0xff]
    %v2881 = vld [vmem:[%s27 + $0x8] sm:$0xff]
    %v2882 = vld [vmem:[%s29] sm:$0xff]
    %v2883 = vld [vmem:[%s29 + $0x8] sm:$0xff]
    %v2884 = vld [vmem:[%s31] sm:$0xff]
    %v2885 = vld [vmem:[%s31 + $0x8] sm:$0xff]
    %v2886 = vld [vmem:[%s31 + $0x10] sm:$0xff]
    %v2887 = vld [vmem:[%s31 + $0x18] sm:$0xff]
    %v2888 = vld [vmem:[%s31 + $0x20] sm:$0xff]
    %v2889 = vld [vmem:[%s31 + $0x28] sm:$0xff]
    %v2890 = vld [vmem:[%s31 + $0x30] sm:$0xff]
    %v2891 = vld [vmem:[%s31 + $0x38] sm:$0xff]
    %v2893 = vsel %vm2278, %v2882, 0
    %v2896 = vsel %vm2278, %v2883, 0
    %2898 = vmatprep.subr.mxu0 0.0
    %2899 = vmatpush1.msra.mxu0 %v2884
    %2900 = vmatprep.subr.mxu0 0.0
    %2901 = vmatpush1.msra.mxu0 %v2885
    %2902 = vmatprep.subr.mxu0 0.0
    %2903 = vmatpush1.msra.mxu0 %v2886
    %2904 = vmatprep.subr.mxu0 0.0
    %2905 = vmatpush1.msra.mxu0 %v2887
    %2906 = vmatprep.subr.mxu0 0.0
    %2907 = vmatpush1.msra.mxu0 %v2888
    %2908 = vmatprep.subr.mxu0 0.0
    %2909 = vmatpush1.msra.mxu0 %v2889
    %2910 = vmatprep.subr.mxu0 0.0
    %2911 = vmatpush1.msra.mxu0 %v2890
    %2912 = vmatprep.subr.mxu0 0.0
    %2913 = vmatpush1.msra.mxu0 %v2891
    %2914 = vmatprep.subr.mxu0 0.0
    %2915 = vmatpush1.msra.mxu0 0.0
    %2916 = vmatprep.subr.mxu0 0.0
    %2917 = vmatpush1.msra.mxu0 0.0
    %2918 = vmatprep.subr.mxu0 0.0
    %2919 = vmatpush1.msra.mxu0 0.0
    %2920 = vmatprep.subr.mxu0 0.0
    %2921 = vmatpush1.msra.mxu0 0.0
    %2922 = vmatprep.subr.mxu0 0.0
    %2923 = vmatpush1.msra.mxu0 0.0
    %2924 = vmatprep.subr.mxu0 0.0
    %2925 = vmatpush1.msra.mxu0 0.0
    %2926 = vmatprep.subr.mxu0 0.0
    %2927 = vmatpush1.msra.mxu0 0.0
    %2928 = vmatprep.subr.mxu0 0.0
    %2929 = vmatpush1.msra.mxu0 0.0
    %2930 = vmatprep.subr.mxu0 0.0
    %2931 = vmatpush1.msra.mxu0 0.0
    %2932 = vmatprep.subr.mxu0 0.0
    %2933 = vmatpush1.msra.mxu0 0.0
    %2934 = vmatprep.subr.mxu0 0.0
    %2935 = vmatpush1.msra.mxu0 0.0
    %2936 = vmatprep.subr.mxu0 0.0
    %2937 = vmatpush1.msra.mxu0 0.0
    %2938 = vmatprep.subr.mxu0 0.0
    %2939 = vmatpush1.msra.mxu0 0.0
    %2940 = vmatprep.subr.mxu0 0.0
    %2941 = vmatpush1.msra.mxu0 0.0
    %2942 = vmatprep.subr.mxu0 0.0
    %2943 = vmatpush1.msra.mxu0 0.0
    %2944 = vmatprep.subr.mxu0 0.0
    %2945 = vmatpush1.msra.mxu0 0.0
    %2946 = vmatprep.subr.mxu0 0.0
    %2947 = vmatpush1.msra.mxu0 0.0
    %2948 = vmatprep.subr.mxu0 0.0
    %2949 = vmatpush1.msra.mxu0 0.0
    %2950 = vmatprep.subr.mxu0 0.0
    %2951 = vmatpush1.msra.mxu0 0.0
    %2952 = vmatprep.subr.mxu0 0.0
    %2953 = vmatpush1.msra.mxu0 0.0
    %2954 = vmatprep.subr.mxu0 0.0
    %2955 = vmatpush1.msra.mxu0 0.0
    %2956 = vmatprep.subr.mxu0 0.0
    %2957 = vmatpush1.msra.mxu0 0.0
    %2958 = vmatprep.subr.mxu0 0.0
    %2959 = vmatpush1.msra.mxu0 0.0
    %2960 = vmatprep.subr.mxu0 0.0
    %2961 = vmatpush1.msra.mxu0 0.0
    %2962 = vmatprep.mubr.f32.mxu0 0.0
    %2963 = vmatmul.mubr.f32.gmra.mrb[0].mxu0 %v2893
    %v2964 = vpop.f32.mrb[0].mxu0
    %v2965 = vadd.f32 0.0, %v2964
    %v2966 = vpop.f32.mrb[0].mxu0
    %2967 = vmatprep.mubr.f32.mxu0 0.0
    %2968 = vmatmul.mubr.f32.gmra.mrb[0].mxu0 %v2896
    %v2969 = vpop.f32.mrb[0].mxu0
    %v2970 = vadd.f32 0.0, %v2969
    %v2971 = vpop.f32.mrb[0].mxu0
    %2972 = vdwg.mxu0
    %v2973 = vld [vmem:[%s33] sm:$0x1]
    %v2975 = vlaneseq
    %v2976 = vshrl.u32 %v2975, 7
    %v2977 = vsub.s32 0, %v2976
    %v2978 = vrot.slane %v2973, %v2977
    %v2981 = vsel %vm1154, %v2880, 0
    %v2984 = vsel %vm1154, %v2881, 0
    %2986 = vmatprep.subr.mxu0 0.0
    %2987 = vmatpush1.msra.mxu0 %v2965
    %2988 = vmatprep.subr.mxu0 0.0
    %2989 = vmatpush1.msra.mxu0 %v2970
    %2990 = vmatprep.subr.mxu0 0.0
    %2991 = vmatpush1.msra.mxu0 0.0
    %2992 = vmatprep.subr.mxu0 0.0
    %2993 = vmatpush1.msra.mxu0 0.0
    %2994 = vmatprep.subr.mxu0 0.0
    %2995 = vmatpush1.msra.mxu0 0.0
    %2996 = vmatprep.subr.mxu0 0.0
    %2997 = vmatpush1.msra.mxu0 0.0
    %2998 = vmatprep.subr.mxu0 0.0
    %2999 = vmatpush1.msra.mxu0 0.0
    %3000 = vmatprep.subr.mxu0 0.0
    %3001 = vmatpush1.msra.mxu0 0.0
    %3002 = vmatprep.subr.mxu0 0.0
    %3003 = vmatpush1.msra.mxu0 0.0
    %3004 = vmatprep.subr.mxu0 0.0
    %3005 = vmatpush1.msra.mxu0 0.0
    %3006 = vmatprep.subr.mxu0 0.0
    %3007 = vmatpush1.msra.mxu0 0.0
    %3008 = vmatprep.subr.mxu0 0.0
    %3009 = vmatpush1.msra.mxu0 0.0
    %3010 = vmatprep.subr.mxu0 0.0
    %3011 = vmatpush1.msra.mxu0 0.0
    %3012 = vmatprep.subr.mxu0 0.0
    %3013 = vmatpush1.msra.mxu0 0.0
    %3014 = vmatprep.subr.mxu0 0.0
    %3015 = vmatpush1.msra.mxu0 0.0
    %3016 = vmatprep.subr.mxu0 0.0
    %3017 = vmatpush1.msra.mxu0 0.0
    %3018 = vmatprep.subr.mxu0 0.0
    %3019 = vmatpush1.msra.mxu0 0.0
    %3020 = vmatprep.subr.mxu0 0.0
    %3021 = vmatpush1.msra.mxu0 0.0
    %3022 = vmatprep.subr.mxu0 0.0
    %3023 = vmatpush1.msra.mxu0 0.0
    %3024 = vmatprep.subr.mxu0 0.0
    %3025 = vmatpush1.msra.mxu0 0.0
    %3026 = vmatprep.subr.mxu0 0.0
    %3027 = vmatpush1.msra.mxu0 0.0
    %3028 = vmatprep.subr.mxu0 0.0
    %3029 = vmatpush1.msra.mxu0 0.0
    %3030 = vmatprep.subr.mxu0 0.0
    %3031 = vmatpush1.msra.mxu0 0.0
    %3032 = vmatprep.subr.mxu0 0.0
    %3033 = vmatpush1.msra.mxu0 0.0
    %3034 = vmatprep.subr.mxu0 0.0
    %3035 = vmatpush1.msra.mxu0 0.0
    %3036 = vmatprep.subr.mxu0 0.0
    %3037 = vmatpush1.msra.mxu0 0.0
    %3038 = vmatprep.subr.mxu0 0.0
    %3039 = vmatpush1.msra.mxu0 0.0
    %3040 = vmatprep.subr.mxu0 0.0
    %3041 = vmatpush1.msra.mxu0 0.0
    %3042 = vmatprep.subr.mxu0 0.0
    %3043 = vmatpush1.msra.mxu0 0.0
    %3044 = vmatprep.subr.mxu0 0.0
    %3045 = vmatpush1.msra.mxu0 0.0
    %3046 = vmatprep.subr.mxu0 0.0
    %3047 = vmatpush1.msra.mxu0 0.0
    %3048 = vmatprep.subr.mxu0 0.0
    %3049 = vmatpush1.msra.mxu0 0.0
    %3050 = vmatprep.mubr.f32.mxu0 0.0
    %3051 = vmatmul.mubr.f32.gmra.mrb[0].mxu0 %v2981
    %v3052 = vpop.f32.mrb[0].mxu0
    %v3053 = vadd.f32 %v2978, %v3052
    %v3054 = vpop.f32.mrb[0].mxu0
    %3055 = vmatprep.mubr.f32.mxu0 0.0
    %3056 = vmatmul.mubr.f32.gmra.mrb[0].mxu0 %v2984
    %v3057 = vpop.f32.mrb[0].mxu0
    %v3058 = vadd.f32 %v2978, %v3057
    %v3059 = vpop.f32.mrb[0].mxu0
    %3060 = vdwg.mxu0
    %v3061 = vtanh.pop %v3053
    %v3062 = vtanh.pop %v3058
    %s3063 = scalar_lea.vmem %s31, 64
    %v3064 = vld [vmem:[%s3063] sm:$0xff]
    %v3065 = vld [vmem:[%s3063 + $0x8] sm:$0xff]
    %v3066 = vld [vmem:[%s3063 + $0x10] sm:$0xff]
    %v3067 = vld [vmem:[%s3063 + $0x18] sm:$0xff]
    %v3068 = vld [vmem:[%s3063 + $0x20] sm:$0xff]
    %v3069 = vld [vmem:[%s3063 + $0x28] sm:$0xff]
    %v3070 = vld [vmem:[%s3063 + $0x30] sm:$0xff]
    %v3071 = vld [vmem:[%s3063 + $0x38] sm:$0xff]
    %v3073 = vsel %vm2278, %v3061, 0
    %v3076 = vsel %vm2278, %v3062, 0
    %3078 = vmatprep.subr.mxu0 0.0
    %3079 = vmatpush1.msra.mxu0 %v3064
    %3080 = vmatprep.subr.mxu0 0.0
    %3081 = vmatpush1.msra.mxu0 %v3065
    %3082 = vmatprep.subr.mxu0 0.0
    %3083 = vmatpush1.msra.mxu0 %v3066
    %3084 = vmatprep.subr.mxu0 0.0
    %3085 = vmatpush1.msra.mxu0 %v3067
    %3086 = vmatprep.subr.mxu0 0.0
    %3087 = vmatpush1.msra.mxu0 %v3068
    %3088 = vmatprep.subr.mxu0 0.0
    %3089 = vmatpush1.msra.mxu0 %v3069
    %3090 = vmatprep.subr.mxu0 0.0
    %3091 = vmatpush1.msra.mxu0 %v3070
    %3092 = vmatprep.subr.mxu0 0.0
    %3093 = vmatpush1.msra.mxu0 %v3071
    %3094 = vmatprep.subr.mxu0 0.0
    %3095 = vmatpush1.msra.mxu0 0.0
    %3096 = vmatprep.subr.mxu0 0.0
    %3097 = vmatpush1.msra.mxu0 0.0
    %3098 = vmatprep.subr.mxu0 0.0
    %3099 = vmatpush1.msra.mxu0 0.0
    %3100 = vmatprep.subr.mxu0 0.0
    %3101 = vmatpush1.msra.mxu0 0.0
    %3102 = vmatprep.subr.mxu0 0.0
    %3103 = vmatpush1.msra.mxu0 0.0
    %3104 = vmatprep.subr.mxu0 0.0
    %3105 = vmatpush1.msra.mxu0 0.0
    %3106 = vmatprep.subr.mxu0 0.0
    %3107 = vmatpush1.msra.mxu0 0.0
    %3108 = vmatprep.subr.mxu0 0.0
    %3109 = vmatpush1.msra.mxu0 0.0
    %3110 = vmatprep.subr.mxu0 0.0
    %3111 = vmatpush1.msra.mxu0 0.0
    %3112 = vmatprep.subr.mxu0 0.0
    %3113 = vmatpush1.msra.mxu0 0.0
    %3114 = vmatprep.subr.mxu0 0.0
    %3115 = vmatpush1.msra.mxu0 0.0
    %3116 = vmatprep.subr.mxu0 0.0
    %3117 = vmatpush1.msra.mxu0 0.0
    %3118 = vmatprep.subr.mxu0 0.0
    %3119 = vmatpush1.msra.mxu0 0.0
    %3120 = vmatprep.subr.mxu0 0.0
    %3121 = vmatpush1.msra.mxu0 0.0
    %3122 = vmatprep.subr.mxu0 0.0
    %3123 = vmatpush1.msra.mxu0 0.0
    %3124 = vmatprep.subr.mxu0 0.0
    %3125 = vmatpush1.msra.mxu0 0.0
    %3126 = vmatprep.subr.mxu0 0.0
    %3127 = vmatpush1.msra.mxu0 0.0
    %3128 = vmatprep.subr.mxu0 0.0
    %3129 = vmatpush1.msra.mxu0 0.0
    %3130 = vmatprep.subr.mxu0 0.0
    %3131 = vmatpush1.msra.mxu0 0.0
    %3132 = vmatprep.subr.mxu0 0.0
    %3133 = vmatpush1.msra.mxu0 0.0
    %3134 = vmatprep.subr.mxu0 0.0
    %3135 = vmatpush1.msra.mxu0 0.0
    %3136 = vmatprep.subr.mxu0 0.0
    %3137 = vmatpush1.msra.mxu0 0.0
    %3138 = vmatprep.subr.mxu0 0.0
    %3139 = vmatpush1.msra.mxu0 0.0
    %3140 = vmatprep.subr.mxu0 0.0
    %3141 = vmatpush1.msra.mxu0 0.0
    %3142 = vmatprep.mubr.f32.mxu0 0.0
    %3143 = vmatmul.mubr.f32.gmra.mrb[0].mxu0 %v3073
    %v3144 = vpop.f32.mrb[0].mxu0
    %v3145 = vadd.f32 0.0, %v3144
    %v3146 = vpop.f32.mrb[0].mxu0
    %3147 = vmatprep.mubr.f32.mxu0 0.0
    %3148 = vmatmul.mubr.f32.gmra.mrb[0].mxu0 %v3076
    %v3149 = vpop.f32.mrb[0].mxu0
    %v3150 = vadd.f32 0.0, %v3149
    %v3151 = vpop.f32.mrb[0].mxu0
    %3152 = vdwg.mxu0
    %s3153 = scalar_lea.vmem %s33, 1
    %v3154 = vld [vmem:[%s3153] sm:$0x1]
    %v3156 = vlaneseq
    %v3157 = vshrl.u32 %v3156, 7
    %v3158 = vsub.s32 0, %v3157
    %v3159 = vrot.slane %v3154, %v3158
    %3161 = vmatprep.subr.mxu0 0.0
    %3162 = vmatpush1.msra.mxu0 %v3145
    %3163 = vmatprep.subr.mxu0 0.0
    %3164 = vmatpush1.msra.mxu0 %v3150
    %3165 = vmatprep.subr.mxu0 0.0
    %3166 = vmatpush1.msra.mxu0 0.0
    %3167 = vmatprep.subr.mxu0 0.0
    %3168 = vmatpush1.msra.mxu0 0.0
    %3169 = vmatprep.subr.mxu0 0.0
    %3170 = vmatpush1.msra.mxu0 0.0
    %3171 = vmatprep.subr.mxu0 0.0
    %3172 = vmatpush1.msra.mxu0 0.0
    %3173 = vmatprep.subr.mxu0 0.0
    %3174 = vmatpush1.msra.mxu0 0.0
    %3175 = vmatprep.subr.mxu0 0.0
    %3176 = vmatpush1.msra.mxu0 0.0
    %3177 = vmatprep.subr.mxu0 0.0
    %3178 = vmatpush1.msra.mxu0 0.0
    %3179 = vmatprep.subr.mxu0 0.0
    %3180 = vmatpush1.msra.mxu0 0.0
    %3181 = vmatprep.subr.mxu0 0.0
    %3182 = vmatpush1.msra.mxu0 0.0
    %3183 = vmatprep.subr.mxu0 0.0
    %3184 = vmatpush1.msra.mxu0 0.0
    %3185 = vmatprep.subr.mxu0 0.0
    %3186 = vmatpush1.msra.mxu0 0.0
    %3187 = vmatprep.subr.mxu0 0.0
    %3188 = vmatpush1.msra.mxu0 0.0
    %3189 = vmatprep.subr.mxu0 0.0
    %3190 = vmatpush1.msra.mxu0 0.0
    %3191 = vmatprep.subr.mxu0 0.0
    %3192 = vmatpush1.msra.mxu0 0.0
    %3193 = vmatprep.subr.mxu0 0.0
    %3194 = vmatpush1.msra.mxu0 0.0
    %3195 = vmatprep.subr.mxu0 0.0
    %3196 = vmatpush1.msra.mxu0 0.0
    %3197 = vmatprep.subr.mxu0 0.0
    %3198 = vmatpush1.msra.mxu0 0.0
    %3199 = vmatprep.subr.mxu0 0.0
    %3200 = vmatpush1.msra.mxu0 0.0
    %3201 = vmatprep.subr.mxu0 0.0
    %3202 = vmatpush1.msra.mxu0 0.0
    %3203 = vmatprep.subr.mxu0 0.0
    %3204 = vmatpush1.msra.mxu0 0.0
    %3205 = vmatprep.subr.mxu0 0.0
    %3206 = vmatpush1.msra.mxu0 0.0
    %3207 = vmatprep.subr.mxu0 0.0
    %3208 = vmatpush1.msra.mxu0 0.0
    %3209 = vmatprep.subr.mxu0 0.0
    %3210 = vmatpush1.msra.mxu0 0.0
    %3211 = vmatprep.subr.mxu0 0.0
    %3212 = vmatpush1.msra.mxu0 0.0
    %3213 = vmatprep.subr.mxu0 0.0
    %3214 = vmatpush1.msra.mxu0 0.0
    %3215 = vmatprep.subr.mxu0 0.0
    %3216 = vmatpush1.msra.mxu0 0.0
    %3217 = vmatprep.subr.mxu0 0.0
    %3218 = vmatpush1.msra.mxu0 0.0
    %3219 = vmatprep.subr.mxu0 0.0
    %3220 = vmatpush1.msra.mxu0 0.0
    %3221 = vmatprep.subr.mxu0 0.0
    %3222 = vmatpush1.msra.mxu0 0.0
    %3223 = vmatprep.subr.mxu0 0.0
    %3224 = vmatpush1.msra.mxu0 0.0
    %3225 = vmatprep.mubr.f32.mxu0 0.0
    %3226 = vmatmul.mubr.f32.gmra.mrb[0].mxu0 %v2981
    %v3227 = vpop.f32.mrb[0].mxu0
    %v3228 = vadd.f32 %v3159, %v3227
    %v3229 = vpop.f32.mrb[0].mxu0
    %3230 = vmatprep.mubr.f32.mxu0 0.0
    %3231 = vmatmul.mubr.f32.gmra.mrb[0].mxu0 %v2984
    %v3232 = vpop.f32.mrb[0].mxu0
    %v3233 = vadd.f32 %v3159, %v3232
    %v3234 = vpop.f32.mrb[0].mxu0
    %3235 = vdwg.mxu0
    %3236 = vrot.lane.b32.xlu0 %v3061, 64
    %v3237 = vpop.permute.xlu0 %3236
    %3238 = vrot.lane.b32.xlu0 %v3062, 64
    %v3239 = vpop.permute.xlu0 %3238
    %v3242 = vsel %vm2278, %v2882, %v3237
    %v3243 = vsel %vm2278, %v2883, %v3239
    %v3244 = vld [vmem:[%s35] sm:$0xf]
    %v3246 = vsel %vm1154, %v3244, 0
    %3248 = vmatprep.subr.mxu0 %v3228
    %3249 = vmatpush1.msra.mxu0 %v3242
    %3250 = vmatprep.subr.mxu0 %v3233
    %3251 = vmatpush1.msra.mxu0 %v3243
    %3252 = vmatprep.subr.mxu0 0.0
    %3253 = vmatpush1.msra.mxu0 0.0
    %3254 = vmatprep.subr.mxu0 0.0
    %3255 = vmatpush1.msra.mxu0 0.0
    %3256 = vmatprep.subr.mxu0 0.0
    %3257 = vmatpush1.msra.mxu0 0.0
    %3258 = vmatprep.subr.mxu0 0.0
    %3259 = vmatpush1.msra.mxu0 0.0
    %3260 = vmatprep.subr.mxu0 0.0
    %3261 = vmatpush1.msra.mxu0 0.0
    %3262 = vmatprep.subr.mxu0 0.0
    %3263 = vmatpush1.msra.mxu0 0.0
    %3264 = vmatprep.subr.mxu0 0.0
    %3265 = vmatpush1.msra.mxu0 0.0
    %3266 = vmatprep.subr.mxu0 0.0
    %3267 = vmatpush1.msra.mxu0 0.0
    %3268 = vmatprep.subr.mxu0 0.0
    %3269 = vmatpush1.msra.mxu0 0.0
    %3270 = vmatprep.subr.mxu0 0.0
    %3271 = vmatpush1.msra.mxu0 0.0
    %3272 = vmatprep.subr.mxu0 0.0
    %3273 = vmatpush1.msra.mxu0 0.0
    %3274 = vmatprep.subr.mxu0 0.0
    %3275 = vmatpush1.msra.mxu0 0.0
    %3276 = vmatprep.subr.mxu0 0.0
    %3277 = vmatpush1.msra.mxu0 0.0
    %3278 = vmatprep.subr.mxu0 0.0
    %3279 = vmatpush1.msra.mxu0 0.0
    %3280 = vmatprep.subr.mxu0 0.0
    %3281 = vmatpush1.msra.mxu0 0.0
    %3282 = vmatprep.subr.mxu0 0.0
    %3283 = vmatpush1.msra.mxu0 0.0
    %3284 = vmatprep.subr.mxu0 0.0
    %3285 = vmatpush1.msra.mxu0 0.0
    %3286 = vmatprep.subr.mxu0 0.0
    %3287 = vmatpush1.msra.mxu0 0.0
    %3288 = vmatprep.subr.mxu0 0.0
    %3289 = vmatpush1.msra.mxu0 0.0
    %3290 = vmatprep.subr.mxu0 0.0
    %3291 = vmatpush1.msra.mxu0 0.0
    %3292 = vmatprep.subr.mxu0 0.0
    %3293 = vmatpush1.msra.mxu0 0.0
    %3294 = vmatprep.subr.mxu0 0.0
    %3295 = vmatpush1.msra.mxu0 0.0
    %3296 = vmatprep.subr.mxu0 0.0
    %3297 = vmatpush1.msra.mxu0 0.0
    %3298 = vmatprep.subr.mxu0 0.0
    %3299 = vmatpush1.msra.mxu0 0.0
    %3300 = vmatprep.subr.mxu0 0.0
    %3301 = vmatpush1.msra.mxu0 0.0
    %3302 = vmatprep.subr.mxu0 0.0
    %3303 = vmatpush1.msra.mxu0 0.0
    %3304 = vmatprep.subr.mxu0 0.0
    %3305 = vmatpush1.msra.mxu0 0.0
    %3306 = vmatprep.subr.mxu0 0.0
    %3307 = vmatpush1.msra.mxu0 0.0
    %3308 = vmatprep.subr.mxu0 0.0
    %3309 = vmatpush1.msra.mxu0 0.0
    %3310 = vmatprep.subr.mxu0 0.0
    %3311 = vmatpush1.msra.mxu0 0.0
    %3312 = vmatprep.mubr.f32.mxu0 0.0
    %3313 = vmatmul.mubr.f32.gmra.mrb[0].mxu0 %v3246
    %v3314 = vpop.f32.mrb[0].mxu0
    %v3315 = vadd.f32 0.0, %v3314
    %v3316 = vpop.f32.mrb[0].mxu0
    %v3317 = vadd.f32 0.0, %v3316
    %3318 = vdwg.mxu0
    %v3319 = vld [vmem:[%s37] sm:$0xf]
    %v3321 = vsel %vm1154, %v3319, 0
    %3323 = vmatprep.subr.mxu0 %v3228
    %3324 = vmatpush1.msra.mxu0 %v3242
    %3325 = vmatprep.subr.mxu0 %v3233
    %3326 = vmatpush1.msra.mxu0 %v3243
    %3327 = vmatprep.subr.mxu0 0.0
    %3328 = vmatpush1.msra.mxu0 0.0
    %3329 = vmatprep.subr.mxu0 0.0
    %3330 = vmatpush1.msra.mxu0 0.0
    %3331 = vmatprep.subr.mxu0 0.0
    %3332 = vmatpush1.msra.mxu0 0.0
    %3333 = vmatprep.subr.mxu0 0.0
    %3334 = vmatpush1.msra.mxu0 0.0
    %3335 = vmatprep.subr.mxu0 0.0
    %3336 = vmatpush1.msra.mxu0 0.0
    %3337 = vmatprep.subr.mxu0 0.0
    %3338 = vmatpush1.msra.mxu0 0.0
    %3339 = vmatprep.subr.mxu0 0.0
    %3340 = vmatpush1.msra.mxu0 0.0
    %3341 = vmatprep.subr.mxu0 0.0
    %3342 = vmatpush1.msra.mxu0 0.0
    %3343 = vmatprep.subr.mxu0 0.0
    %3344 = vmatpush1.msra.mxu0 0.0
    %3345 = vmatprep.subr.mxu0 0.0
    %3346 = vmatpush1.msra.mxu0 0.0
    %3347 = vmatprep.subr.mxu0 0.0
    %3348 = vmatpush1.msra.mxu0 0.0
    %3349 = vmatprep.subr.mxu0 0.0
    %3350 = vmatpush1.msra.mxu0 0.0
    %3351 = vmatprep.subr.mxu0 0.0
    %3352 = vmatpush1.msra.mxu0 0.0
    %3353 = vmatprep.subr.mxu0 0.0
    %3354 = vmatpush1.msra.mxu0 0.0
    %3355 = vmatprep.subr.mxu0 0.0
    %3356 = vmatpush1.msra.mxu0 0.0
    %3357 = vmatprep.subr.mxu0 0.0
    %3358 = vmatpush1.msra.mxu0 0.0
    %3359 = vmatprep.subr.mxu0 0.0
    %3360 = vmatpush1.msra.mxu0 0.0
    %3361 = vmatprep.subr.mxu0 0.0
    %3362 = vmatpush1.msra.mxu0 0.0
    %3363 = vmatprep.subr.mxu0 0.0
    %3364 = vmatpush1.msra.mxu0 0.0
    %3365 = vmatprep.subr.mxu0 0.0
    %3366 = vmatpush1.msra.mxu0 0.0
    %3367 = vmatprep.subr.mxu0 0.0
    %3368 = vmatpush1.msra.mxu0 0.0
    %3369 = vmatprep.subr.mxu0 0.0
    %3370 = vmatpush1.msra.mxu0 0.0
    %3371 = vmatprep.subr.mxu0 0.0
    %3372 = vmatpush1.msra.mxu0 0.0
    %3373 = vmatprep.subr.mxu0 0.0
    %3374 = vmatpush1.msra.mxu0 0.0
    %3375 = vmatprep.subr.mxu0 0.0
    %3376 = vmatpush1.msra.mxu0 0.0
    %3377 = vmatprep.subr.mxu0 0.0
    %3378 = vmatpush1.msra.mxu0 0.0
    %3379 = vmatprep.subr.mxu0 0.0
    %3380 = vmatpush1.msra.mxu0 0.0
    %3381 = vmatprep.subr.mxu0 0.0
    %3382 = vmatpush1.msra.mxu0 0.0
    %3383 = vmatprep.subr.mxu0 0.0
    %3384 = vmatpush1.msra.mxu0 0.0
    %3385 = vmatprep.subr.mxu0 0.0
    %3386 = vmatpush1.msra.mxu0 0.0
    %3387 = vmatprep.mubr.f32.mxu0 0.0
    %3388 = vmatmul.mubr.f32.gmra.mrb[0].mxu0 %v3321
    %v3389 = vpop.f32.mrb[0].mxu0
    %v3390 = vadd.f32 0.0, %v3389
    %v3391 = vpop.f32.mrb[0].mxu0
    %v3392 = vadd.f32 0.0, %v3391
    %3393 = vdwg.mxu0
    %v3394 = vpack.c.bf16 %v3315, %v3315
    %v3395 = vpack.c.bf16 %v3317, %v3317
    %v3396 = vld [vmem:[%s45] sm:$0xff]
    %v3397 = vld [vmem:[%s45 + $0x8] sm:$0xff]
    %v3398 = vld [vmem:[%s45 + $0x10] sm:$0xff]
    %v3399 = vld [vmem:[%s45 + $0x18] sm:$0xff]
    %v3400 = vld [vmem:[%s45 + $0x20] sm:$0xff]
    %v3401 = vld [vmem:[%s45 + $0x28] sm:$0xff]
    %v3402 = vld [vmem:[%s45 + $0x30] sm:$0xff]
    %v3403 = vld [vmem:[%s45 + $0x38] sm:$0xff]
    %v3404 = vld [vmem:[%s45 + $0x40] sm:$0xff]
    %v3405 = vld [vmem:[%s45 + $0x48] sm:$0xff]
    %v3406 = vld [vmem:[%s45 + $0x50] sm:$0xff]
    %v3407 = vld [vmem:[%s45 + $0x58] sm:$0xff]
    %v3408 = vld [vmem:[%s45 + $0x60] sm:$0xff]
    %v3409 = vld [vmem:[%s45 + $0x68] sm:$0xff]
    %v3410 = vld [vmem:[%s45 + $0x70] sm:$0xff]
    %v3411 = vld [vmem:[%s45 + $0x78] sm:$0xff]
    %v3412 = vld [vmem:[%s45 + $0x80] sm:$0xff]
    %v3413 = vld [vmem:[%s45 + $0x88] sm:$0xff]
    %v3414 = vld [vmem:[%s45 + $0x90] sm:$0xff]
    %v3415 = vld [vmem:[%s45 + $0x98] sm:$0xff]
    %v3416 = vld [vmem:[%s45 + $0xa0] sm:$0xff]
    %v3417 = vld [vmem:[%s45 + $0xa8] sm:$0xff]
    %v3418 = vld [vmem:[%s45 + $0xb0] sm:$0xff]
    %v3419 = vld [vmem:[%s45 + $0xb8] sm:$0xff]
    %v3420 = vpack.c.bf16 %v2830, %v2830
    %v3421 = vpack.c.bf16 %v2837, %v2837
    %v3422 = vpack.c.bf16 %v2844, %v2844
    %v3423 = vpack.c.bf16 %v2851, %v2851
    %v3424 = vld [vmem:[%s47] sm:$0xff]
    %v3425 = vld [vmem:[%s47 + $0x8] sm:$0xff]
    %v3426 = vld [vmem:[%s47 + $0x10] sm:$0xff]
    %v3427 = vld [vmem:[%s47 + $0x18] sm:$0xff]
    %v3428 = vld [vmem:[%s47 + $0x20] sm:$0xff]
    %v3429 = vld [vmem:[%s47 + $0x28] sm:$0xff]
    %v3430 = vld [vmem:[%s47 + $0x30] sm:$0xff]
    %v3431 = vld [vmem:[%s47 + $0x38] sm:$0xff]
    %v3436 = vunpack.c.l.b16 %v3420
    %v3437 = vunpack.c.l.b16 %v3421
    %v3438 = vunpack.c.l.b16 %v3422
    %v3439 = vunpack.c.l.b16 %v3423
    %v3440 = vsel %vm1139, %v3437, %v3436
    %v3441 = vsel %vm1141, %v3438, %v3440
    %v3442 = vsel %vm1143, %v3439, %v3441
    %v3443 = vpack.c.b16 %v3442, %v3442
    %v3452 = vunpack.c.l.b16 %v3424
    %v3453 = vunpack.c.h.b16 %v3424
    %v3454 = vunpack.c.l.b16 %v3425
    %v3455 = vunpack.c.h.b16 %v3425
    %v3456 = vunpack.c.l.b16 %v3426
    %v3457 = vunpack.c.h.b16 %v3426
    %v3458 = vunpack.c.l.b16 %v3427
    %v3459 = vunpack.c.h.b16 %v3427
    %v3460 = vunpack.c.l.b16 %v3428
    %v3461 = vunpack.c.h.b16 %v3428
    %v3462 = vunpack.c.l.b16 %v3429
    %v3463 = vunpack.c.h.b16 %v3429
    %v3464 = vunpack.c.l.b16 %v3430
    %v3465 = vunpack.c.h.b16 %v3430
    %v3466 = vunpack.c.l.b16 %v3431
    %v3467 = vunpack.c.h.b16 %v3431
    %v3468 = vpack.c.b16 %v3454, %v3452
    %v3469 = vpack.c.b16 %v3455, %v3453
    %v3470 = vpack.c.b16 %v3458, %v3456
    %v3471 = vpack.c.b16 %v3459, %v3457
    %v3472 = vpack.c.b16 %v3462, %v3460
    %v3473 = vpack.c.b16 %v3463, %v3461
    %v3474 = vpack.c.b16 %v3466, %v3464
    %v3475 = vpack.c.b16 %v3467, %v3465
    %v3485 = vsel %vm2278, %v3443, 0
    %3487 = vmatprep.subr.bf16.mxu0 %v3469
    %3488 = vmatpush1.bf16.msra.mxu0 %v3468
    %3489 = vmatprep.subr.bf16.mxu0 %v3471
    %3490 = vmatpush1.bf16.msra.mxu0 %v3470
    %3491 = vmatprep.subr.bf16.mxu0 %v3473
    %3492 = vmatpush1.bf16.msra.mxu0 %v3472
    %3493 = vmatprep.subr.bf16.mxu0 %v3475
    %3494 = vmatpush1.bf16.msra.mxu0 %v3474
    %3495 = vmatprep.subr.bf16.mxu0 0
    %3496 = vmatpush1.bf16.msra.mxu0 0
    %3497 = vmatprep.subr.bf16.mxu0 0
    %3498 = vmatpush1.bf16.msra.mxu0 0
    %3499 = vmatprep.subr.bf16.mxu0 0
    %3500 = vmatpush1.bf16.msra.mxu0 0
    %3501 = vmatprep.subr.bf16.mxu0 0
    %3502 = vmatpush1.bf16.msra.mxu0 0
    %3503 = vmatprep.subr.bf16.mxu0 0
    %3504 = vmatpush1.bf16.msra.mxu0 0
    %3505 = vmatprep.subr.bf16.mxu0 0
    %3506 = vmatpush1.bf16.msra.mxu0 0
    %3507 = vmatprep.subr.bf16.mxu0 0
    %3508 = vmatpush1.bf16.msra.mxu0 0
    %3509 = vmatprep.subr.bf16.mxu0 0
    %3510 = vmatpush1.bf16.msra.mxu0 0
    %3511 = vmatprep.subr.bf16.mxu0 0
    %3512 = vmatpush1.bf16.msra.mxu0 0
    %3513 = vmatprep.subr.bf16.mxu0 0
    %3514 = vmatpush1.bf16.msra.mxu0 0
    %3515 = vmatprep.subr.bf16.mxu0 0
    %3516 = vmatpush1.bf16.msra.mxu0 0
    %3517 = vmatprep.subr.bf16.mxu0 0
    %3518 = vmatpush1.bf16.msra.mxu0 0
    %3519 = vmatprep.mubr.bf16.mxu0 0
    %3520 = vmatmul.mubr.bf16.gmra.mrb[0].mxu0 %v3485
    %v3521 = vpop.f32.mrb[0].mxu0
    %v3522 = vadd.f32 0.0, %v3521
    %v3523 = vpop.f32.mrb[0].mxu0
    %v3524 = vadd.f32 0.0, %v3523
    %v3525 = vpop.f32.mrb[0].mxu0
    %v3526 = vpop.f32.mrb[0].mxu0
    %3527 = vdwg.mxu0
    %v3552 = vunpack.c.l.b16 %v3396
    %v3553 = vunpack.c.h.b16 %v3396
    %v3554 = vunpack.c.l.b16 %v3397
    %v3555 = vunpack.c.h.b16 %v3397
    %v3556 = vunpack.c.l.b16 %v3398
    %v3557 = vunpack.c.h.b16 %v3398
    %v3558 = vunpack.c.l.b16 %v3399
    %v3559 = vunpack.c.h.b16 %v3399
    %v3560 = vunpack.c.l.b16 %v3400
    %v3561 = vunpack.c.h.b16 %v3400
    %v3562 = vunpack.c.l.b16 %v3401
    %v3563 = vunpack.c.h.b16 %v3401
    %v3564 = vunpack.c.l.b16 %v3402
    %v3565 = vunpack.c.h.b16 %v3402
    %v3566 = vunpack.c.l.b16 %v3403
    %v3567 = vunpack.c.h.b16 %v3403
    %v3568 = vunpack.c.l.b16 %v3404
    %v3569 = vunpack.c.h.b16 %v3404
    %v3570 = vunpack.c.l.b16 %v3405
    %v3571 = vunpack.c.h.b16 %v3405
    %v3572 = vunpack.c.l.b16 %v3406
    %v3573 = vunpack.c.h.b16 %v3406
    %v3574 = vunpack.c.l.b16 %v3407
    %v3575 = vunpack.c.h.b16 %v3407
    %v3576 = vunpack.c.l.b16 %v3408
    %v3577 = vunpack.c.h.b16 %v3408
    %v3578 = vunpack.c.l.b16 %v3409
    %v3579 = vunpack.c.h.b16 %v3409
    %v3580 = vunpack.c.l.b16 %v3410
    %v3581 = vunpack.c.h.b16 %v3410
    %v3582 = vunpack.c.l.b16 %v3411
    %v3583 = vunpack.c.h.b16 %v3411
    %v3584 = vunpack.c.l.b16 %v3412
    %v3585 = vunpack.c.h.b16 %v3412
    %v3586 = vunpack.c.l.b16 %v3413
    %v3587 = vunpack.c.h.b16 %v3413
    %v3588 = vunpack.c.l.b16 %v3414
    %v3589 = vunpack.c.h.b16 %v3414
    %v3590 = vunpack.c.l.b16 %v3415
    %v3591 = vunpack.c.h.b16 %v3415
    %v3592 = vunpack.c.l.b16 %v3416
    %v3593 = vunpack.c.h.b16 %v3416
    %v3594 = vunpack.c.l.b16 %v3417
    %v3595 = vunpack.c.h.b16 %v3417
    %v3596 = vunpack.c.l.b16 %v3418
    %v3597 = vunpack.c.h.b16 %v3418
    %v3598 = vunpack.c.l.b16 %v3419
    %v3599 = vunpack.c.h.b16 %v3419
    %v3600 = vpack.c.b16 %v3554, %v3552
    %v3601 = vpack.c.b16 %v3555, %v3553
    %v3602 = vpack.c.b16 %v3558, %v3556
    %v3603 = vpack.c.b16 %v3559, %v3557
    %v3604 = vpack.c.b16 %v3562, %v3560
    %v3605 = vpack.c.b16 %v3563, %v3561
    %v3606 = vpack.c.b16 %v3566, %v3564
    %v3607 = vpack.c.b16 %v3567, %v3565
    %v3608 = vpack.c.b16 %v3570, %v3568
    %v3609 = vpack.c.b16 %v3571, %v3569
    %v3610 = vpack.c.b16 %v3574, %v3572
    %v3611 = vpack.c.b16 %v3575, %v3573
    %v3612 = vpack.c.b16 %v3578, %v3576
    %v3613 = vpack.c.b16 %v3579, %v3577
    %v3614 = vpack.c.b16 %v3582, %v3580
    %v3615 = vpack.c.b16 %v3583, %v3581
    %v3616 = vpack.c.b16 %v3586, %v3584
    %v3617 = vpack.c.b16 %v3587, %v3585
    %v3618 = vpack.c.b16 %v3590, %v3588
    %v3619 = vpack.c.b16 %v3591, %v3589
    %v3620 = vpack.c.b16 %v3594, %v3592
    %v3621 = vpack.c.b16 %v3595, %v3593
    %v3622 = vpack.c.b16 %v3598, %v3596
    %v3623 = vpack.c.b16 %v3599, %v3597
    %v3649 = vsel %vm2278, %v3395, 0
    %3651 = vmatprep.subr.bf16.mxu0 %v3601
    %3652 = vmatpush1.bf16.msra.mxu0 %v3600
    %3653 = vmatprep.subr.bf16.mxu0 %v3603
    %3654 = vmatpush1.bf16.msra.mxu0 %v3602
    %3655 = vmatprep.subr.bf16.mxu0 %v3605
    %3656 = vmatpush1.bf16.msra.mxu0 %v3604
    %3657 = vmatprep.subr.bf16.mxu0 %v3607
    %3658 = vmatpush1.bf16.msra.mxu0 %v3606
    %3659 = vmatprep.subr.bf16.mxu0 %v3609
    %3660 = vmatpush1.bf16.msra.mxu0 %v3608
    %3661 = vmatprep.subr.bf16.mxu0 %v3611
    %3662 = vmatpush1.bf16.msra.mxu0 %v3610
    %3663 = vmatprep.subr.bf16.mxu0 %v3613
    %3664 = vmatpush1.bf16.msra.mxu0 %v3612
    %3665 = vmatprep.subr.bf16.mxu0 %v3615
    %3666 = vmatpush1.bf16.msra.mxu0 %v3614
    %3667 = vmatprep.subr.bf16.mxu0 %v3617
    %3668 = vmatpush1.bf16.msra.mxu0 %v3616
    %3669 = vmatprep.subr.bf16.mxu0 %v3619
    %3670 = vmatpush1.bf16.msra.mxu0 %v3618
    %3671 = vmatprep.subr.bf16.mxu0 %v3621
    %3672 = vmatpush1.bf16.msra.mxu0 %v3620
    %3673 = vmatprep.subr.bf16.mxu0 %v3623
    %3674 = vmatpush1.bf16.msra.mxu0 %v3622
    %3675 = vmatprep.subr.bf16.mxu0 0
    %3676 = vmatpush1.bf16.msra.mxu0 0
    %3677 = vmatprep.subr.bf16.mxu0 0
    %3678 = vmatpush1.bf16.msra.mxu0 0
    %3679 = vmatprep.subr.bf16.mxu0 0
    %3680 = vmatpush1.bf16.msra.mxu0 0
    %3681 = vmatprep.subr.bf16.mxu0 0
    %3682 = vmatpush1.bf16.msra.mxu0 0
    %3683 = vmatprep.mubr.bf16.mxu0 %v3649
    %3684 = vmatmul.mubr.bf16.gmra.mrb[0].mxu0 %v3394
    %v3685 = vpop.f32.mrb[0].mxu0
    %v3686 = vadd.f32 %v3522, %v3685
    %v3687 = vpop.f32.mrb[0].mxu0
    %v3688 = vadd.f32 %v3524, %v3687
    %v3689 = vpop.f32.mrb[0].mxu0
    %v3690 = vpop.f32.mrb[0].mxu0
    %3691 = vdwg.mxu0
    %v3692 = vld [vmem:[%s41] sm:$0xf]
    %v3693 = vpack.c.bf16 %v3692, %v3692
    %v3694 = vld [vmem:[%s49] sm:$0xff]
    %v3695 = vld [vmem:[%s49 + $0x8] sm:$0xff]
    %v3696 = vld [vmem:[%s49 + $0x10] sm:$0xff]
    %v3697 = vld [vmem:[%s49 + $0x18] sm:$0xff]
    %v3698 = vld [vmem:[%s49 + $0x20] sm:$0xff]
    %v3699 = vld [vmem:[%s49 + $0x28] sm:$0xff]
    %v3700 = vld [vmem:[%s49 + $0x30] sm:$0xff]
    %v3701 = vld [vmem:[%s49 + $0x38] sm:$0xff]
    %v3710 = vunpack.c.l.b16 %v3694
    %v3711 = vunpack.c.h.b16 %v3694
    %v3712 = vunpack.c.l.b16 %v3695
    %v3713 = vunpack.c.h.b16 %v3695
    %v3714 = vunpack.c.l.b16 %v3696
    %v3715 = vunpack.c.h.b16 %v3696
    %v3716 = vunpack.c.l.b16 %v3697
    %v3717 = vunpack.c.h.b16 %v3697
    %v3718 = vunpack.c.l.b16 %v3698
    %v3719 = vunpack.c.h.b16 %v3698
    %v3720 = vunpack.c.l.b16 %v3699
    %v3721 = vunpack.c.h.b16 %v3699
    %v3722 = vunpack.c.l.b16 %v3700
    %v3723 = vunpack.c.h.b16 %v3700
    %v3724 = vunpack.c.l.b16 %v3701
    %v3725 = vunpack.c.h.b16 %v3701
    %v3726 = vpack.c.b16 %v3712, %v3710
    %v3727 = vpack.c.b16 %v3713, %v3711
    %v3728 = vpack.c.b16 %v3716, %v3714
    %v3729 = vpack.c.b16 %v3717, %v3715
    %v3730 = vpack.c.b16 %v3720, %v3718
    %v3731 = vpack.c.b16 %v3721, %v3719
    %v3732 = vpack.c.b16 %v3724, %v3722
    %v3733 = vpack.c.b16 %v3725, %v3723
    %v3743 = vsel %vm2278, %v3693, 0
    %3745 = vmatprep.subr.bf16.mxu0 %v3727
    %3746 = vmatpush1.bf16.msra.mxu0 %v3726
    %3747 = vmatprep.subr.bf16.mxu0 %v3729
    %3748 = vmatpush1.bf16.msra.mxu0 %v3728
    %3749 = vmatprep.subr.bf16.mxu0 %v3731
    %3750 = vmatpush1.bf16.msra.mxu0 %v3730
    %3751 = vmatprep.subr.bf16.mxu0 %v3733
    %3752 = vmatpush1.bf16.msra.mxu0 %v3732
    %3753 = vmatprep.subr.bf16.mxu0 0
    %3754 = vmatpush1.bf16.msra.mxu0 0
    %3755 = vmatprep.subr.bf16.mxu0 0
    %3756 = vmatpush1.bf16.msra.mxu0 0
    %3757 = vmatprep.subr.bf16.mxu0 0
    %3758 = vmatpush1.bf16.msra.mxu0 0
    %3759 = vmatprep.subr.bf16.mxu0 0
    %3760 = vmatpush1.bf16.msra.mxu0 0
    %3761 = vmatprep.subr.bf16.mxu0 0
    %3762 = vmatpush1.bf16.msra.mxu0 0
    %3763 = vmatprep.subr.bf16.mxu0 0
    %3764 = vmatpush1.bf16.msra.mxu0 0
    %3765 = vmatprep.subr.bf16.mxu0 0
    %3766 = vmatpush1.bf16.msra.mxu0 0
    %3767 = vmatprep.subr.bf16.mxu0 0
    %3768 = vmatpush1.bf16.msra.mxu0 0
    %3769 = vmatprep.subr.bf16.mxu0 0
    %3770 = vmatpush1.bf16.msra.mxu0 0
    %3771 = vmatprep.subr.bf16.mxu0 0
    %3772 = vmatpush1.bf16.msra.mxu0 0
    %3773 = vmatprep.subr.bf16.mxu0 0
    %3774 = vmatpush1.bf16.msra.mxu0 0
    %3775 = vmatprep.subr.bf16.mxu0 0
    %3776 = vmatpush1.bf16.msra.mxu0 0
    %3777 = vmatprep.mubr.bf16.mxu0 0
    %3778 = vmatmul.mubr.bf16.gmra.mrb[0].mxu0 %v3743
    %v3779 = vpop.f32.mrb[0].mxu0
    %v3780 = vadd.f32 0.0, %v3779
    %v3781 = vpop.f32.mrb[0].mxu0
    %v3782 = vadd.f32 0.0, %v3781
    %v3783 = vpop.f32.mrb[0].mxu0
    %v3784 = vpop.f32.mrb[0].mxu0
    %3785 = vdwg.mxu0
    %v3786 = vadd.f32 %v3686, %v3780
    %v3787 = vadd.f32 %v3688, %v3782
    %v3788 = vld [vmem:[%s51] sm:$0x3]
    %v3790 = vlaneseq
    %v3791 = vshrl.u32 %v3790, 7
    %v3792 = vsub.s32 0, %v3791
    %v3793 = vrot.slane %v3788, %v3792
    %v3794 = vlaneseq
    %v3795 = vshrl.u32 %v3794, 7
    %v3796 = vsub.s32 1, %v3795
    %v3797 = vrot.slane %v3788, %v3796
    %v3800 = vadd.f32 %v3786, %v3793
    %v3801 = vadd.f32 %v3787, %v3797
    %v3802 = vmax.f32 %v3800, 0.0
    %v3803 = vmax.f32 %v3801, 0.0
    %v3804 = vpack.c.bf16 %v3390, %v3390
    %v3805 = vpack.c.bf16 %v3392, %v3392
    %v3806 = vld [vmem:[%s53] sm:$0xff]
    %v3807 = vld [vmem:[%s53 + $0x8] sm:$0xff]
    %v3808 = vld [vmem:[%s53 + $0x10] sm:$0xff]
    %v3809 = vld [vmem:[%s53 + $0x18] sm:$0xff]
    %v3810 = vld [vmem:[%s53 + $0x20] sm:$0xff]
    %v3811 = vld [vmem:[%s53 + $0x28] sm:$0xff]
    %v3812 = vld [vmem:[%s53 + $0x30] sm:$0xff]
    %v3813 = vld [vmem:[%s53 + $0x38] sm:$0xff]
    %v3814 = vld [vmem:[%s53 + $0x40] sm:$0xff]
    %v3815 = vld [vmem:[%s53 + $0x48] sm:$0xff]
    %v3816 = vld [vmem:[%s53 + $0x50] sm:$0xff]
    %v3817 = vld [vmem:[%s53 + $0x58] sm:$0xff]
    %v3818 = vld [vmem:[%s53 + $0x60] sm:$0xff]
    %v3819 = vld [vmem:[%s53 + $0x68] sm:$0xff]
    %v3820 = vld [vmem:[%s53 + $0x70] sm:$0xff]
    %v3821 = vld [vmem:[%s53 + $0x78] sm:$0xff]
    %v3822 = vld [vmem:[%s53 + $0x80] sm:$0xff]
    %v3823 = vld [vmem:[%s53 + $0x88] sm:$0xff]
    %v3824 = vld [vmem:[%s53 + $0x90] sm:$0xff]
    %v3825 = vld [vmem:[%s53 + $0x98] sm:$0xff]
    %v3826 = vld [vmem:[%s53 + $0xa0] sm:$0xff]
    %v3827 = vld [vmem:[%s53 + $0xa8] sm:$0xff]
    %v3828 = vld [vmem:[%s53 + $0xb0] sm:$0xff]
    %v3829 = vld [vmem:[%s53 + $0xb8] sm:$0xff]
    %v3830 = vpack.c.bf16 %v2858, %v2858
    %v3831 = vpack.c.bf16 %v2865, %v2865
    %v3832 = vpack.c.bf16 %v2872, %v2872
    %v3833 = vpack.c.bf16 %v2879, %v2879
    %v3834 = vld [vmem:[%s55] sm:$0xff]
    %v3835 = vld [vmem:[%s55 + $0x8] sm:$0xff]
    %v3836 = vld [vmem:[%s55 + $0x10] sm:$0xff]
    %v3837 = vld [vmem:[%s55 + $0x18] sm:$0xff]
    %v3838 = vld [vmem:[%s55 + $0x20] sm:$0xff]
    %v3839 = vld [vmem:[%s55 + $0x28] sm:$0xff]
    %v3840 = vld [vmem:[%s55 + $0x30] sm:$0xff]
    %v3841 = vld [vmem:[%s55 + $0x38] sm:$0xff]
    %v3846 = vunpack.c.l.b16 %v3830
    %v3847 = vunpack.c.l.b16 %v3831
    %v3848 = vunpack.c.l.b16 %v3832
    %v3849 = vunpack.c.l.b16 %v3833
    %v3850 = vsel %vm1139, %v3847, %v3846
    %v3851 = vsel %vm1141, %v3848, %v3850
    %v3852 = vsel %vm1143, %v3849, %v3851
    %v3853 = vpack.c.b16 %v3852, %v3852
    %v3862 = vunpack.c.l.b16 %v3834
    %v3863 = vunpack.c.h.b16 %v3834
    %v3864 = vunpack.c.l.b16 %v3835
    %v3865 = vunpack.c.h.b16 %v3835
    %v3866 = vunpack.c.l.b16 %v3836
    %v3867 = vunpack.c.h.b16 %v3836
    %v3868 = vunpack.c.l.b16 %v3837
    %v3869 = vunpack.c.h.b16 %v3837
    %v3870 = vunpack.c.l.b16 %v3838
    %v3871 = vunpack.c.h.b16 %v3838
    %v3872 = vunpack.c.l.b16 %v3839
    %v3873 = vunpack.c.h.b16 %v3839
    %v3874 = vunpack.c.l.b16 %v3840
    %v3875 = vunpack.c.h.b16 %v3840
    %v3876 = vunpack.c.l.b16 %v3841
    %v3877 = vunpack.c.h.b16 %v3841
    %v3878 = vpack.c.b16 %v3864, %v3862
    %v3879 = vpack.c.b16 %v3865, %v3863
    %v3880 = vpack.c.b16 %v3868, %v3866
    %v3881 = vpack.c.b16 %v3869, %v3867
    %v3882 = vpack.c.b16 %v3872, %v3870
    %v3883 = vpack.c.b16 %v3873, %v3871
    %v3884 = vpack.c.b16 %v3876, %v3874
    %v3885 = vpack.c.b16 %v3877, %v3875
    %v3895 = vsel %vm2278, %v3853, 0
    %3897 = vmatprep.subr.bf16.mxu0 %v3879
    %3898 = vmatpush1.bf16.msra.mxu0 %v3878
    %3899 = vmatprep.subr.bf16.mxu0 %v3881
    %3900 = vmatpush1.bf16.msra.mxu0 %v3880
    %3901 = vmatprep.subr.bf16.mxu0 %v3883
    %3902 = vmatpush1.bf16.msra.mxu0 %v3882
    %3903 = vmatprep.subr.bf16.mxu0 %v3885
    %3904 = vmatpush1.bf16.msra.mxu0 %v3884
    %3905 = vmatprep.subr.bf16.mxu0 0
    %3906 = vmatpush1.bf16.msra.mxu0 0
    %3907 = vmatprep.subr.bf16.mxu0 0
    %3908 = vmatpush1.bf16.msra.mxu0 0
    %3909 = vmatprep.subr.bf16.mxu0 0
    %3910 = vmatpush1.bf16.msra.mxu0 0
    %3911 = vmatprep.subr.bf16.mxu0 0
    %3912 = vmatpush1.bf16.msra.mxu0 0
    %3913 = vmatprep.subr.bf16.mxu0 0
    %3914 = vmatpush1.bf16.msra.mxu0 0
    %3915 = vmatprep.subr.bf16.mxu0 0
    %3916 = vmatpush1.bf16.msra.mxu0 0
    %3917 = vmatprep.subr.bf16.mxu0 0
    %3918 = vmatpush1.bf16.msra.mxu0 0
    %3919 = vmatprep.subr.bf16.mxu0 0
    %3920 = vmatpush1.bf16.msra.mxu0 0
    %3921 = vmatprep.subr.bf16.mxu0 0
    %3922 = vmatpush1.bf16.msra.mxu0 0
    %3923 = vmatprep.subr.bf16.mxu0 0
    %3924 = vmatpush1.bf16.msra.mxu0 0
    %3925 = vmatprep.subr.bf16.mxu0 0
    %3926 = vmatpush1.bf16.msra.mxu0 0
    %3927 = vmatprep.subr.bf16.mxu0 0
    %3928 = vmatpush1.bf16.msra.mxu0 0
    %3929 = vmatprep.mubr.bf16.mxu0 0
    %3930 = vmatmul.mubr.bf16.gmra.mrb[0].mxu0 %v3895
    %v3931 = vpop.f32.mrb[0].mxu0
    %v3932 = vadd.f32 0.0, %v3931
    %v3933 = vpop.f32.mrb[0].mxu0
    %v3934 = vadd.f32 0.0, %v3933
    %v3935 = vpop.f32.mrb[0].mxu0
    %v3936 = vpop.f32.mrb[0].mxu0
    %3937 = vdwg.mxu0
    %v3962 = vunpack.c.l.b16 %v3806
    %v3963 = vunpack.c.h.b16 %v3806
    %v3964 = vunpack.c.l.b16 %v3807
    %v3965 = vunpack.c.h.b16 %v3807
    %v3966 = vunpack.c.l.b16 %v3808
    %v3967 = vunpack.c.h.b16 %v3808
    %v3968 = vunpack.c.l.b16 %v3809
    %v3969 = vunpack.c.h.b16 %v3809
    %v3970 = vunpack.c.l.b16 %v3810
    %v3971 = vunpack.c.h.b16 %v3810
    %v3972 = vunpack.c.l.b16 %v3811
    %v3973 = vunpack.c.h.b16 %v3811
    %v3974 = vunpack.c.l.b16 %v3812
    %v3975 = vunpack.c.h.b16 %v3812
    %v3976 = vunpack.c.l.b16 %v3813
    %v3977 = vunpack.c.h.b16 %v3813
    %v3978 = vunpack.c.l.b16 %v3814
    %v3979 = vunpack.c.h.b16 %v3814
    %v3980 = vunpack.c.l.b16 %v3815
    %v3981 = vunpack.c.h.b16 %v3815
    %v3982 = vunpack.c.l.b16 %v3816
    %v3983 = vunpack.c.h.b16 %v3816
    %v3984 = vunpack.c.l.b16 %v3817
    %v3985 = vunpack.c.h.b16 %v3817
    %v3986 = vunpack.c.l.b16 %v3818
    %v3987 = vunpack.c.h.b16 %v3818
    %v3988 = vunpack.c.l.b16 %v3819
    %v3989 = vunpack.c.h.b16 %v3819
    %v3990 = vunpack.c.l.b16 %v3820
    %v3991 = vunpack.c.h.b16 %v3820
    %v3992 = vunpack.c.l.b16 %v3821
    %v3993 = vunpack.c.h.b16 %v3821
    %v3994 = vunpack.c.l.b16 %v3822
    %v3995 = vunpack.c.h.b16 %v3822
    %v3996 = vunpack.c.l.b16 %v3823
    %v3997 = vunpack.c.h.b16 %v3823
    %v3998 = vunpack.c.l.b16 %v3824
    %v3999 = vunpack.c.h.b16 %v3824
    %v4000 = vunpack.c.l.b16 %v3825
    %v4001 = vunpack.c.h.b16 %v3825
    %v4002 = vunpack.c.l.b16 %v3826
    %v4003 = vunpack.c.h.b16 %v3826
    %v4004 = vunpack.c.l.b16 %v3827
    %v4005 = vunpack.c.h.b16 %v3827
    %v4006 = vunpack.c.l.b16 %v3828
    %v4007 = vunpack.c.h.b16 %v3828
    %v4008 = vunpack.c.l.b16 %v3829
    %v4009 = vunpack.c.h.b16 %v3829
    %v4010 = vpack.c.b16 %v3964, %v3962
    %v4011 = vpack.c.b16 %v3965, %v3963
    %v4012 = vpack.c.b16 %v3968, %v3966
    %v4013 = vpack.c.b16 %v3969, %v3967
    %v4014 = vpack.c.b16 %v3972, %v3970
    %v4015 = vpack.c.b16 %v3973, %v3971
    %v4016 = vpack.c.b16 %v3976, %v3974
    %v4017 = vpack.c.b16 %v3977, %v3975
    %v4018 = vpack.c.b16 %v3980, %v3978
    %v4019 = vpack.c.b16 %v3981, %v3979
    %v4020 = vpack.c.b16 %v3984, %v3982
    %v4021 = vpack.c.b16 %v3985, %v3983
    %v4022 = vpack.c.b16 %v3988, %v3986
    %v4023 = vpack.c.b16 %v3989, %v3987
    %v4024 = vpack.c.b16 %v3992, %v3990
    %v4025 = vpack.c.b16 %v3993, %v3991
    %v4026 = vpack.c.b16 %v3996, %v3994
    %v4027 = vpack.c.b16 %v3997, %v3995
    %v4028 = vpack.c.b16 %v4000, %v3998
    %v4029 = vpack.c.b16 %v4001, %v3999
    %v4030 = vpack.c.b16 %v4004, %v4002
    %v4031 = vpack.c.b16 %v4005, %v4003
    %v4032 = vpack.c.b16 %v4008, %v4006
    %v4033 = vpack.c.b16 %v4009, %v4007
    %v4059 = vsel %vm2278, %v3805, 0
    %4061 = vmatprep.subr.bf16.mxu0 %v4011
    %4062 = vmatpush1.bf16.msra.mxu0 %v4010
    %4063 = vmatprep.subr.bf16.mxu0 %v4013
    %4064 = vmatpush1.bf16.msra.mxu0 %v4012
    %4065 = vmatprep.subr.bf16.mxu0 %v4015
    %4066 = vmatpush1.bf16.msra.mxu0 %v4014
    %4067 = vmatprep.subr.bf16.mxu0 %v4017
    %4068 = vmatpush1.bf16.msra.mxu0 %v4016
    %4069 = vmatprep.subr.bf16.mxu0 %v4019
    %4070 = vmatpush1.bf16.msra.mxu0 %v4018
    %4071 = vmatprep.subr.bf16.mxu0 %v4021
    %4072 = vmatpush1.bf16.msra.mxu0 %v4020
    %4073 = vmatprep.subr.bf16.mxu0 %v4023
    %4074 = vmatpush1.bf16.msra.mxu0 %v4022
    %4075 = vmatprep.subr.bf16.mxu0 %v4025
    %4076 = vmatpush1.bf16.msra.mxu0 %v4024
    %4077 = vmatprep.subr.bf16.mxu0 %v4027
    %4078 = vmatpush1.bf16.msra.mxu0 %v4026
    %4079 = vmatprep.subr.bf16.mxu0 %v4029
    %4080 = vmatpush1.bf16.msra.mxu0 %v4028
    %4081 = vmatprep.subr.bf16.mxu0 %v4031
    %4082 = vmatpush1.bf16.msra.mxu0 %v4030
    %4083 = vmatprep.subr.bf16.mxu0 %v4033
    %4084 = vmatpush1.bf16.msra.mxu0 %v4032
    %4085 = vmatprep.subr.bf16.mxu0 0
    %4086 = vmatpush1.bf16.msra.mxu0 0
    %4087 = vmatprep.subr.bf16.mxu0 0
    %4088 = vmatpush1.bf16.msra.mxu0 0
    %4089 = vmatprep.subr.bf16.mxu0 0
    %4090 = vmatpush1.bf16.msra.mxu0 0
    %4091 = vmatprep.subr.bf16.mxu0 0
    %4092 = vmatpush1.bf16.msra.mxu0 0
    %4093 = vmatprep.mubr.bf16.mxu0 %v4059
    %4094 = vmatmul.mubr.bf16.gmra.mrb[0].mxu0 %v3804
    %v4095 = vpop.f32.mrb[0].mxu0
    %v4096 = vadd.f32 %v3932, %v4095
    %v4097 = vpop.f32.mrb[0].mxu0
    %v4098 = vadd.f32 %v3934, %v4097
    %v4099 = vpop.f32.mrb[0].mxu0
    %v4100 = vpop.f32.mrb[0].mxu0
    %4101 = vdwg.mxu0
    %v4102 = vld [vmem:[%s43] sm:$0xf]
    %v4103 = vpack.c.bf16 %v4102, %v4102
    %v4104 = vld [vmem:[%s57] sm:$0xff]
    %v4105 = vld [vmem:[%s57 + $0x8] sm:$0xff]
    %v4106 = vld [vmem:[%s57 + $0x10] sm:$0xff]
    %v4107 = vld [vmem:[%s57 + $0x18] sm:$0xff]
    %v4108 = vld [vmem:[%s57 + $0x20] sm:$0xff]
    %v4109 = vld [vmem:[%s57 + $0x28] sm:$0xff]
    %v4110 = vld [vmem:[%s57 + $0x30] sm:$0xff]
    %v4111 = vld [vmem:[%s57 + $0x38] sm:$0xff]
    %v4120 = vunpack.c.l.b16 %v4104
    %v4121 = vunpack.c.h.b16 %v4104
    %v4122 = vunpack.c.l.b16 %v4105
    %v4123 = vunpack.c.h.b16 %v4105
    %v4124 = vunpack.c.l.b16 %v4106
    %v4125 = vunpack.c.h.b16 %v4106
    %v4126 = vunpack.c.l.b16 %v4107
    %v4127 = vunpack.c.h.b16 %v4107
    %v4128 = vunpack.c.l.b16 %v4108
    %v4129 = vunpack.c.h.b16 %v4108
    %v4130 = vunpack.c.l.b16 %v4109
    %v4131 = vunpack.c.h.b16 %v4109
    %v4132 = vunpack.c.l.b16 %v4110
    %v4133 = vunpack.c.h.b16 %v4110
    %v4134 = vunpack.c.l.b16 %v4111
    %v4135 = vunpack.c.h.b16 %v4111
    %v4136 = vpack.c.b16 %v4122, %v4120
    %v4137 = vpack.c.b16 %v4123, %v4121
    %v4138 = vpack.c.b16 %v4126, %v4124
    %v4139 = vpack.c.b16 %v4127, %v4125
    %v4140 = vpack.c.b16 %v4130, %v4128
    %v4141 = vpack.c.b16 %v4131, %v4129
    %v4142 = vpack.c.b16 %v4134, %v4132
    %v4143 = vpack.c.b16 %v4135, %v4133
    %v4153 = vsel %vm2278, %v4103, 0
    %4155 = vmatprep.subr.bf16.mxu0 %v4137
    %4156 = vmatpush1.bf16.msra.mxu0 %v4136
    %4157 = vmatprep.subr.bf16.mxu0 %v4139
    %4158 = vmatpush1.bf16.msra.mxu0 %v4138
    %4159 = vmatprep.subr.bf16.mxu0 %v4141
    %4160 = vmatpush1.bf16.msra.mxu0 %v4140
    %4161 = vmatprep.subr.bf16.mxu0 %v4143
    %4162 = vmatpush1.bf16.msra.mxu0 %v4142
    %4163 = vmatprep.subr.bf16.mxu0 0
    %4164 = vmatpush1.bf16.msra.mxu0 0
    %4165 = vmatprep.subr.bf16.mxu0 0
    %4166 = vmatpush1.bf16.msra.mxu0 0
    %4167 = vmatprep.subr.bf16.mxu0 0
    %4168 = vmatpush1.bf16.msra.mxu0 0
    %4169 = vmatprep.subr.bf16.mxu0 0
    %4170 = vmatpush1.bf16.msra.mxu0 0
    %4171 = vmatprep.subr.bf16.mxu0 0
    %4172 = vmatpush1.bf16.msra.mxu0 0
    %4173 = vmatprep.subr.bf16.mxu0 0
    %4174 = vmatpush1.bf16.msra.mxu0 0
    %4175 = vmatprep.subr.bf16.mxu0 0
    %4176 = vmatpush1.bf16.msra.mxu0 0
    %4177 = vmatprep.subr.bf16.mxu0 0
    %4178 = vmatpush1.bf16.msra.mxu0 0
    %4179 = vmatprep.subr.bf16.mxu0 0
    %4180 = vmatpush1.bf16.msra.mxu0 0
    %4181 = vmatprep.subr.bf16.mxu0 0
    %4182 = vmatpush1.bf16.msra.mxu0 0
    %4183 = vmatprep.subr.bf16.mxu0 0
    %4184 = vmatpush1.bf16.msra.mxu0 0
    %4185 = vmatprep.subr.bf16.mxu0 0
    %4186 = vmatpush1.bf16.msra.mxu0 0
    %4187 = vmatprep.mubr.bf16.mxu0 0
    %4188 = vmatmul.mubr.bf16.gmra.mrb[0].mxu0 %v4153
    %v4189 = vpop.f32.mrb[0].mxu0
    %v4190 = vadd.f32 0.0, %v4189
    %v4191 = vpop.f32.mrb[0].mxu0
    %v4192 = vadd.f32 0.0, %v4191
    %v4193 = vpop.f32.mrb[0].mxu0
    %v4194 = vpop.f32.mrb[0].mxu0
    %4195 = vdwg.mxu0
    %v4196 = vadd.f32 %v4096, %v4190
    %v4197 = vadd.f32 %v4098, %v4192
    %v4198 = vpack.c.bf16 %v2248, %v2248
    %v4199 = vld [vmem:[%s59] sm:$0xff]
    %v4200 = vld [vmem:[%s59 + $0x8] sm:$0xff]
    %v4201 = vld [vmem:[%s59 + $0x10] sm:$0xff]
    %v4202 = vld [vmem:[%s59 + $0x18] sm:$0xff]
    %v4203 = vld [vmem:[%s59 + $0x20] sm:$0xff]
    %v4204 = vld [vmem:[%s59 + $0x28] sm:$0xff]
    %v4205 = vld [vmem:[%s59 + $0x30] sm:$0xff]
    %v4206 = vld [vmem:[%s59 + $0x38] sm:$0xff]
    %v4207 = vld [vmem:[%s59 + $0x40] sm:$0xff]
    %v4208 = vld [vmem:[%s59 + $0x48] sm:$0xff]
    %v4209 = vld [vmem:[%s59 + $0x50] sm:$0xff]
    %v4210 = vld [vmem:[%s59 + $0x58] sm:$0xff]
    %v4211 = vld [vmem:[%s59 + $0x60] sm:$0xff]
    %v4212 = vld [vmem:[%s59 + $0x68] sm:$0xff]
    %v4213 = vld [vmem:[%s59 + $0x70] sm:$0xff]
    %v4214 = vld [vmem:[%s59 + $0x78] sm:$0xff]
    %v4216 = vrot.slane %v4198, 2
    %v4234 = vunpack.c.l.b16 %v4199
    %v4235 = vunpack.c.h.b16 %v4199
    %v4236 = vunpack.c.l.b16 %v4200
    %v4237 = vunpack.c.h.b16 %v4200
    %v4238 = vunpack.c.l.b16 %v4201
    %v4239 = vunpack.c.h.b16 %v4201
    %v4240 = vunpack.c.l.b16 %v4202
    %v4241 = vunpack.c.h.b16 %v4202
    %v4242 = vunpack.c.l.b16 %v4203
    %v4243 = vunpack.c.h.b16 %v4203
    %v4244 = vunpack.c.l.b16 %v4204
    %v4245 = vunpack.c.h.b16 %v4204
    %v4246 = vunpack.c.l.b16 %v4205
    %v4247 = vunpack.c.h.b16 %v4205
    %v4248 = vunpack.c.l.b16 %v4206
    %v4249 = vunpack.c.h.b16 %v4206
    %v4250 = vunpack.c.l.b16 %v4207
    %v4251 = vunpack.c.h.b16 %v4207
    %v4252 = vunpack.c.l.b16 %v4208
    %v4253 = vunpack.c.h.b16 %v4208
    %v4254 = vunpack.c.l.b16 %v4209
    %v4255 = vunpack.c.h.b16 %v4209
    %v4256 = vunpack.c.l.b16 %v4210
    %v4257 = vunpack.c.h.b16 %v4210
    %v4258 = vunpack.c.l.b16 %v4211
    %v4259 = vunpack.c.h.b16 %v4211
    %v4260 = vunpack.c.l.b16 %v4212
    %v4261 = vunpack.c.h.b16 %v4212
    %v4262 = vunpack.c.l.b16 %v4213
    %v4263 = vunpack.c.h.b16 %v4213
    %v4264 = vunpack.c.l.b16 %v4214
    %v4265 = vunpack.c.h.b16 %v4214
    %v4266 = vpack.c.b16 %v4236, %v4234
    %v4267 = vpack.c.b16 %v4237, %v4235
    %v4268 = vpack.c.b16 %v4240, %v4238
    %v4269 = vpack.c.b16 %v4241, %v4239
    %v4270 = vpack.c.b16 %v4244, %v4242
    %v4271 = vpack.c.b16 %v4245, %v4243
    %v4272 = vpack.c.b16 %v4248, %v4246
    %v4273 = vpack.c.b16 %v4249, %v4247
    %v4274 = vpack.c.b16 %v4252, %v4250
    %v4275 = vpack.c.b16 %v4253, %v4251
    %v4276 = vpack.c.b16 %v4256, %v4254
    %v4277 = vpack.c.b16 %v4257, %v4255
    %v4278 = vpack.c.b16 %v4260, %v4258
    %v4279 = vpack.c.b16 %v4261, %v4259
    %v4280 = vpack.c.b16 %v4264, %v4262
    %v4281 = vpack.c.b16 %v4265, %v4263
    %4298 = vmatprep.subr.bf16.mxu0 %v4267
    %4299 = vmatpush1.bf16.msra.mxu0 %v4266
    %4300 = vmatprep.subr.bf16.mxu0 %v4269
    %4301 = vmatpush1.bf16.msra.mxu0 %v4268
    %4302 = vmatprep.subr.bf16.mxu0 %v4271
    %4303 = vmatpush1.bf16.msra.mxu0 %v4270
    %4304 = vmatprep.subr.bf16.mxu0 %v4273
    %4305 = vmatpush1.bf16.msra.mxu0 %v4272
    %4306 = vmatprep.subr.bf16.mxu0 %v4275
    %4307 = vmatpush1.bf16.msra.mxu0 %v4274
    %4308 = vmatprep.subr.bf16.mxu0 %v4277
    %4309 = vmatpush1.bf16.msra.mxu0 %v4276
    %4310 = vmatprep.subr.bf16.mxu0 %v4279
    %4311 = vmatpush1.bf16.msra.mxu0 %v4278
    %4312 = vmatprep.subr.bf16.mxu0 %v4281
    %4313 = vmatpush1.bf16.msra.mxu0 %v4280
    %4314 = vmatprep.subr.bf16.mxu0 0
    %4315 = vmatpush1.bf16.msra.mxu0 0
    %4316 = vmatprep.subr.bf16.mxu0 0
    %4317 = vmatpush1.bf16.msra.mxu0 0
    %4318 = vmatprep.subr.bf16.mxu0 0
    %4319 = vmatpush1.bf16.msra.mxu0 0
    %4320 = vmatprep.subr.bf16.mxu0 0
    %4321 = vmatpush1.bf16.msra.mxu0 0
    %4322 = vmatprep.subr.bf16.mxu0 0
    %4323 = vmatpush1.bf16.msra.mxu0 0
    %4324 = vmatprep.subr.bf16.mxu0 0
    %4325 = vmatpush1.bf16.msra.mxu0 0
    %4326 = vmatprep.subr.bf16.mxu0 0
    %4327 = vmatpush1.bf16.msra.mxu0 0
    %4328 = vmatprep.subr.bf16.mxu0 0
    %4329 = vmatpush1.bf16.msra.mxu0 0
    %4330 = vmatprep.mubr.bf16.mxu0 0
    %4331 = vmatmul.mubr.bf16.gmra.mrb[0].mxu0 %v4216
    %v4332 = vpop.f32.mrb[0].mxu0
    %v4333 = vadd.f32 0.0, %v4332
    %v4334 = vpop.f32.mrb[0].mxu0
    %v4335 = vadd.f32 0.0, %v4334
    %v4336 = vpop.f32.mrb[0].mxu0
    %v4337 = vpop.f32.mrb[0].mxu0
    %4338 = vdwg.mxu0
    %v4339 = vadd.f32 %v4196, %v4333
    %v4340 = vadd.f32 %v4197, %v4335
    %v4341 = vld [vmem:[%s61] sm:$0x3]
    %v4343 = vlaneseq
    %v4344 = vshrl.u32 %v4343, 7
    %v4345 = vsub.s32 0, %v4344
    %v4346 = vrot.slane %v4341, %v4345
    %v4347 = vlaneseq
    %v4348 = vshrl.u32 %v4347, 7
    %v4349 = vsub.s32 1, %v4348
    %v4350 = vrot.slane %v4341, %v4349
    %v4353 = vadd.f32 %v4339, %v4346
    %v4354 = vadd.f32 %v4340, %v4350
    %v4355 = vmax.f32 %v4353, 0.0
    %v4356 = vmax.f32 %v4354, 0.0
    %v4357 = vpack.c.bf16 %v3802, %v3802
    %v4358 = vpack.c.bf16 %v3803, %v3803
    %v4359 = vld [vmem:[%s63] sm:$0xff]
    %v4360 = vld [vmem:[%s63 + $0x8] sm:$0xf]
    %v4361 = vld [vmem:[%s63 + $0xc] sm:$0xff]
    %v4362 = vld [vmem:[%s63 + $0x14] sm:$0xf]
    %v4363 = vld [vmem:[%s63 + $0x18] sm:$0xff]
    %v4364 = vld [vmem:[%s63 + $0x20] sm:$0xf]
    %v4365 = vld [vmem:[%s63 + $0x24] sm:$0xff]
    %v4366 = vld [vmem:[%s63 + $0x2c] sm:$0xf]
    %v4367 = vld [vmem:[%s63 + $0x30] sm:$0xff]
    %v4368 = vld [vmem:[%s63 + $0x38] sm:$0xf]
    %v4369 = vld [vmem:[%s63 + $0x3c] sm:$0xff]
    %v4370 = vld [vmem:[%s63 + $0x44] sm:$0xf]
    %v4371 = vld [vmem:[%s63 + $0x48] sm:$0xff]
    %v4372 = vld [vmem:[%s63 + $0x50] sm:$0xf]
    %v4373 = vld [vmem:[%s63 + $0x54] sm:$0xff]
    %v4374 = vld [vmem:[%s63 + $0x5c] sm:$0xf]
    %v4375 = vld [vmem:[%s63 + $0x60] sm:$0xff]
    %v4376 = vld [vmem:[%s63 + $0x68] sm:$0xf]
    %v4377 = vld [vmem:[%s63 + $0x6c] sm:$0xff]
    %v4378 = vld [vmem:[%s63 + $0x74] sm:$0xf]
    %v4379 = vld [vmem:[%s63 + $0x78] sm:$0xff]
    %v4380 = vld [vmem:[%s63 + $0x80] sm:$0xf]
    %v4381 = vld [vmem:[%s63 + $0x84] sm:$0xff]
    %v4382 = vld [vmem:[%s63 + $0x8c] sm:$0xf]
    %v4383 = vld [vmem:[%s63 + $0x90] sm:$0xff]
    %v4384 = vld [vmem:[%s63 + $0x98] sm:$0xf]
    %v4385 = vld [vmem:[%s63 + $0x9c] sm:$0xff]
    %v4386 = vld [vmem:[%s63 + $0xa4] sm:$0xf]
    %v4387 = vld [vmem:[%s63 + $0xa8] sm:$0xff]
    %v4388 = vld [vmem:[%s63 + $0xb0] sm:$0xf]
    %v4389 = vld [vmem:[%s63 + $0xb4] sm:$0xff]
    %v4390 = vld [vmem:[%s63 + $0xbc] sm:$0xf]
    %v4391 = vld [vmem:[%s63 + $0xc0] sm:$0xff]
    %v4392 = vld [vmem:[%s63 + $0xc8] sm:$0xf]
    %v4393 = vld [vmem:[%s63 + $0xcc] sm:$0xff]
    %v4394 = vld [vmem:[%s63 + $0xd4] sm:$0xf]
    %v4395 = vld [vmem:[%s63 + $0xd8] sm:$0xff]
    %v4396 = vld [vmem:[%s63 + $0xe0] sm:$0xf]
    %v4397 = vld [vmem:[%s63 + $0xe4] sm:$0xff]
    %v4398 = vld [vmem:[%s63 + $0xec] sm:$0xf]
    %v4399 = vld [vmem:[%s63 + $0xf0] sm:$0xff]
    %v4400 = vld [vmem:[%s63 + $0xf8] sm:$0xf]
    %v4401 = vld [vmem:[%s63 + $0xfc] sm:$0xff]
    %v4402 = vld [vmem:[%s63 + $0x104] sm:$0xf]
    %v4403 = vld [vmem:[%s63 + $0x108] sm:$0xff]
    %v4404 = vld [vmem:[%s63 + $0x110] sm:$0xf]
    %v4405 = vld [vmem:[%s63 + $0x114] sm:$0xff]
    %v4406 = vld [vmem:[%s63 + $0x11c] sm:$0xf]
    %v4407 = vld [vmem:[%s63 + $0x120] sm:$0xff]
    %v4408 = vld [vmem:[%s63 + $0x128] sm:$0xf]
    %v4409 = vld [vmem:[%s63 + $0x12c] sm:$0xff]
    %v4410 = vld [vmem:[%s63 + $0x134] sm:$0xf]
    %v4411 = vld [vmem:[%s63 + $0x138] sm:$0xff]
    %v4412 = vld [vmem:[%s63 + $0x140] sm:$0xf]
    %v4413 = vld [vmem:[%s63 + $0x144] sm:$0xff]
    %v4414 = vld [vmem:[%s63 + $0x14c] sm:$0xf]
    %v4415 = vld [vmem:[%s63 + $0x150] sm:$0xff]
    %v4416 = vld [vmem:[%s63 + $0x158] sm:$0xf]
    %v4417 = vld [vmem:[%s63 + $0x15c] sm:$0xff]
    %v4418 = vld [vmem:[%s63 + $0x164] sm:$0xf]
    %v4419 = vld [vmem:[%s63 + $0x168] sm:$0xff]
    %v4420 = vld [vmem:[%s63 + $0x170] sm:$0xf]
    %v4421 = vld [vmem:[%s63 + $0x174] sm:$0xff]
    %v4422 = vld [vmem:[%s63 + $0x17c] sm:$0xf]
    %v4423 = vpack.c.bf16 %v4355, %v4355
    %v4424 = vpack.c.bf16 %v4356, %v4356
    %v4425 = vld [vmem:[%s65] sm:$0xff]
    %v4426 = vld [vmem:[%s65 + $0x8] sm:$0xf]
    %v4427 = vld [vmem:[%s65 + $0xc] sm:$0xff]
    %v4428 = vld [vmem:[%s65 + $0x14] sm:$0xf]
    %v4429 = vld [vmem:[%s65 + $0x18] sm:$0xff]
    %v4430 = vld [vmem:[%s65 + $0x20] sm:$0xf]
    %v4431 = vld [vmem:[%s65 + $0x24] sm:$0xff]
    %v4432 = vld [vmem:[%s65 + $0x2c] sm:$0xf]
    %v4433 = vld [vmem:[%s65 + $0x30] sm:$0xff]
    %v4434 = vld [vmem:[%s65 + $0x38] sm:$0xf]
    %v4435 = vld [vmem:[%s65 + $0x3c] sm:$0xff]
    %v4436 = vld [vmem:[%s65 + $0x44] sm:$0xf]
    %v4437 = vld [vmem:[%s65 + $0x48] sm:$0xff]
    %v4438 = vld [vmem:[%s65 + $0x50] sm:$0xf]
    %v4439 = vld [vmem:[%s65 + $0x54] sm:$0xff]
    %v4440 = vld [vmem:[%s65 + $0x5c] sm:$0xf]
    %v4441 = vld [vmem:[%s65 + $0x60] sm:$0xff]
    %v4442 = vld [vmem:[%s65 + $0x68] sm:$0xf]
    %v4443 = vld [vmem:[%s65 + $0x6c] sm:$0xff]
    %v4444 = vld [vmem:[%s65 + $0x74] sm:$0xf]
    %v4445 = vld [vmem:[%s65 + $0x78] sm:$0xff]
    %v4446 = vld [vmem:[%s65 + $0x80] sm:$0xf]
    %v4447 = vld [vmem:[%s65 + $0x84] sm:$0xff]
    %v4448 = vld [vmem:[%s65 + $0x8c] sm:$0xf]
    %v4449 = vld [vmem:[%s65 + $0x90] sm:$0xff]
    %v4450 = vld [vmem:[%s65 + $0x98] sm:$0xf]
    %v4451 = vld [vmem:[%s65 + $0x9c] sm:$0xff]
    %v4452 = vld [vmem:[%s65 + $0xa4] sm:$0xf]
    %v4453 = vld [vmem:[%s65 + $0xa8] sm:$0xff]
    %v4454 = vld [vmem:[%s65 + $0xb0] sm:$0xf]
    %v4455 = vld [vmem:[%s65 + $0xb4] sm:$0xff]
    %v4456 = vld [vmem:[%s65 + $0xbc] sm:$0xf]
    %v4457 = vld [vmem:[%s65 + $0xc0] sm:$0xff]
    %v4458 = vld [vmem:[%s65 + $0xc8] sm:$0xf]
    %v4459 = vld [vmem:[%s65 + $0xcc] sm:$0xff]
    %v4460 = vld [vmem:[%s65 + $0xd4] sm:$0xf]
    %v4461 = vld [vmem:[%s65 + $0xd8] sm:$0xff]
    %v4462 = vld [vmem:[%s65 + $0xe0] sm:$0xf]
    %v4463 = vld [vmem:[%s65 + $0xe4] sm:$0xff]
    %v4464 = vld [vmem:[%s65 + $0xec] sm:$0xf]
    %v4465 = vld [vmem:[%s65 + $0xf0] sm:$0xff]
    %v4466 = vld [vmem:[%s65 + $0xf8] sm:$0xf]
    %v4467 = vld [vmem:[%s65 + $0xfc] sm:$0xff]
    %v4468 = vld [vmem:[%s65 + $0x104] sm:$0xf]
    %v4469 = vld [vmem:[%s65 + $0x108] sm:$0xff]
    %v4470 = vld [vmem:[%s65 + $0x110] sm:$0xf]
    %v4471 = vld [vmem:[%s65 + $0x114] sm:$0xff]
    %v4472 = vld [vmem:[%s65 + $0x11c] sm:$0xf]
    %v4473 = vld [vmem:[%s65 + $0x120] sm:$0xff]
    %v4474 = vld [vmem:[%s65 + $0x128] sm:$0xf]
    %v4475 = vld [vmem:[%s65 + $0x12c] sm:$0xff]
    %v4476 = vld [vmem:[%s65 + $0x134] sm:$0xf]
    %v4477 = vld [vmem:[%s65 + $0x138] sm:$0xff]
    %v4478 = vld [vmem:[%s65 + $0x140] sm:$0xf]
    %v4479 = vld [vmem:[%s65 + $0x144] sm:$0xff]
    %v4480 = vld [vmem:[%s65 + $0x14c] sm:$0xf]
    %v4481 = vld [vmem:[%s65 + $0x150] sm:$0xff]
    %v4482 = vld [vmem:[%s65 + $0x158] sm:$0xf]
    %v4483 = vld [vmem:[%s65 + $0x15c] sm:$0xff]
    %v4484 = vld [vmem:[%s65 + $0x164] sm:$0xf]
    %v4485 = vld [vmem:[%s65 + $0x168] sm:$0xff]
    %v4486 = vld [vmem:[%s65 + $0x170] sm:$0xf]
    %v4487 = vld [vmem:[%s65 + $0x174] sm:$0xff]
    %v4488 = vld [vmem:[%s65 + $0x17c] sm:$0xf]
    %v4553 = vunpack.c.l.b16 %v4425
    %v4554 = vunpack.c.h.b16 %v4425
    %v4555 = vunpack.c.l.b16 %v4426
    %v4556 = vunpack.c.l.b16 %v4427
    %v4557 = vunpack.c.h.b16 %v4427
    %v4558 = vunpack.c.l.b16 %v4428
    %v4559 = vunpack.c.l.b16 %v4429
    %v4560 = vunpack.c.h.b16 %v4429
    %v4561 = vunpack.c.l.b16 %v4430
    %v4562 = vunpack.c.l.b16 %v4431
    %v4563 = vunpack.c.h.b16 %v4431
    %v4564 = vunpack.c.l.b16 %v4432
    %v4565 = vunpack.c.l.b16 %v4433
    %v4566 = vunpack.c.h.b16 %v4433
    %v4567 = vunpack.c.l.b16 %v4434
    %v4568 = vunpack.c.l.b16 %v4435
    %v4569 = vunpack.c.h.b16 %v4435
    %v4570 = vunpack.c.l.b16 %v4436
    %v4571 = vunpack.c.l.b16 %v4437
    %v4572 = vunpack.c.h.b16 %v4437
    %v4573 = vunpack.c.l.b16 %v4438
    %v4574 = vunpack.c.l.b16 %v4439
    %v4575 = vunpack.c.h.b16 %v4439
    %v4576 = vunpack.c.l.b16 %v4440
    %v4577 = vunpack.c.l.b16 %v4441
    %v4578 = vunpack.c.h.b16 %v4441
    %v4579 = vunpack.c.l.b16 %v4442
    %v4580 = vunpack.c.l.b16 %v4443
    %v4581 = vunpack.c.h.b16 %v4443
    %v4582 = vunpack.c.l.b16 %v4444
    %v4583 = vunpack.c.l.b16 %v4445
    %v4584 = vunpack.c.h.b16 %v4445
    %v4585 = vunpack.c.l.b16 %v4446
    %v4586 = vunpack.c.l.b16 %v4447
    %v4587 = vunpack.c.h.b16 %v4447
    %v4588 = vunpack.c.l.b16 %v4448
    %v4589 = vunpack.c.l.b16 %v4449
    %v4590 = vunpack.c.h.b16 %v4449
    %v4591 = vunpack.c.l.b16 %v4450
    %v4592 = vunpack.c.l.b16 %v4451
    %v4593 = vunpack.c.h.b16 %v4451
    %v4594 = vunpack.c.l.b16 %v4452
    %v4595 = vunpack.c.l.b16 %v4453
    %v4596 = vunpack.c.h.b16 %v4453
    %v4597 = vunpack.c.l.b16 %v4454
    %v4598 = vunpack.c.l.b16 %v4455
    %v4599 = vunpack.c.h.b16 %v4455
    %v4600 = vunpack.c.l.b16 %v4456
    %v4601 = vunpack.c.l.b16 %v4457
    %v4602 = vunpack.c.h.b16 %v4457
    %v4603 = vunpack.c.l.b16 %v4458
    %v4604 = vunpack.c.l.b16 %v4459
    %v4605 = vunpack.c.h.b16 %v4459
    %v4606 = vunpack.c.l.b16 %v4460
    %v4607 = vunpack.c.l.b16 %v4461
    %v4608 = vunpack.c.h.b16 %v4461
    %v4609 = vunpack.c.l.b16 %v4462
    %v4610 = vunpack.c.l.b16 %v4463
    %v4611 = vunpack.c.h.b16 %v4463
    %v4612 = vunpack.c.l.b16 %v4464
    %v4613 = vunpack.c.l.b16 %v4465
    %v4614 = vunpack.c.h.b16 %v4465
    %v4615 = vunpack.c.l.b16 %v4466
    %v4616 = vunpack.c.l.b16 %v4467
    %v4617 = vunpack.c.h.b16 %v4467
    %v4618 = vunpack.c.l.b16 %v4468
    %v4619 = vunpack.c.l.b16 %v4469
    %v4620 = vunpack.c.h.b16 %v4469
    %v4621 = vunpack.c.l.b16 %v4470
    %v4622 = vunpack.c.l.b16 %v4471
    %v4623 = vunpack.c.h.b16 %v4471
    %v4624 = vunpack.c.l.b16 %v4472
    %v4625 = vunpack.c.l.b16 %v4473
    %v4626 = vunpack.c.h.b16 %v4473
    %v4627 = vunpack.c.l.b16 %v4474
    %v4628 = vunpack.c.l.b16 %v4475
    %v4629 = vunpack.c.h.b16 %v4475
    %v4630 = vunpack.c.l.b16 %v4476
    %v4631 = vunpack.c.l.b16 %v4477
    %v4632 = vunpack.c.h.b16 %v4477
    %v4633 = vunpack.c.l.b16 %v4478
    %v4634 = vunpack.c.l.b16 %v4479
    %v4635 = vunpack.c.h.b16 %v4479
    %v4636 = vunpack.c.l.b16 %v4480
    %v4637 = vunpack.c.l.b16 %v4481
    %v4638 = vunpack.c.h.b16 %v4481
    %v4639 = vunpack.c.l.b16 %v4482
    %v4640 = vunpack.c.l.b16 %v4483
    %v4641 = vunpack.c.h.b16 %v4483
    %v4642 = vunpack.c.l.b16 %v4484
    %v4643 = vunpack.c.l.b16 %v4485
    %v4644 = vunpack.c.h.b16 %v4485
    %v4645 = vunpack.c.l.b16 %v4486
    %v4646 = vunpack.c.l.b16 %v4487
    %v4647 = vunpack.c.h.b16 %v4487
    %v4648 = vunpack.c.l.b16 %v4488
    %v4649 = vpack.c.b16 %v4556, %v4553
    %v4650 = vpack.c.b16 %v4557, %v4554
    %v4651 = vpack.c.b16 %v4558, %v4555
    %v4652 = vpack.c.b16 %v4562, %v4559
    %v4653 = vpack.c.b16 %v4563, %v4560
    %v4654 = vpack.c.b16 %v4564, %v4561
    %v4655 = vpack.c.b16 %v4568, %v4565
    %v4656 = vpack.c.b16 %v4569, %v4566
    %v4657 = vpack.c.b16 %v4570, %v4567
    %v4658 = vpack.c.b16 %v4574, %v4571
    %v4659 = vpack.c.b16 %v4575, %v4572
    %v4660 = vpack.c.b16 %v4576, %v4573
    %v4661 = vpack.c.b16 %v4580, %v4577
    %v4662 = vpack.c.b16 %v4581, %v4578
    %v4663 = vpack.c.b16 %v4582, %v4579
    %v4664 = vpack.c.b16 %v4586, %v4583
    %v4665 = vpack.c.b16 %v4587, %v4584
    %v4666 = vpack.c.b16 %v4588, %v4585
    %v4667 = vpack.c.b16 %v4592, %v4589
    %v4668 = vpack.c.b16 %v4593, %v4590
    %v4669 = vpack.c.b16 %v4594, %v4591
    %v4670 = vpack.c.b16 %v4598, %v4595
    %v4671 = vpack.c.b16 %v4599, %v4596
    %v4672 = vpack.c.b16 %v4600, %v4597
    %v4673 = vpack.c.b16 %v4604, %v4601
    %v4674 = vpack.c.b16 %v4605, %v4602
    %v4675 = vpack.c.b16 %v4606, %v4603
    %v4676 = vpack.c.b16 %v4610, %v4607
    %v4677 = vpack.c.b16 %v4611, %v4608
    %v4678 = vpack.c.b16 %v4612, %v4609
    %v4679 = vpack.c.b16 %v4616, %v4613
    %v4680 = vpack.c.b16 %v4617, %v4614
    %v4681 = vpack.c.b16 %v4618, %v4615
    %v4682 = vpack.c.b16 %v4622, %v4619
    %v4683 = vpack.c.b16 %v4623, %v4620
    %v4684 = vpack.c.b16 %v4624, %v4621
    %v4685 = vpack.c.b16 %v4628, %v4625
    %v4686 = vpack.c.b16 %v4629, %v4626
    %v4687 = vpack.c.b16 %v4630, %v4627
    %v4688 = vpack.c.b16 %v4634, %v4631
    %v4689 = vpack.c.b16 %v4635, %v4632
    %v4690 = vpack.c.b16 %v4636, %v4633
    %v4691 = vpack.c.b16 %v4640, %v4637
    %v4692 = vpack.c.b16 %v4641, %v4638
    %v4693 = vpack.c.b16 %v4642, %v4639
    %v4694 = vpack.c.b16 %v4646, %v4643
    %v4695 = vpack.c.b16 %v4647, %v4644
    %v4696 = vpack.c.b16 %v4648, %v4645
    %4745 = vmatprep.subr.bf16.mxu0 %v4650
    %4746 = vmatpush1.bf16.msra.mxu0 %v4649
    %4747 = vmatprep.subr.bf16.mxu0 %v4653
    %4748 = vmatpush1.bf16.msra.mxu0 %v4652
    %4749 = vmatprep.subr.bf16.mxu0 %v4656
    %4750 = vmatpush1.bf16.msra.mxu0 %v4655
    %4751 = vmatprep.subr.bf16.mxu0 %v4659
    %4752 = vmatpush1.bf16.msra.mxu0 %v4658
    %4753 = vmatprep.subr.bf16.mxu0 %v4662
    %4754 = vmatpush1.bf16.msra.mxu0 %v4661
    %4755 = vmatprep.subr.bf16.mxu0 %v4665
    %4756 = vmatpush1.bf16.msra.mxu0 %v4664
    %4757 = vmatprep.subr.bf16.mxu0 %v4668
    %4758 = vmatpush1.bf16.msra.mxu0 %v4667
    %4759 = vmatprep.subr.bf16.mxu0 %v4671
    %4760 = vmatpush1.bf16.msra.mxu0 %v4670
    %4761 = vmatprep.subr.bf16.mxu0 %v4674
    %4762 = vmatpush1.bf16.msra.mxu0 %v4673
    %4763 = vmatprep.subr.bf16.mxu0 %v4677
    %4764 = vmatpush1.bf16.msra.mxu0 %v4676
    %4765 = vmatprep.subr.bf16.mxu0 %v4680
    %4766 = vmatpush1.bf16.msra.mxu0 %v4679
    %4767 = vmatprep.subr.bf16.mxu0 %v4683
    %4768 = vmatpush1.bf16.msra.mxu0 %v4682
    %4769 = vmatprep.subr.bf16.mxu0 %v4686
    %4770 = vmatpush1.bf16.msra.mxu0 %v4685
    %4771 = vmatprep.subr.bf16.mxu0 %v4689
    %4772 = vmatpush1.bf16.msra.mxu0 %v4688
    %4773 = vmatprep.subr.bf16.mxu0 %v4692
    %4774 = vmatpush1.bf16.msra.mxu0 %v4691
    %4775 = vmatprep.subr.bf16.mxu0 %v4695
    %4776 = vmatpush1.bf16.msra.mxu0 %v4694
    %4777 = vmatprep.mubr.bf16.mxu0 %v4424
    %4778 = vmatmul.mubr.bf16.gmra.mrb[0].mxu0 %v4423
    %v4779 = vpop.f32.mrb[0].mxu0
    %v4780 = vadd.f32 0.0, %v4779
    %v4781 = vpop.f32.mrb[0].mxu0
    %v4782 = vadd.f32 0.0, %v4781
    %v4783 = vpop.f32.mrb[0].mxu0
    %v4784 = vpop.f32.mrb[0].mxu0
    %4785 = vdwg.mxu0
    %4786 = vmatprep.subr.bf16.mxu0 0
    %4787 = vmatpush1.bf16.msra.mxu0 %v4651
    %4788 = vmatprep.subr.bf16.mxu0 0
    %4789 = vmatpush1.bf16.msra.mxu0 %v4654
    %4790 = vmatprep.subr.bf16.mxu0 0
    %4791 = vmatpush1.bf16.msra.mxu0 %v4657
    %4792 = vmatprep.subr.bf16.mxu0 0
    %4793 = vmatpush1.bf16.msra.mxu0 %v4660
    %4794 = vmatprep.subr.bf16.mxu0 0
    %4795 = vmatpush1.bf16.msra.mxu0 %v4663
    %4796 = vmatprep.subr.bf16.mxu0 0
    %4797 = vmatpush1.bf16.msra.mxu0 %v4666
    %4798 = vmatprep.subr.bf16.mxu0 0
    %4799 = vmatpush1.bf16.msra.mxu0 %v4669
    %4800 = vmatprep.subr.bf16.mxu0 0
    %4801 = vmatpush1.bf16.msra.mxu0 %v4672
    %4802 = vmatprep.subr.bf16.mxu0 0
    %4803 = vmatpush1.bf16.msra.mxu0 %v4675
    %4804 = vmatprep.subr.bf16.mxu0 0
    %4805 = vmatpush1.bf16.msra.mxu0 %v4678
    %4806 = vmatprep.subr.bf16.mxu0 0
    %4807 = vmatpush1.bf16.msra.mxu0 %v4681
    %4808 = vmatprep.subr.bf16.mxu0 0
    %4809 = vmatpush1.bf16.msra.mxu0 %v4684
    %4810 = vmatprep.subr.bf16.mxu0 0
    %4811 = vmatpush1.bf16.msra.mxu0 %v4687
    %4812 = vmatprep.subr.bf16.mxu0 0
    %4813 = vmatpush1.bf16.msra.mxu0 %v4690
    %4814 = vmatprep.subr.bf16.mxu0 0
    %4815 = vmatpush1.bf16.msra.mxu0 %v4693
    %4816 = vmatprep.subr.bf16.mxu0 0
    %4817 = vmatpush1.bf16.msra.mxu0 %v4696
    %4818 = vmatprep.mubr.bf16.mxu0 %v4424
    %4819 = vmatmul.mubr.bf16.gmra.mrb[0].mxu0 %v4423
    %v4820 = vpop.f32.mrb[0].mxu0
    %v4821 = vadd.f32 0.0, %v4820
    %v4822 = vpop.f32.mrb[0].mxu0
    %v4823 = vpop.f32.mrb[0].mxu0
    %v4824 = vpop.f32.mrb[0].mxu0
    %4825 = vdwg.mxu0
    %v4890 = vunpack.c.l.b16 %v4359
    %v4891 = vunpack.c.h.b16 %v4359
    %v4892 = vunpack.c.l.b16 %v4360
    %v4893 = vunpack.c.l.b16 %v4361
    %v4894 = vunpack.c.h.b16 %v4361
    %v4895 = vunpack.c.l.b16 %v4362
    %v4896 = vunpack.c.l.b16 %v4363
    %v4897 = vunpack.c.h.b16 %v4363
    %v4898 = vunpack.c.l.b16 %v4364
    %v4899 = vunpack.c.l.b16 %v4365
    %v4900 = vunpack.c.h.b16 %v4365
    %v4901 = vunpack.c.l.b16 %v4366
    %v4902 = vunpack.c.l.b16 %v4367
    %v4903 = vunpack.c.h.b16 %v4367
    %v4904 = vunpack.c.l.b16 %v4368
    %v4905 = vunpack.c.l.b16 %v4369
    %v4906 = vunpack.c.h.b16 %v4369
    %v4907 = vunpack.c.l.b16 %v4370
    %v4908 = vunpack.c.l.b16 %v4371
    %v4909 = vunpack.c.h.b16 %v4371
    %v4910 = vunpack.c.l.b16 %v4372
    %v4911 = vunpack.c.l.b16 %v4373
    %v4912 = vunpack.c.h.b16 %v4373
    %v4913 = vunpack.c.l.b16 %v4374
    %v4914 = vunpack.c.l.b16 %v4375
    %v4915 = vunpack.c.h.b16 %v4375
    %v4916 = vunpack.c.l.b16 %v4376
    %v4917 = vunpack.c.l.b16 %v4377
    %v4918 = vunpack.c.h.b16 %v4377
    %v4919 = vunpack.c.l.b16 %v4378
    %v4920 = vunpack.c.l.b16 %v4379
    %v4921 = vunpack.c.h.b16 %v4379
    %v4922 = vunpack.c.l.b16 %v4380
    %v4923 = vunpack.c.l.b16 %v4381
    %v4924 = vunpack.c.h.b16 %v4381
    %v4925 = vunpack.c.l.b16 %v4382
    %v4926 = vunpack.c.l.b16 %v4383
    %v4927 = vunpack.c.h.b16 %v4383
    %v4928 = vunpack.c.l.b16 %v4384
    %v4929 = vunpack.c.l.b16 %v4385
    %v4930 = vunpack.c.h.b16 %v4385
    %v4931 = vunpack.c.l.b16 %v4386
    %v4932 = vunpack.c.l.b16 %v4387
    %v4933 = vunpack.c.h.b16 %v4387
    %v4934 = vunpack.c.l.b16 %v4388
    %v4935 = vunpack.c.l.b16 %v4389
    %v4936 = vunpack.c.h.b16 %v4389
    %v4937 = vunpack.c.l.b16 %v4390
    %v4938 = vunpack.c.l.b16 %v4391
    %v4939 = vunpack.c.h.b16 %v4391
    %v4940 = vunpack.c.l.b16 %v4392
    %v4941 = vunpack.c.l.b16 %v4393
    %v4942 = vunpack.c.h.b16 %v4393
    %v4943 = vunpack.c.l.b16 %v4394
    %v4944 = vunpack.c.l.b16 %v4395
    %v4945 = vunpack.c.h.b16 %v4395
    %v4946 = vunpack.c.l.b16 %v4396
    %v4947 = vunpack.c.l.b16 %v4397
    %v4948 = vunpack.c.h.b16 %v4397
    %v4949 = vunpack.c.l.b16 %v4398
    %v4950 = vunpack.c.l.b16 %v4399
    %v4951 = vunpack.c.h.b16 %v4399
    %v4952 = vunpack.c.l.b16 %v4400
    %v4953 = vunpack.c.l.b16 %v4401
    %v4954 = vunpack.c.h.b16 %v4401
    %v4955 = vunpack.c.l.b16 %v4402
    %v4956 = vunpack.c.l.b16 %v4403
    %v4957 = vunpack.c.h.b16 %v4403
    %v4958 = vunpack.c.l.b16 %v4404
    %v4959 = vunpack.c.l.b16 %v4405
    %v4960 = vunpack.c.h.b16 %v4405
    %v4961 = vunpack.c.l.b16 %v4406
    %v4962 = vunpack.c.l.b16 %v4407
    %v4963 = vunpack.c.h.b16 %v4407
    %v4964 = vunpack.c.l.b16 %v4408
    %v4965 = vunpack.c.l.b16 %v4409
    %v4966 = vunpack.c.h.b16 %v4409
    %v4967 = vunpack.c.l.b16 %v4410
    %v4968 = vunpack.c.l.b16 %v4411
    %v4969 = vunpack.c.h.b16 %v4411
    %v4970 = vunpack.c.l.b16 %v4412
    %v4971 = vunpack.c.l.b16 %v4413
    %v4972 = vunpack.c.h.b16 %v4413
    %v4973 = vunpack.c.l.b16 %v4414
    %v4974 = vunpack.c.l.b16 %v4415
    %v4975 = vunpack.c.h.b16 %v4415
    %v4976 = vunpack.c.l.b16 %v4416
    %v4977 = vunpack.c.l.b16 %v4417
    %v4978 = vunpack.c.h.b16 %v4417
    %v4979 = vunpack.c.l.b16 %v4418
    %v4980 = vunpack.c.l.b16 %v4419
    %v4981 = vunpack.c.h.b16 %v4419
    %v4982 = vunpack.c.l.b16 %v4420
    %v4983 = vunpack.c.l.b16 %v4421
    %v4984 = vunpack.c.h.b16 %v4421
    %v4985 = vunpack.c.l.b16 %v4422
    %v4986 = vpack.c.b16 %v4893, %v4890
    %v4987 = vpack.c.b16 %v4894, %v4891
    %v4988 = vpack.c.b16 %v4895, %v4892
    %v4989 = vpack.c.b16 %v4899, %v4896
    %v4990 = vpack.c.b16 %v4900, %v4897
    %v4991 = vpack.c.b16 %v4901, %v4898
    %v4992 = vpack.c.b16 %v4905, %v4902
    %v4993 = vpack.c.b16 %v4906, %v4903
    %v4994 = vpack.c.b16 %v4907, %v4904
    %v4995 = vpack.c.b16 %v4911, %v4908
    %v4996 = vpack.c.b16 %v4912, %v4909
    %v4997 = vpack.c.b16 %v4913, %v4910
    %v4998 = vpack.c.b16 %v4917, %v4914
    %v4999 = vpack.c.b16 %v4918, %v4915
    %v5000 = vpack.c.b16 %v4919, %v4916
    %v5001 = vpack.c.b16 %v4923, %v4920
    %v5002 = vpack.c.b16 %v4924, %v4921
    %v5003 = vpack.c.b16 %v4925, %v4922
    %v5004 = vpack.c.b16 %v4929, %v4926
    %v5005 = vpack.c.b16 %v4930, %v4927
    %v5006 = vpack.c.b16 %v4931, %v4928
    %v5007 = vpack.c.b16 %v4935, %v4932
    %v5008 = vpack.c.b16 %v4936, %v4933
    %v5009 = vpack.c.b16 %v4937, %v4934
    %v5010 = vpack.c.b16 %v4941, %v4938
    %v5011 = vpack.c.b16 %v4942, %v4939
    %v5012 = vpack.c.b16 %v4943, %v4940
    %v5013 = vpack.c.b16 %v4947, %v4944
    %v5014 = vpack.c.b16 %v4948, %v4945
    %v5015 = vpack.c.b16 %v4949, %v4946
    %v5016 = vpack.c.b16 %v4953, %v4950
    %v5017 = vpack.c.b16 %v4954, %v4951
    %v5018 = vpack.c.b16 %v4955, %v4952
    %v5019 = vpack.c.b16 %v4959, %v4956
    %v5020 = vpack.c.b16 %v4960, %v4957
    %v5021 = vpack.c.b16 %v4961, %v4958
    %v5022 = vpack.c.b16 %v4965, %v4962
    %v5023 = vpack.c.b16 %v4966, %v4963
    %v5024 = vpack.c.b16 %v4967, %v4964
    %v5025 = vpack.c.b16 %v4971, %v4968
    %v5026 = vpack.c.b16 %v4972, %v4969
    %v5027 = vpack.c.b16 %v4973, %v4970
    %v5028 = vpack.c.b16 %v4977, %v4974
    %v5029 = vpack.c.b16 %v4978, %v4975
    %v5030 = vpack.c.b16 %v4979, %v4976
    %v5031 = vpack.c.b16 %v4983, %v4980
    %v5032 = vpack.c.b16 %v4984, %v4981
    %v5033 = vpack.c.b16 %v4985, %v4982
    %5082 = vmatprep.subr.bf16.mxu0 %v4987
    %5083 = vmatpush1.bf16.msra.mxu0 %v4986
    %5084 = vmatprep.subr.bf16.mxu0 %v4990
    %5085 = vmatpush1.bf16.msra.mxu0 %v4989
    %5086 = vmatprep.subr.bf16.mxu0 %v4993
    %5087 = vmatpush1.bf16.msra.mxu0 %v4992
    %5088 = vmatprep.subr.bf16.mxu0 %v4996
    %5089 = vmatpush1.bf16.msra.mxu0 %v4995
    %5090 = vmatprep.subr.bf16.mxu0 %v4999
    %5091 = vmatpush1.bf16.msra.mxu0 %v4998
    %5092 = vmatprep.subr.bf16.mxu0 %v5002
    %5093 = vmatpush1.bf16.msra.mxu0 %v5001
    %5094 = vmatprep.subr.bf16.mxu0 %v5005
    %5095 = vmatpush1.bf16.msra.mxu0 %v5004
    %5096 = vmatprep.subr.bf16.mxu0 %v5008
    %5097 = vmatpush1.bf16.msra.mxu0 %v5007
    %5098 = vmatprep.subr.bf16.mxu0 %v5011
    %5099 = vmatpush1.bf16.msra.mxu0 %v5010
    %5100 = vmatprep.subr.bf16.mxu0 %v5014
    %5101 = vmatpush1.bf16.msra.mxu0 %v5013
    %5102 = vmatprep.subr.bf16.mxu0 %v5017
    %5103 = vmatpush1.bf16.msra.mxu0 %v5016
    %5104 = vmatprep.subr.bf16.mxu0 %v5020
    %5105 = vmatpush1.bf16.msra.mxu0 %v5019
    %5106 = vmatprep.subr.bf16.mxu0 %v5023
    %5107 = vmatpush1.bf16.msra.mxu0 %v5022
    %5108 = vmatprep.subr.bf16.mxu0 %v5026
    %5109 = vmatpush1.bf16.msra.mxu0 %v5025
    %5110 = vmatprep.subr.bf16.mxu0 %v5029
    %5111 = vmatpush1.bf16.msra.mxu0 %v5028
    %5112 = vmatprep.subr.bf16.mxu0 %v5032
    %5113 = vmatpush1.bf16.msra.mxu0 %v5031
    %5114 = vmatprep.mubr.bf16.mxu0 %v4358
    %5115 = vmatmul.mubr.bf16.gmra.mrb[0].mxu0 %v4357
    %v5116 = vpop.f32.mrb[0].mxu0
    %v5117 = vadd.f32 %v4780, %v5116
    %v5118 = vpop.f32.mrb[0].mxu0
    %v5119 = vadd.f32 %v4782, %v5118
    %v5120 = vpop.f32.mrb[0].mxu0
    %v5121 = vpop.f32.mrb[0].mxu0
    %5122 = vdwg.mxu0
    %5123 = vmatprep.subr.bf16.mxu0 0
    %5124 = vmatpush1.bf16.msra.mxu0 %v4988
    %5125 = vmatprep.subr.bf16.mxu0 0
    %5126 = vmatpush1.bf16.msra.mxu0 %v4991
    %5127 = vmatprep.subr.bf16.mxu0 0
    %5128 = vmatpush1.bf16.msra.mxu0 %v4994
    %5129 = vmatprep.subr.bf16.mxu0 0
    %5130 = vmatpush1.bf16.msra.mxu0 %v4997
    %5131 = vmatprep.subr.bf16.mxu0 0
    %5132 = vmatpush1.bf16.msra.mxu0 %v5000
    %5133 = vmatprep.subr.bf16.mxu0 0
    %5134 = vmatpush1.bf16.msra.mxu0 %v5003
    %5135 = vmatprep.subr.bf16.mxu0 0
    %5136 = vmatpush1.bf16.msra.mxu0 %v5006
    %5137 = vmatprep.subr.bf16.mxu0 0
    %5138 = vmatpush1.bf16.msra.mxu0 %v5009
    %5139 = vmatprep.subr.bf16.mxu0 0
    %5140 = vmatpush1.bf16.msra.mxu0 %v5012
    %5141 = vmatprep.subr.bf16.mxu0 0
    %5142 = vmatpush1.bf16.msra.mxu0 %v5015
    %5143 = vmatprep.subr.bf16.mxu0 0
    %5144 = vmatpush1.bf16.msra.mxu0 %v5018
    %5145 = vmatprep.subr.bf16.mxu0 0
    %5146 = vmatpush1.bf16.msra.mxu0 %v5021
    %5147 = vmatprep.subr.bf16.mxu0 0
    %5148 = vmatpush1.bf16.msra.mxu0 %v5024
    %5149 = vmatprep.subr.bf16.mxu0 0
    %5150 = vmatpush1.bf16.msra.mxu0 %v5027
    %5151 = vmatprep.subr.bf16.mxu0 0
    %5152 = vmatpush1.bf16.msra.mxu0 %v5030
    %5153 = vmatprep.subr.bf16.mxu0 0
    %5154 = vmatpush1.bf16.msra.mxu0 %v5033
    %5155 = vmatprep.mubr.bf16.mxu0 %v4358
    %5156 = vmatmul.mubr.bf16.gmra.mrb[0].mxu0 %v4357
    %v5157 = vpop.f32.mrb[0].mxu0
    %v5158 = vadd.f32 %v4821, %v5157
    %v5159 = vpop.f32.mrb[0].mxu0
    %v5160 = vpop.f32.mrb[0].mxu0
    %v5161 = vpop.f32.mrb[0].mxu0
    %5162 = vdwg.mxu0
    %v5163 = vld [vmem:[%s39] sm:$0xf]
    %v5164 = vpack.c.bf16 %v5163, %v5163
    %v5165 = vld [vmem:[%s67] sm:$0xff]
    %v5166 = vld [vmem:[%s67 + $0x8] sm:$0xf]
    %v5167 = vld [vmem:[%s67 + $0xc] sm:$0xff]
    %v5168 = vld [vmem:[%s67 + $0x14] sm:$0xf]
    %v5169 = vld [vmem:[%s67 + $0x18] sm:$0xff]
    %v5170 = vld [vmem:[%s67 + $0x20] sm:$0xf]
    %v5171 = vld [vmem:[%s67 + $0x24] sm:$0xff]
    %v5172 = vld [vmem:[%s67 + $0x2c] sm:$0xf]
    %v5173 = vld [vmem:[%s67 + $0x30] sm:$0xff]
    %v5174 = vld [vmem:[%s67 + $0x38] sm:$0xf]
    %v5175 = vld [vmem:[%s67 + $0x3c] sm:$0xff]
    %v5176 = vld [vmem:[%s67 + $0x44] sm:$0xf]
    %v5177 = vld [vmem:[%s67 + $0x48] sm:$0xff]
    %v5178 = vld [vmem:[%s67 + $0x50] sm:$0xf]
    %v5179 = vld [vmem:[%s67 + $0x54] sm:$0xff]
    %v5180 = vld [vmem:[%s67 + $0x5c] sm:$0xf]
    %v5197 = vunpack.c.l.b16 %v5165
    %v5198 = vunpack.c.h.b16 %v5165
    %v5199 = vunpack.c.l.b16 %v5166
    %v5200 = vunpack.c.l.b16 %v5167
    %v5201 = vunpack.c.h.b16 %v5167
    %v5202 = vunpack.c.l.b16 %v5168
    %v5203 = vunpack.c.l.b16 %v5169
    %v5204 = vunpack.c.h.b16 %v5169
    %v5205 = vunpack.c.l.b16 %v5170
    %v5206 = vunpack.c.l.b16 %v5171
    %v5207 = vunpack.c.h.b16 %v5171
    %v5208 = vunpack.c.l.b16 %v5172
    %v5209 = vunpack.c.l.b16 %v5173
    %v5210 = vunpack.c.h.b16 %v5173
    %v5211 = vunpack.c.l.b16 %v5174
    %v5212 = vunpack.c.l.b16 %v5175
    %v5213 = vunpack.c.h.b16 %v5175
    %v5214 = vunpack.c.l.b16 %v5176
    %v5215 = vunpack.c.l.b16 %v5177
    %v5216 = vunpack.c.h.b16 %v5177
    %v5217 = vunpack.c.l.b16 %v5178
    %v5218 = vunpack.c.l.b16 %v5179
    %v5219 = vunpack.c.h.b16 %v5179
    %v5220 = vunpack.c.l.b16 %v5180
    %v5221 = vpack.c.b16 %v5200, %v5197
    %v5222 = vpack.c.b16 %v5201, %v5198
    %v5223 = vpack.c.b16 %v5202, %v5199
    %v5224 = vpack.c.b16 %v5206, %v5203
    %v5225 = vpack.c.b16 %v5207, %v5204
    %v5226 = vpack.c.b16 %v5208, %v5205
    %v5227 = vpack.c.b16 %v5212, %v5209
    %v5228 = vpack.c.b16 %v5213, %v5210
    %v5229 = vpack.c.b16 %v5214, %v5211
    %v5230 = vpack.c.b16 %v5218, %v5215
    %v5231 = vpack.c.b16 %v5219, %v5216
    %v5232 = vpack.c.b16 %v5220, %v5217
    %v5246 = vsel %vm2278, %v5164, 0
    %5248 = vmatprep.subr.bf16.mxu0 %v5222
    %5249 = vmatpush1.bf16.msra.mxu0 %v5221
    %5250 = vmatprep.subr.bf16.mxu0 %v5225
    %5251 = vmatpush1.bf16.msra.mxu0 %v5224
    %5252 = vmatprep.subr.bf16.mxu0 %v5228
    %5253 = vmatpush1.bf16.msra.mxu0 %v5227
    %5254 = vmatprep.subr.bf16.mxu0 %v5231
    %5255 = vmatpush1.bf16.msra.mxu0 %v5230
    %5256 = vmatprep.subr.bf16.mxu0 0
    %5257 = vmatpush1.bf16.msra.mxu0 0
    %5258 = vmatprep.subr.bf16.mxu0 0
    %5259 = vmatpush1.bf16.msra.mxu0 0
    %5260 = vmatprep.subr.bf16.mxu0 0
    %5261 = vmatpush1.bf16.msra.mxu0 0
    %5262 = vmatprep.subr.bf16.mxu0 0
    %5263 = vmatpush1.bf16.msra.mxu0 0
    %5264 = vmatprep.subr.bf16.mxu0 0
    %5265 = vmatpush1.bf16.msra.mxu0 0
    %5266 = vmatprep.subr.bf16.mxu0 0
    %5267 = vmatpush1.bf16.msra.mxu0 0
    %5268 = vmatprep.subr.bf16.mxu0 0
    %5269 = vmatpush1.bf16.msra.mxu0 0
    %5270 = vmatprep.subr.bf16.mxu0 0
    %5271 = vmatpush1.bf16.msra.mxu0 0
    %5272 = vmatprep.subr.bf16.mxu0 0
    %5273 = vmatpush1.bf16.msra.mxu0 0
    %5274 = vmatprep.subr.bf16.mxu0 0
    %5275 = vmatpush1.bf16.msra.mxu0 0
    %5276 = vmatprep.subr.bf16.mxu0 0
    %5277 = vmatpush1.bf16.msra.mxu0 0
    %5278 = vmatprep.subr.bf16.mxu0 0
    %5279 = vmatpush1.bf16.msra.mxu0 0
    %5280 = vmatprep.mubr.bf16.mxu0 0
    %5281 = vmatmul.mubr.bf16.gmra.mrb[0].mxu0 %v5246
    %v5282 = vpop.f32.mrb[0].mxu0
    %v5283 = vadd.f32 0.0, %v5282
    %v5284 = vpop.f32.mrb[0].mxu0
    %v5285 = vadd.f32 0.0, %v5284
    %v5286 = vpop.f32.mrb[0].mxu0
    %v5287 = vpop.f32.mrb[0].mxu0
    %5288 = vdwg.mxu0
    %5289 = vmatprep.subr.bf16.mxu0 0
    %5290 = vmatpush1.bf16.msra.mxu0 %v5223
    %5291 = vmatprep.subr.bf16.mxu0 0
    %5292 = vmatpush1.bf16.msra.mxu0 %v5226
    %5293 = vmatprep.subr.bf16.mxu0 0
    %5294 = vmatpush1.bf16.msra.mxu0 %v5229
    %5295 = vmatprep.subr.bf16.mxu0 0
    %5296 = vmatpush1.bf16.msra.mxu0 %v5232
    %5297 = vmatprep.subr.bf16.mxu0 0
    %5298 = vmatpush1.bf16.msra.mxu0 0
    %5299 = vmatprep.subr.bf16.mxu0 0
    %5300 = vmatpush1.bf16.msra.mxu0 0
    %5301 = vmatprep.subr.bf16.mxu0 0
    %5302 = vmatpush1.bf16.msra.mxu0 0
    %5303 = vmatprep.subr.bf16.mxu0 0
    %5304 = vmatpush1.bf16.msra.mxu0 0
    %5305 = vmatprep.subr.bf16.mxu0 0
    %5306 = vmatpush1.bf16.msra.mxu0 0
    %5307 = vmatprep.subr.bf16.mxu0 0
    %5308 = vmatpush1.bf16.msra.mxu0 0
    %5309 = vmatprep.subr.bf16.mxu0 0
    %5310 = vmatpush1.bf16.msra.mxu0 0
    %5311 = vmatprep.subr.bf16.mxu0 0
    %5312 = vmatpush1.bf16.msra.mxu0 0
    %5313 = vmatprep.subr.bf16.mxu0 0
    %5314 = vmatpush1.bf16.msra.mxu0 0
    %5315 = vmatprep.subr.bf16.mxu0 0
    %5316 = vmatpush1.bf16.msra.mxu0 0
    %5317 = vmatprep.subr.bf16.mxu0 0
    %5318 = vmatpush1.bf16.msra.mxu0 0
    %5319 = vmatprep.subr.bf16.mxu0 0
    %5320 = vmatpush1.bf16.msra.mxu0 0
    %5321 = vmatprep.mubr.bf16.mxu0 0
    %5322 = vmatmul.mubr.bf16.gmra.mrb[0].mxu0 %v5246
    %v5323 = vpop.f32.mrb[0].mxu0
    %v5324 = vadd.f32 0.0, %v5323
    %v5325 = vpop.f32.mrb[0].mxu0
    %v5326 = vpop.f32.mrb[0].mxu0
    %v5327 = vpop.f32.mrb[0].mxu0
    %5328 = vdwg.mxu0
    %v5329 = vadd.f32 %v5117, %v5283
    %v5330 = vadd.f32 %v5119, %v5285
    %v5331 = vadd.f32 %v5158, %v5324
    %v5332 = vld [vmem:[%s69] sm:$0xff]
    %v5333 = vld [vmem:[%s69 + $0x8] sm:$0xf]
    %v5334 = vld [vmem:[%s69 + $0xc] sm:$0xff]
    %v5335 = vld [vmem:[%s69 + $0x14] sm:$0xf]
    %v5336 = vld [vmem:[%s69 + $0x18] sm:$0xff]
    %v5337 = vld [vmem:[%s69 + $0x20] sm:$0xf]
    %v5338 = vld [vmem:[%s69 + $0x24] sm:$0xff]
    %v5339 = vld [vmem:[%s69 + $0x2c] sm:$0xf]
    %v5340 = vld [vmem:[%s69 + $0x30] sm:$0xff]
    %v5341 = vld [vmem:[%s69 + $0x38] sm:$0xf]
    %v5342 = vld [vmem:[%s69 + $0x3c] sm:$0xff]
    %v5343 = vld [vmem:[%s69 + $0x44] sm:$0xf]
    %v5344 = vld [vmem:[%s69 + $0x48] sm:$0xff]
    %v5345 = vld [vmem:[%s69 + $0x50] sm:$0xf]
    %v5346 = vld [vmem:[%s69 + $0x54] sm:$0xff]
    %v5347 = vld [vmem:[%s69 + $0x5c] sm:$0xf]
    %v5348 = vld [vmem:[%s69 + $0x60] sm:$0xff]
    %v5349 = vld [vmem:[%s69 + $0x68] sm:$0xf]
    %v5350 = vld [vmem:[%s69 + $0x6c] sm:$0xff]
    %v5351 = vld [vmem:[%s69 + $0x74] sm:$0xf]
    %v5352 = vld [vmem:[%s69 + $0x78] sm:$0xff]
    %v5353 = vld [vmem:[%s69 + $0x80] sm:$0xf]
    %v5354 = vld [vmem:[%s69 + $0x84] sm:$0xff]
    %v5355 = vld [vmem:[%s69 + $0x8c] sm:$0xf]
    %v5356 = vld [vmem:[%s69 + $0x90] sm:$0xff]
    %v5357 = vld [vmem:[%s69 + $0x98] sm:$0xf]
    %v5358 = vld [vmem:[%s69 + $0x9c] sm:$0xff]
    %v5359 = vld [vmem:[%s69 + $0xa4] sm:$0xf]
    %v5360 = vld [vmem:[%s69 + $0xa8] sm:$0xff]
    %v5361 = vld [vmem:[%s69 + $0xb0] sm:$0xf]
    %v5362 = vld [vmem:[%s69 + $0xb4] sm:$0xff]
    %v5363 = vld [vmem:[%s69 + $0xbc] sm:$0xf]
    %v5396 = vunpack.c.l.b16 %v5332
    %v5397 = vunpack.c.h.b16 %v5332
    %v5398 = vunpack.c.l.b16 %v5333
    %v5399 = vunpack.c.l.b16 %v5334
    %v5400 = vunpack.c.h.b16 %v5334
    %v5401 = vunpack.c.l.b16 %v5335
    %v5402 = vunpack.c.l.b16 %v5336
    %v5403 = vunpack.c.h.b16 %v5336
    %v5404 = vunpack.c.l.b16 %v5337
    %v5405 = vunpack.c.l.b16 %v5338
    %v5406 = vunpack.c.h.b16 %v5338
    %v5407 = vunpack.c.l.b16 %v5339
    %v5408 = vunpack.c.l.b16 %v5340
    %v5409 = vunpack.c.h.b16 %v5340
    %v5410 = vunpack.c.l.b16 %v5341
    %v5411 = vunpack.c.l.b16 %v5342
    %v5412 = vunpack.c.h.b16 %v5342
    %v5413 = vunpack.c.l.b16 %v5343
    %v5414 = vunpack.c.l.b16 %v5344
    %v5415 = vunpack.c.h.b16 %v5344
    %v5416 = vunpack.c.l.b16 %v5345
    %v5417 = vunpack.c.l.b16 %v5346
    %v5418 = vunpack.c.h.b16 %v5346
    %v5419 = vunpack.c.l.b16 %v5347
    %v5420 = vunpack.c.l.b16 %v5348
    %v5421 = vunpack.c.h.b16 %v5348
    %v5422 = vunpack.c.l.b16 %v5349
    %v5423 = vunpack.c.l.b16 %v5350
    %v5424 = vunpack.c.h.b16 %v5350
    %v5425 = vunpack.c.l.b16 %v5351
    %v5426 = vunpack.c.l.b16 %v5352
    %v5427 = vunpack.c.h.b16 %v5352
    %v5428 = vunpack.c.l.b16 %v5353
    %v5429 = vunpack.c.l.b16 %v5354
    %v5430 = vunpack.c.h.b16 %v5354
    %v5431 = vunpack.c.l.b16 %v5355
    %v5432 = vunpack.c.l.b16 %v5356
    %v5433 = vunpack.c.h.b16 %v5356
    %v5434 = vunpack.c.l.b16 %v5357
    %v5435 = vunpack.c.l.b16 %v5358
    %v5436 = vunpack.c.h.b16 %v5358
    %v5437 = vunpack.c.l.b16 %v5359
    %v5438 = vunpack.c.l.b16 %v5360
    %v5439 = vunpack.c.h.b16 %v5360
    %v5440 = vunpack.c.l.b16 %v5361
    %v5441 = vunpack.c.l.b16 %v5362
    %v5442 = vunpack.c.h.b16 %v5362
    %v5443 = vunpack.c.l.b16 %v5363
    %v5444 = vpack.c.b16 %v5399, %v5396
    %v5445 = vpack.c.b16 %v5400, %v5397
    %v5446 = vpack.c.b16 %v5401, %v5398
    %v5447 = vpack.c.b16 %v5405, %v5402
    %v5448 = vpack.c.b16 %v5406, %v5403
    %v5449 = vpack.c.b16 %v5407, %v5404
    %v5450 = vpack.c.b16 %v5411, %v5408
    %v5451 = vpack.c.b16 %v5412, %v5409
    %v5452 = vpack.c.b16 %v5413, %v5410
    %v5453 = vpack.c.b16 %v5417, %v5414
    %v5454 = vpack.c.b16 %v5418, %v5415
    %v5455 = vpack.c.b16 %v5419, %v5416
    %v5456 = vpack.c.b16 %v5423, %v5420
    %v5457 = vpack.c.b16 %v5424, %v5421
    %v5458 = vpack.c.b16 %v5425, %v5422
    %v5459 = vpack.c.b16 %v5429, %v5426
    %v5460 = vpack.c.b16 %v5430, %v5427
    %v5461 = vpack.c.b16 %v5431, %v5428
    %v5462 = vpack.c.b16 %v5435, %v5432
    %v5463 = vpack.c.b16 %v5436, %v5433
    %v5464 = vpack.c.b16 %v5437, %v5434
    %v5465 = vpack.c.b16 %v5441, %v5438
    %v5466 = vpack.c.b16 %v5442, %v5439
    %v5467 = vpack.c.b16 %v5443, %v5440
    %5492 = vmatprep.subr.bf16.mxu0 %v5445
    %5493 = vmatpush1.bf16.msra.mxu0 %v5444
    %5494 = vmatprep.subr.bf16.mxu0 %v5448
    %5495 = vmatpush1.bf16.msra.mxu0 %v5447
    %5496 = vmatprep.subr.bf16.mxu0 %v5451
    %5497 = vmatpush1.bf16.msra.mxu0 %v5450
    %5498 = vmatprep.subr.bf16.mxu0 %v5454
    %5499 = vmatpush1.bf16.msra.mxu0 %v5453
    %5500 = vmatprep.subr.bf16.mxu0 %v5457
    %5501 = vmatpush1.bf16.msra.mxu0 %v5456
    %5502 = vmatprep.subr.bf16.mxu0 %v5460
    %5503 = vmatpush1.bf16.msra.mxu0 %v5459
    %5504 = vmatprep.subr.bf16.mxu0 %v5463
    %5505 = vmatpush1.bf16.msra.mxu0 %v5462
    %5506 = vmatprep.subr.bf16.mxu0 %v5466
    %5507 = vmatpush1.bf16.msra.mxu0 %v5465
    %5508 = vmatprep.subr.bf16.mxu0 0
    %5509 = vmatpush1.bf16.msra.mxu0 0
    %5510 = vmatprep.subr.bf16.mxu0 0
    %5511 = vmatpush1.bf16.msra.mxu0 0
    %5512 = vmatprep.subr.bf16.mxu0 0
    %5513 = vmatpush1.bf16.msra.mxu0 0
    %5514 = vmatprep.subr.bf16.mxu0 0
    %5515 = vmatpush1.bf16.msra.mxu0 0
    %5516 = vmatprep.subr.bf16.mxu0 0
    %5517 = vmatpush1.bf16.msra.mxu0 0
    %5518 = vmatprep.subr.bf16.mxu0 0
    %5519 = vmatpush1.bf16.msra.mxu0 0
    %5520 = vmatprep.subr.bf16.mxu0 0
    %5521 = vmatpush1.bf16.msra.mxu0 0
    %5522 = vmatprep.subr.bf16.mxu0 0
    %5523 = vmatpush1.bf16.msra.mxu0 0
    %5524 = vmatprep.mubr.bf16.mxu0 0
    %5525 = vmatmul.mubr.bf16.gmra.mrb[0].mxu0 %v4198
    %v5526 = vpop.f32.mrb[0].mxu0
    %v5527 = vadd.f32 0.0, %v5526
    %v5528 = vpop.f32.mrb[0].mxu0
    %v5529 = vadd.f32 0.0, %v5528
    %v5530 = vpop.f32.mrb[0].mxu0
    %v5531 = vpop.f32.mrb[0].mxu0
    %5532 = vdwg.mxu0
    %5533 = vmatprep.subr.bf16.mxu0 0
    %5534 = vmatpush1.bf16.msra.mxu0 %v5446
    %5535 = vmatprep.subr.bf16.mxu0 0
    %5536 = vmatpush1.bf16.msra.mxu0 %v5449
    %5537 = vmatprep.subr.bf16.mxu0 0
    %5538 = vmatpush1.bf16.msra.mxu0 %v5452
    %5539 = vmatprep.subr.bf16.mxu0 0
    %5540 = vmatpush1.bf16.msra.mxu0 %v5455
    %5541 = vmatprep.subr.bf16.mxu0 0
    %5542 = vmatpush1.bf16.msra.mxu0 %v5458
    %5543 = vmatprep.subr.bf16.mxu0 0
    %5544 = vmatpush1.bf16.msra.mxu0 %v5461
    %5545 = vmatprep.subr.bf16.mxu0 0
    %5546 = vmatpush1.bf16.msra.mxu0 %v5464
    %5547 = vmatprep.subr.bf16.mxu0 0
    %5548 = vmatpush1.bf16.msra.mxu0 %v5467
    %5549 = vmatprep.subr.bf16.mxu0 0
    %5550 = vmatpush1.bf16.msra.mxu0 0
    %5551 = vmatprep.subr.bf16.mxu0 0
    %5552 = vmatpush1.bf16.msra.mxu0 0
    %5553 = vmatprep.subr.bf16.mxu0 0
    %5554 = vmatpush1.bf16.msra.mxu0 0
    %5555 = vmatprep.subr.bf16.mxu0 0
    %5556 = vmatpush1.bf16.msra.mxu0 0
    %5557 = vmatprep.subr.bf16.mxu0 0
    %5558 = vmatpush1.bf16.msra.mxu0 0
    %5559 = vmatprep.subr.bf16.mxu0 0
    %5560 = vmatpush1.bf16.msra.mxu0 0
    %5561 = vmatprep.subr.bf16.mxu0 0
    %5562 = vmatpush1.bf16.msra.mxu0 0
    %5563 = vmatprep.subr.bf16.mxu0 0
    %5564 = vmatpush1.bf16.msra.mxu0 0
    %5565 = vmatprep.mubr.bf16.mxu0 0
    %5566 = vmatmul.mubr.bf16.gmra.mrb[0].mxu0 %v4198
    %v5567 = vpop.f32.mrb[0].mxu0
    %v5568 = vadd.f32 0.0, %v5567
    %v5569 = vpop.f32.mrb[0].mxu0
    %v5570 = vpop.f32.mrb[0].mxu0
    %v5571 = vpop.f32.mrb[0].mxu0
    %5572 = vdwg.mxu0
    %v5573 = vadd.f32 %v5329, %v5527
    %v5574 = vadd.f32 %v5330, %v5529
    %v5575 = vadd.f32 %v5331, %v5568
    %v5576 = vld [vmem:[%s71] sm:$0x7]
    %v5578 = vlaneseq
    %v5579 = vshrl.u32 %v5578, 7
    %v5580 = vsub.s32 0, %v5579
    %v5581 = vrot.slane %v5576, %v5580
    %v5582 = vlaneseq
    %v5583 = vshrl.u32 %v5582, 7
    %v5584 = vsub.s32 1, %v5583
    %v5585 = vrot.slane %v5576, %v5584
    %v5586 = vlaneseq
    %v5587 = vshrl.u32 %v5586, 7
    %v5588 = vsub.s32 2, %v5587
    %v5589 = vrot.slane %v5576, %v5588
    %v5593 = vadd.f32 %v5573, %v5581
    %v5594 = vadd.f32 %v5574, %v5585
    %v5595 = vadd.f32 %v5575, %v5589
    %v5596 = vmax.f32 %v5593, 0.0
    %v5597 = vmax.f32 %v5594, 0.0
    %v5598 = vmax.f32 %v5595, 0.0
    %v5599 = vld [vmem:[%s73] sm:$0x7]
    %v5601 = vlaneseq
    %v5602 = vshrl.u32 %v5601, 7
    %v5603 = vsub.s32 0, %v5602
    %v5604 = vrot.slane %v5599, %v5603
    %v5605 = vlaneseq
    %v5606 = vshrl.u32 %v5605, 7
    %v5607 = vsub.s32 1, %v5606
    %v5608 = vrot.slane %v5599, %v5607
    %v5609 = vlaneseq
    %v5610 = vshrl.u32 %v5609, 7
    %v5611 = vsub.s32 2, %v5610
    %v5612 = vrot.slane %v5599, %v5611
    %v5616 = vmul.f32 %v5596, %v5604
    %v5617 = vmul.f32 %v5597, %v5608
    %v5618 = vmul.f32 %v5598, %v5612
    %vm5619 = vcmask 1043456
    %v5620 = vsel %vm5619, %v5616, 0.0
    %v5621 = vsel %vm5619, %v5617, 0.0
    %v5622 = vadd.f32 %v5620, %v5621
    %v5623 = vsel %vm5619, %v5618, 0.0
    %v5624 = vadd.f32 %v5622, %v5623
    %5625 = vadd.xlane.f32.xlu0 %v5624
    %v5626 = vpop.xlane.xlu0 %5625
    %v5627 = vstv %s170
    %v5628 = vadd.f32 %v5626, %v5627
    %v5629 = vxor.u32 %v5628, 2147483648
    %v5630 = vmul.f32 %v5629, 1.442695
    %v5631 = vpow.pop %v5630
    %v5632 = vadd.f32 %v5631, 1.0
    %v5633 = vrcp.pop %v5632
    %v5634 = vmul.f32 1.0, %v5633
    %vm5635 = vcmask 3072
    %5636 = vst.msk [vmem:[%s75] sm:$0xf] %vm5635, %v5634
    // Predicated region
    $region154: #{model_forward.1} parent=1 // pred_check
      _
    $region155: #{model_forward.1} parent=1 // pred_check_branch
      %5638 = sbr.rel (0) target = $region157
    $region156: #{model_forward.1} parent=1 // pred_region
      _
    $region157: #{model_forward.1} parent=1 // pred_fallthru
      _
    // Predicated region
    $region158: #{model_forward.1} parent=1 // pred_check
      _
    $region159: #{model_forward.1} parent=1 // pred_check_branch
      %5640 = sbr.rel (0) target = $region161
    $region160: #{model_forward.1} parent=1 // pred_region
      _
    $region161: #{model_forward.1} parent=1 // pred_fallthru
      _
    %5641 = vsyncpa [#allocation3], 1

</llo_original>
